<compile_context>
chip_gen: v6e
topology: v6e:2x2x1
jax: 0.10.0
libtpu: 0.0.40
codegen_flags: <defaults>
</compile_context>

<pallas_src>
from functools import partial

import jax
import jax.numpy as jnp
from jax import lax
from jax.experimental import pallas as pl
from jax.experimental.pallas import tpu as pltpu


# --------------------------- Pallas kernels ---------------------------------

def _trunk_kernel(x_ref, wf_ref, bf_ref, w1_ref, b1_ref, w2_ref, b2_ref,
                  z_ref, psum_ref, pmax_ref, *, C, W, inv_windows):
    """Fused: first ChannelMixer + 3 ResBlocks + 2x2 max-pool + per-batch pool partials.

    Data is lane-packed: rows are (b, h), lanes are (w, channel); weights are
    block-diagonal so pointwise channel mixing is a single lane-dense matmul.
    """
    t = pl.program_id(1)

    x = x_ref[...].astype(jnp.float32)                       # (TR, W*Cin)
    z = jnp.dot(x, wf_ref[...], preferred_element_type=jnp.float32) + bf_ref[...]
    for i in range(w1_ref.shape[0]):                          # 3 ResBlocks, static unroll
        h = jnp.dot(z, w1_ref[i], preferred_element_type=jnp.float32) + b1_ref[i]
        h = jnp.maximum(h, 0.0)
        z = z + jnp.dot(h, w2_ref[i], preferred_element_type=jnp.float32) + b2_ref[i]

    # bf16 at the memory boundary only (activation traffic halved); math stays f32.
    z_ref[...] = z.astype(z_ref.dtype)

    # ---- fused 2x2 / stride-2 max-pool + per-batch (sum, max) partials ----
    TR = z.shape[0]
    # Pair image rows (h, h+1): shift rows down by one via a tiny sub-diagonal matmul
    # (MXU has plenty of slack here); valid window maxima land on odd rows.
    ri = lax.broadcasted_iota(jnp.int32, (TR, TR), 0)
    ci = lax.broadcasted_iota(jnp.int32, (TR, TR), 1)
    shift_down = (ri == ci + 1).astype(jnp.float32)           # [r, r-1] = 1
    z_up = jnp.dot(shift_down, z, preferred_element_type=jnp.float32)  # row r -> z[r-1]
    m1 = jnp.maximum(z, z_up)                                 # odd rows hold the h-pair max

    odd_row = (lax.broadcasted_iota(jnp.int32, (TR, 1), 0) % 2) == 1
    m1_s = jnp.where(odd_row, m1, 0.0)
    m1_m = jnp.where(odd_row, m1, -jnp.inf)

    tile_sum = jnp.zeros((1, C), jnp.float32)
    tile_max = jnp.full((1, C), -jnp.inf, jnp.float32)
    for wp in range(W // 2):                                   # pair (w, w+1) lane blocks
        lo = (2 * wp) * C
        wm_s = jnp.maximum(m1_s[:, lo:lo + C], m1_s[:, lo + C:lo + 2 * C])
        wm_m = jnp.maximum(m1_m[:, lo:lo + C], m1_m[:, lo + C:lo + 2 * C])
        tile_sum = tile_sum + jnp.sum(wm_s, axis=0, keepdims=True)
        tile_max = jnp.maximum(tile_max, jnp.max(wm_m, axis=0, keepdims=True))

    # Accumulate per-batch pooled statistics across the "arbitrary" row-tile axis.
    @pl.when(t == 0)
    def _init():
        psum_ref[0] = jnp.zeros((1, C), jnp.float32)
        pmax_ref[0] = jnp.full((1, C), -jnp.inf, jnp.float32)

    psum_ref[0] = psum_ref[0] + tile_sum
    pmax_ref[0] = jnp.maximum(pmax_ref[0], tile_max)

    @pl.when(t == pl.num_programs(1) - 1)
    def _finalize():
        psum_ref[0] = psum_ref[0] * inv_windows               # sum -> mean (GlobalAvgPool)


def _head_kernel(z_ref, pooled_ref, wlin_ref, blin_ref, wlast_ref, blast_ref, o_ref):
    """Fused: Linear(2C -> C) branch + residual broadcast + last ChannelMixer(C -> out)."""
    branch = (jnp.dot(pooled_ref[0], wlin_ref[...], preferred_element_type=jnp.float32)
              + blin_ref[...])                                 # (1, W*C), lane-packed
    zz = z_ref[...].astype(jnp.float32) + branch               # residual z + layers(z)
    o_ref[...] = (jnp.dot(zz, wlast_ref[...], preferred_element_type=jnp.float32)
                  + blast_ref[...]).astype(o_ref.dtype)


# --------------------------- pallas_call wrappers ----------------------------

def _pick_row_tile(H, W, C, vmem_cap_bytes=2 << 20):
    """Rows (of (b,h)) per trunk tile: even, divides H (keeps 2x2 windows and batches
    whole per tile), prefers >= 2 tiles per batch (pipelining / reduction axis), and
    respects a per-tile VMEM budget (double-buffered f32 working set)."""
    bytes_per_row = W * C * 4 * 4
    cands = [d for d in range(2, H + 1, 2)
             if H % d == 0 and d * bytes_per_row <= vmem_cap_bytes]
    assert cands, "H must be even and small enough to tile"
    pref = [d for d in cands if H // d >= 2]
    return max(pref) if pref else max(cands)


def _trunk_call(xp, Wf, bf, W1s, b1s, W2s, b2s, *, B, H, W, Cin, C, TR):
    TPB = H // TR
    WC, WCin = W * C, W * Cin
    row_map = lambda b, t: (b * TPB + t, 0)
    w2map = lambda b, t: (0, 0)
    w3map = lambda b, t: (0, 0, 0)
    bat_map = lambda b, t: (b, 0, 0)
    kernel = partial(_trunk_kernel, C=C, W=W,
                     inv_windows=1.0 / float((H // 2) * (W // 2)))
    return pl.pallas_call(
        kernel,
        grid=(B, TPB),
        in_specs=[
            pl.BlockSpec((TR, WCin), row_map),          # packed input rows
            pl.BlockSpec((WCin, WC), w2map),            # block-diag W_first (VMEM-resident)
            pl.BlockSpec((1, WC), w2map),
            pl.BlockSpec((3, WC, WC), w3map),           # stacked block-diag W1s
            pl.BlockSpec((3, 1, WC), w3map),
            pl.BlockSpec((3, WC, WC), w3map),           # stacked block-diag W2s
            pl.BlockSpec((3, 1, WC), w3map),
        ],
        out_specs=[
            pl.BlockSpec((TR, WC), row_map),            # z (bf16, lane-dense 256-wide)
            pl.BlockSpec((1, 1, C), bat_map),           # per-batch pooled mean (resident acc)
            pl.BlockSpec((1, 1, C), bat_map),           # per-batch pooled max  (resident acc)
        ],
        out_shape=(
            jax.ShapeDtypeStruct((B * H, WC), jnp.bfloat16),
            jax.ShapeDtypeStruct((B, 1, C), jnp.float32),
            jax.ShapeDtypeStruct((B, 1, C), jnp.float32),
        ),
        compiler_params=pltpu.CompilerParams(
            dimension_semantics=("parallel", "arbitrary"),
            vmem_limit_bytes=16 * 1024 * 1024),         # actual use ~3 MiB incl. buffers
    )(xp, Wf, bf, W1s, b1s, W2s, b2s)


def _head_call(zp, pooled, Wlin, blin, Wlast, blast, *, B, H, W, C, Cout, TR):
    TPB = H // TR
    WC, WCo = W * C, W * Cout
    row_map = lambda b, t: (b * TPB + t, 0)
    w2map = lambda b, t: (0, 0)
    bat_map = lambda b, t: (b, 0, 0)
    return pl.pallas_call(
        _head_kernel,
        grid=(B, TPB),
        in_specs=[
            pl.BlockSpec((TR, WC), row_map),
            pl.BlockSpec((1, 1, 2 * WC), bat_map),      # packed (mean || max) features
            pl.BlockSpec((2 * WC, WC), w2map),          # packed Linear(2C, C)
            pl.BlockSpec((1, WC), w2map),
            pl.BlockSpec((WC, WCo), w2map),             # block-diag W_last
            pl.BlockSpec((1, WCo), w2map),
        ],
        out_specs=pl.BlockSpec((TR, WCo), row_map),
        out_shape=jax.ShapeDtypeStruct((B * H, WCo), jnp.float32),
        compiler_params=pltpu.CompilerParams(
            dimension_semantics=("parallel", "parallel"),
            vmem_limit_bytes=16 * 1024 * 1024),
    )(zp, pooled, Wlin, blin, Wlast, blast)


# --------------------------- parameters & forward ----------------------------

def init_params(key, in_channels, mid_channels, out_channels):
    C = mid_channels
    ks = jax.random.split(key, 12)

    def w(k, fan_in, shape):
        return jax.random.normal(k, shape, jnp.float32) / jnp.sqrt(fan_in)

    p = {
        "W_first": w(ks[0], in_channels, (in_channels, C)),
        "b_first": jnp.zeros((1, C), jnp.float32),
        "W_lin": w(ks[1], 2 * C, (2 * C, out_channels)),
        "b_lin": jnp.zeros((1, out_channels), jnp.float32),
        "W_last": w(ks[2], C, (C, out_channels)),
        "b_last": jnp.zeros((1, out_channels), jnp.float32),
    }
    for i in range(3):  # three ResBlocks
        p[f"W1_{i}"] = w(ks[3 + 2 * i], C, (C, C))
        p[f"b1_{i}"] = jnp.zeros((1, C), jnp.float32)
        p[f"W2_{i}"] = w(ks[4 + 2 * i], C, (C, C))
        p[f"b2_{i}"] = jnp.zeros((1, C), jnp.float32)
    return p


def resnet_forward(params, x_nchw):
    B, Cin, H, W = x_nchw.shape
    C = params["W_first"].shape[1]
    Cout = params["W_last"].shape[1]
    assert params["W_lin"].shape[1] == C, "residual add needs Linear out == mid_channels"
    assert H % 2 == 0 and W % 2 == 0, "2x2/stride-2 max-pool needs even H, W"
    TR = _pick_row_tile(H, W, C)

    # NCHW -> NHWC once at entry (unavoidable given the PyTorch input layout); the
    # row-major reshape to the lane-packed (b*h, w*c) layout is free. The output is
    # returned channels-last so no trailing transpose pass is needed.
    x = jnp.transpose(x_nchw, (0, 2, 3, 1)).astype(jnp.float32)
    xp = x.reshape(B * H, W * Cin)

    # Lane-packed ("block-diagonal") weights: the pointwise channel mix applied at
    # every w becomes one (W*Cin, W*C) / (W*C, W*C) matmul on 256-lane-wide slabs.
    eyeW = jnp.eye(W, dtype=jnp.float32)
    bd = lambda m: jnp.kron(eyeW, m)
    tl = lambda v: jnp.tile(v, (1, W))
    Wf, bf = bd(params["W_first"]), tl(params["b_first"])
    W1s = jnp.stack([bd(params[f"W1_{i}"]) for i in range(3)])
    b1s = jnp.stack([tl(params[f"b1_{i}"]) for i in range(3)])
    W2s = jnp.stack([bd(params[f"W2_{i}"]) for i in range(3)])
    b2s = jnp.stack([tl(params[f"b2_{i}"]) for i in range(3)])

    zp, pmean, pmax = _trunk_call(xp, Wf, bf, W1s, b1s, W2s, b2s,
                                  B=B, H=H, W=W, Cin=Cin, C=C, TR=TR)

    # Pack the (mean || max) global-pool features into the same lane layout so the
    # head kernel's Linear(2C, C) is a lane-dense matmul too (tiny host-side glue).
    pooled = jnp.concatenate([tl(pmean[:, 0, :]), tl(pmax[:, 0, :])], axis=1)[:, None, :]
    Wlin = jnp.concatenate([bd(params["W_lin"][:C]), bd(params["W_lin"][C:])], axis=0)
    blin = tl(params["b_lin"])
    Wlast, blast = bd(params["W_last"]), tl(params["b_last"])

    outp = _head_call(zp, pooled, Wlin, blin, Wlast, blast,
                      B=B, H=H, W=W, C=C, Cout=Cout, TR=TR)
    return outp.reshape(B, H, W, Cout)          # NHWC (channels-last end-to-end)


# --------------------------- pure-JAX reference ------------------------------

def resnet_reference(params, x_nchw):
    B, Cin, H, W = x_nchw.shape
    C = params["W_first"].shape[1]
    Cout = params["W_last"].shape[1]
    x = jnp.transpose(x_nchw, (0, 2, 3, 1)).astype(jnp.float32)

    z = x.reshape(B * H * W, Cin) @ params["W_first"] + params["b_first"]
    for i in range(3):
        h = jnp.maximum(z @ params[f"W1_{i}"] + params[f"b1_{i}"], 0.0)
        z = z + h @ params[f"W2_{i}"] + params[f"b2_{i}"]
    z = z.reshape(B, H, W, C)

    t = z.reshape(B, H // 2, 2, W // 2, 2, C).max(axis=(2, 4)).reshape(B, -1, C)
    pooled = jnp.concatenate([t.mean(axis=1), t.max(axis=1)], axis=-1)      # (B, 2C)
    branch = pooled @ params["W_lin"] + params["b_lin"]                     # (B, C)

    # Mirror the kernel's bf16 storage of z between the trunk and head kernels.
    z_q = z.astype(jnp.bfloat16).astype(jnp.float32)
    z2 = z_q + branch[:, None, None, :]
    out = z2.reshape(B * H * W, C) @ params["W_last"] + params["b_last"]
    return out.reshape(B, H, W, Cout)


# --------------------------------- main --------------------------------------

if __name__ == "__main__":
    key = jax.random.PRNGKey(0)
    kp, kx = jax.random.split(key)

    B, Cin, H, W = 2, 4, 16, 16
    mid_channels = 16
    out_channels = 16  # must equal mid_channels for the residual add (see TODO above)

    params = init_params(kp, Cin, mid_channels, out_channels)
    x = jax.random.normal(kx, (B, Cin, H, W), jnp.float32)

    y = jax.jit(resnet_forward)(params, x)
    y = jax.block_until_ready(y)

    ref = resnet_reference(params, x)
    assert y.shape == (B, H, W, out_channels)
    assert jnp.allclose(y, ref, atol=2e-2, rtol=2e-2), float(jnp.max(jnp.abs(y - ref)))

    print("KERNEL_OK")
</pallas_src>

<mosaic_0001>
module attributes {stable_mosaic.version = 11 : i64} {
  func.func @_trunk_kernel(%arg0: i32, %arg1: i32, %arg2: memref<8x64xf32, #tpu.memory_space<vmem>>, %arg3: memref<64x256xf32, #tpu.memory_space<vmem>>, %arg4: memref<1x256xf32, #tpu.memory_space<vmem>>, %arg5: memref<3x256x256xf32, #tpu.memory_space<vmem>>, %arg6: memref<3x1x256xf32, #tpu.memory_space<vmem>>, %arg7: memref<3x256x256xf32, #tpu.memory_space<vmem>>, %arg8: memref<3x1x256xf32, #tpu.memory_space<vmem>>, %arg9: memref<8x256xbf16, #tpu.memory_space<vmem>>, %arg10: memref<1x1x16xf32, #tpu.memory_space<vmem>>, %arg11: memref<1x1x16xf32, #tpu.memory_space<vmem>>) attributes {dimension_semantics = [#tpu.dimension_semantics<parallel>, #tpu.dimension_semantics<arbitrary>], iteration_bounds = array<i64: 2, 2>, scalar_prefetch = 0 : i64, scratch_operands = 0 : i64, tpu.core_type = #tpu.core_type<tc>, window_params = [{transform_indices = @transform_0, window_bounds = array<i64: 8, 64>}, {pipeline_mode = #tpu.pipeline_mode<synchronous>, transform_indices = @transform_1, window_bounds = array<i64: 64, 256>}, {pipeline_mode = #tpu.pipeline_mode<synchronous>, transform_indices = @transform_2, window_bounds = array<i64: 1, 256>}, {pipeline_mode = #tpu.pipeline_mode<synchronous>, transform_indices = @transform_3, window_bounds = array<i64: 3, 256, 256>}, {pipeline_mode = #tpu.pipeline_mode<synchronous>, transform_indices = @transform_4, window_bounds = array<i64: 3, 1, 256>}, {pipeline_mode = #tpu.pipeline_mode<synchronous>, transform_indices = @transform_5, window_bounds = array<i64: 3, 256, 256>}, {pipeline_mode = #tpu.pipeline_mode<synchronous>, transform_indices = @transform_6, window_bounds = array<i64: 3, 1, 256>}, {transform_indices = @transform_7, window_bounds = array<i64: 8, 256>}, {transform_indices = @transform_8, window_bounds = array<i64: 1, 1, 16>}, {transform_indices = @transform_9, window_bounds = array<i64: 1, 1, 16>}]} {
    %c0 = arith.constant 0 : index
    %c0_0 = arith.constant 0 : index
    %0 = vector.load %arg2[%c0, %c0_0] : memref<8x64xf32, #tpu.memory_space<vmem>>, vector<8x64xf32>
    %c0_1 = arith.constant 0 : index
    %c0_2 = arith.constant 0 : index
    %1 = vector.load %arg3[%c0_1, %c0_2] : memref<64x256xf32, #tpu.memory_space<vmem>>, vector<64x256xf32>
    %cst = arith.constant dense<0.000000e+00> : vector<8x256xf32>
    %2 = tpu.matmul %0, %1, %cst {dimension_numbers = #tpu.dot_dimension_numbers<[1], [0], [0], [1], [0, 0, 1, 1], [], []>} : vector<8x64xf32>, vector<64x256xf32>, vector<8x256xf32> -> vector<8x256xf32>
    %c0_3 = arith.constant 0 : index
    %c0_4 = arith.constant 0 : index
    %3 = vector.load %arg4[%c0_3, %c0_4] : memref<1x256xf32, #tpu.memory_space<vmem>>, vector<1x256xf32>
    %4 = vector.broadcast %3 : vector<1x256xf32> to vector<8x256xf32>
    %5 = arith.addf %2, %4 : vector<8x256xf32>
    %c0_5 = arith.constant 0 : index
    %c0_6 = arith.constant 0 : index
    %c0_7 = arith.constant 0 : index
    %6 = vector.load %arg5[%c0_5, %c0_6, %c0_7] : memref<3x256x256xf32, #tpu.memory_space<vmem>>, vector<1x256x256xf32>
    %7 = vector.shape_cast %6 : vector<1x256x256xf32> to vector<256x256xf32>
    %cst_8 = arith.constant dense<0.000000e+00> : vector<8x256xf32>
    %8 = tpu.matmul %5, %7, %cst_8 {dimension_numbers = #tpu.dot_dimension_numbers<[1], [0], [0], [1], [0, 0, 1, 1], [], []>} : vector<8x256xf32>, vector<256x256xf32>, vector<8x256xf32> -> vector<8x256xf32>
    %c0_9 = arith.constant 0 : index
    %c0_10 = arith.constant 0 : index
    %c0_11 = arith.constant 0 : index
    %9 = vector.load %arg6[%c0_9, %c0_10, %c0_11] : memref<3x1x256xf32, #tpu.memory_space<vmem>>, vector<1x1x256xf32>
    %10 = vector.shape_cast %9 : vector<1x1x256xf32> to vector<1x256xf32>
    %11 = vector.broadcast %10 : vector<1x256xf32> to vector<8x256xf32>
    %12 = arith.addf %8, %11 : vector<8x256xf32>
    %cst_12 = arith.constant 0.000000e+00 : f32
    %13 = vector.broadcast %cst_12 : f32 to vector<8x256xf32>
    %14 = arith.maximumf %12, %13 : vector<8x256xf32>
    %c0_13 = arith.constant 0 : index
    %c0_14 = arith.constant 0 : index
    %c0_15 = arith.constant 0 : index
    %15 = vector.load %arg7[%c0_13, %c0_14, %c0_15] : memref<3x256x256xf32, #tpu.memory_space<vmem>>, vector<1x256x256xf32>
    %16 = vector.shape_cast %15 : vector<1x256x256xf32> to vector<256x256xf32>
    %cst_16 = arith.constant dense<0.000000e+00> : vector<8x256xf32>
    %17 = tpu.matmul %14, %16, %cst_16 {dimension_numbers = #tpu.dot_dimension_numbers<[1], [0], [0], [1], [0, 0, 1, 1], [], []>} : vector<8x256xf32>, vector<256x256xf32>, vector<8x256xf32> -> vector<8x256xf32>
    %18 = arith.addf %5, %17 : vector<8x256xf32>
    %c0_17 = arith.constant 0 : index
    %c0_18 = arith.constant 0 : index
    %c0_19 = arith.constant 0 : index
    %19 = vector.load %arg8[%c0_17, %c0_18, %c0_19] : memref<3x1x256xf32, #tpu.memory_space<vmem>>, vector<1x1x256xf32>
    %20 = vector.shape_cast %19 : vector<1x1x256xf32> to vector<1x256xf32>
    %21 = vector.broadcast %20 : vector<1x256xf32> to vector<8x256xf32>
    %22 = arith.addf %18, %21 : vector<8x256xf32>
    %c1 = arith.constant 1 : index
    %c0_20 = arith.constant 0 : index
    %c0_21 = arith.constant 0 : index
    %23 = vector.load %arg5[%c1, %c0_20, %c0_21] : memref<3x256x256xf32, #tpu.memory_space<vmem>>, vector<1x256x256xf32>
    %24 = vector.shape_cast %23 : vector<1x256x256xf32> to vector<256x256xf32>
    %cst_22 = arith.constant dense<0.000000e+00> : vector<8x256xf32>
    %25 = tpu.matmul %22, %24, %cst_22 {dimension_numbers = #tpu.dot_dimension_numbers<[1], [0], [0], [1], [0, 0, 1, 1], [], []>} : vector<8x256xf32>, vector<256x256xf32>, vector<8x256xf32> -> vector<8x256xf32>
    %c1_23 = arith.constant 1 : index
    %c0_24 = arith.constant 0 : index
    %c0_25 = arith.constant 0 : index
    %26 = vector.load %arg6[%c1_23, %c0_24, %c0_25] : memref<3x1x256xf32, #tpu.memory_space<vmem>>, vector<1x1x256xf32>
    %27 = vector.shape_cast %26 : vector<1x1x256xf32> to vector<1x256xf32>
    %28 = vector.broadcast %27 : vector<1x256xf32> to vector<8x256xf32>
    %29 = arith.addf %25, %28 : vector<8x256xf32>
    %cst_26 = arith.constant 0.000000e+00 : f32
    %30 = vector.broadcast %cst_26 : f32 to vector<8x256xf32>
    %31 = arith.maximumf %29, %30 : vector<8x256xf32>
    %c1_27 = arith.constant 1 : index
    %c0_28 = arith.constant 0 : index
    %c0_29 = arith.constant 0 : index
    %32 = vector.load %arg7[%c1_27, %c0_28, %c0_29] : memref<3x256x256xf32, #tpu.memory_space<vmem>>, vector<1x256x256xf32>
    %33 = vector.shape_cast %32 : vector<1x256x256xf32> to vector<256x256xf32>
    %cst_30 = arith.constant dense<0.000000e+00> : vector<8x256xf32>
    %34 = tpu.matmul %31, %33, %cst_30 {dimension_numbers = #tpu.dot_dimension_numbers<[1], [0], [0], [1], [0, 0, 1, 1], [], []>} : vector<8x256xf32>, vector<256x256xf32>, vector<8x256xf32> -> vector<8x256xf32>
    %35 = arith.addf %22, %34 : vector<8x256xf32>
    %c1_31 = arith.constant 1 : index
    %c0_32 = arith.constant 0 : index
    %c0_33 = arith.constant 0 : index
    %36 = vector.load %arg8[%c1_31, %c0_32, %c0_33] : memref<3x1x256xf32, #tpu.memory_space<vmem>>, vector<1x1x256xf32>
    %37 = vector.shape_cast %36 : vector<1x1x256xf32> to vector<1x256xf32>
    %38 = vector.broadcast %37 : vector<1x256xf32> to vector<8x256xf32>
    %39 = arith.addf %35, %38 : vector<8x256xf32>
    %c2 = arith.constant 2 : index
    %c0_34 = arith.constant 0 : index
    %c0_35 = arith.constant 0 : index
    %40 = vector.load %arg5[%c2, %c0_34, %c0_35] : memref<3x256x256xf32, #tpu.memory_space<vmem>>, vector<1x256x256xf32>
    %41 = vector.shape_cast %40 : vector<1x256x256xf32> to vector<256x256xf32>
    %cst_36 = arith.constant dense<0.000000e+00> : vector<8x256xf32>
    %42 = tpu.matmul %39, %41, %cst_36 {dimension_numbers = #tpu.dot_dimension_numbers<[1], [0], [0], [1], [0, 0, 1, 1], [], []>} : vector<8x256xf32>, vector<256x256xf32>, vector<8x256xf32> -> vector<8x256xf32>
    %c2_37 = arith.constant 2 : index
    %c0_38 = arith.constant 0 : index
    %c0_39 = arith.constant 0 : index
    %43 = vector.load %arg6[%c2_37, %c0_38, %c0_39] : memref<3x1x256xf32, #tpu.memory_space<vmem>>, vector<1x1x256xf32>
    %44 = vector.shape_cast %43 : vector<1x1x256xf32> to vector<1x256xf32>
    %45 = vector.broadcast %44 : vector<1x256xf32> to vector<8x256xf32>
    %46 = arith.addf %42, %45 : vector<8x256xf32>
    %cst_40 = arith.constant 0.000000e+00 : f32
    %47 = vector.broadcast %cst_40 : f32 to vector<8x256xf32>
    %48 = arith.maximumf %46, %47 : vector<8x256xf32>
    %c2_41 = arith.constant 2 : index
    %c0_42 = arith.constant 0 : index
    %c0_43 = arith.constant 0 : index
    %49 = vector.load %arg7[%c2_41, %c0_42, %c0_43] : memref<3x256x256xf32, #tpu.memory_space<vmem>>, vector<1x256x256xf32>
    %50 = vector.shape_cast %49 : vector<1x256x256xf32> to vector<256x256xf32>
    %cst_44 = arith.constant dense<0.000000e+00> : vector<8x256xf32>
    %51 = tpu.matmul %48, %50, %cst_44 {dimension_numbers = #tpu.dot_dimension_numbers<[1], [0], [0], [1], [0, 0, 1, 1], [], []>} : vector<8x256xf32>, vector<256x256xf32>, vector<8x256xf32> -> vector<8x256xf32>
    %52 = arith.addf %39, %51 : vector<8x256xf32>
    %c2_45 = arith.constant 2 : index
    %c0_46 = arith.constant 0 : index
    %c0_47 = arith.constant 0 : index
    %53 = vector.load %arg8[%c2_45, %c0_46, %c0_47] : memref<3x1x256xf32, #tpu.memory_space<vmem>>, vector<1x1x256xf32>
    %54 = vector.shape_cast %53 : vector<1x1x256xf32> to vector<1x256xf32>
    %55 = vector.broadcast %54 : vector<1x256xf32> to vector<8x256xf32>
    %56 = arith.addf %52, %55 : vector<8x256xf32>
    %57 = arith.truncf %56 : vector<8x256xf32> to vector<8x256xbf16>
    %c0_48 = arith.constant 0 : index
    %c0_49 = arith.constant 0 : index
    %58 = vector.load %arg9[%c0_48, %c0_49] : memref<8x256xbf16, #tpu.memory_space<vmem>>, vector<8x256xbf16>
    tpu.vector_store %arg9[%c0_48, %c0_49], %57 {strides = array<i32>} : memref<8x256xbf16, #tpu.memory_space<vmem>>, vector<8x256xbf16>,
    %59 = tpu.iota {dimensions = array<i32: 0>} : vector<8x8xi32>
    %60 = tpu.iota {dimensions = array<i32: 1>} : vector<8x8xi32>
    %c1_i32 = arith.constant 1 : i32
    %61 = vector.broadcast %c1_i32 : i32 to vector<8x8xi32>
    %62 = arith.addi %60, %61 : vector<8x8xi32>
    %63 = arith.cmpi eq, %59, %62 : vector<8x8xi32>
    %64 = arith.extui %63 : vector<8x8xi1> to vector<8x8xi32>
    %65 = arith.sitofp %64 : vector<8x8xi32> to vector<8x8xf32>
    %cst_50 = arith.constant dense<0.000000e+00> : vector<8x256xf32>
    %66 = tpu.matmul %65, %56, %cst_50 {dimension_numbers = #tpu.dot_dimension_numbers<[1], [0], [0], [1], [0, 0, 1, 1], [], []>} : vector<8x8xf32>, vector<8x256xf32>, vector<8x256xf32> -> vector<8x256xf32>
    %67 = arith.maximumf %56, %66 : vector<8x256xf32>
    %68 = tpu.iota {dimensions = array<i32: 0>} : vector<8x1xi32>
    %c2_i32 = arith.constant 2 : i32
    %c0_i32 = arith.constant 0 : i32
    %69 = arith.cmpi eq, %c2_i32, %c0_i32 : i32
    %c1_i32_51 = arith.constant 1 : i32
    %70 = arith.select %69, %c1_i32_51, %c2_i32 : i32
    %71 = vector.broadcast %70 : i32 to vector<8x1xi32>
    %72 = arith.remsi %68, %71 : vector<8x1xi32>
    %c0_i32_52 = arith.constant 0 : i32
    %73 = vector.broadcast %c0_i32_52 : i32 to vector<8x1xi32>
    %74 = arith.cmpi ne, %72, %73 : vector<8x1xi32>
    %c0_i32_53 = arith.constant 0 : i32
    %75 = vector.broadcast %c0_i32_53 : i32 to vector<8x1xi32>
    %76 = arith.cmpi slt, %72, %75 : vector<8x1xi32>
    %c0_i32_54 = arith.constant 0 : i32
    %77 = arith.cmpi slt, %70, %c0_i32_54 : i32
    %78 = vector.broadcast %77 : i1 to vector<8x1xi1>
    %79 = vector.broadcast %78 : vector<8x1xi1> to vector<8x1xi1>
    %80 = arith.xori %76, %79 : vector<8x1xi1>
    %81 = arith.andi %80, %74 : vector<8x1xi1>
    %82 = vector.broadcast %70 : i32 to vector<8x1xi32>
    %83 = arith.addi %72, %82 : vector<8x1xi32>
    %84 = arith.select %81, %83, %72 : vector<8x1xi1>, vector<8x1xi32>
    %c1_i32_55 = arith.constant 1 : i32
    %85 = vector.broadcast %c1_i32_55 : i32 to vector<8x1xi32>
    %86 = arith.cmpi eq, %84, %85 : vector<8x1xi32>
    %cst_56 = arith.constant 0.000000e+00 : f32
    %87 = vector.shape_cast %86 : vector<8x1xi1> to vector<8x1xi1>
    %88 = vector.broadcast %87 : vector<8x1xi1> to vector<8x256xi1>
    %89 = vector.broadcast %cst_56 : f32 to vector<8x256xf32>
    %90 = arith.select %88, %67, %89 : vector<8x256xi1>, vector<8x256xf32>
    %cst_57 = arith.constant 0xFF800000 : f32
    %91 = vector.shape_cast %86 : vector<8x1xi1> to vector<8x1xi1>
    %92 = vector.broadcast %91 : vector<8x1xi1> to vector<8x256xi1>
    %93 = vector.broadcast %cst_57 : f32 to vector<8x256xf32>
    %94 = arith.select %92, %67, %93 : vector<8x256xi1>, vector<8x256xf32>
    %cst_58 = arith.constant 0.000000e+00 : f32
    %95 = vector.broadcast %cst_58 : f32 to vector<1x16xf32>
    %cst_59 = arith.constant 0xFF800000 : f32
    %96 = vector.broadcast %cst_59 : f32 to vector<1x16xf32>
    %97 = vector.extract_strided_slice %90 {offsets = [0, 0], sizes = [8, 16], strides = [1, 1]} : vector<8x256xf32> to vector<8x16xf32>
    %98 = vector.extract_strided_slice %90 {offsets = [0, 16], sizes = [8, 16], strides = [1, 1]} : vector<8x256xf32> to vector<8x16xf32>
    %99 = arith.maximumf %97, %98 : vector<8x16xf32>
    %100 = vector.extract_strided_slice %94 {offsets = [0, 0], sizes = [8, 16], strides = [1, 1]} : vector<8x256xf32> to vector<8x16xf32>
    %101 = vector.extract_strided_slice %94 {offsets = [0, 16], sizes = [8, 16], strides = [1, 1]} : vector<8x256xf32> to vector<8x16xf32>
    %102 = arith.maximumf %100, %101 : vector<8x16xf32>
    %cst_60 = arith.constant dense<0.000000e+00> : vector<16xf32>
    %103 = vector.multi_reduction <add>, %99, %cst_60 [0] : vector<8x16xf32> to vector<16xf32>
    %104 = vector.shape_cast %103 : vector<16xf32> to vector<1x16xf32>
    %105 = arith.addf %95, %104 : vector<1x16xf32>
    %cst_61 = arith.constant dense<0xFF800000> : vector<16xf32>
    %106 = vector.multi_reduction <maximumf>, %102, %cst_61 [0] : vector<8x16xf32> to vector<16xf32>
    %107 = vector.shape_cast %106 : vector<16xf32> to vector<1x16xf32>
    %108 = arith.maximumf %96, %107 : vector<1x16xf32>
    %109 = vector.extract_strided_slice %90 {offsets = [0, 32], sizes = [8, 16], strides = [1, 1]} : vector<8x256xf32> to vector<8x16xf32>
    %110 = vector.extract_strided_slice %90 {offsets = [0, 48], sizes = [8, 16], strides = [1, 1]} : vector<8x256xf32> to vector<8x16xf32>
    %111 = arith.maximumf %109, %110 : vector<8x16xf32>
    %112 = vector.extract_strided_slice %94 {offsets = [0, 32], sizes = [8, 16], strides = [1, 1]} : vector<8x256xf32> to vector<8x16xf32>
    %113 = vector.extract_strided_slice %94 {offsets = [0, 48], sizes = [8, 16], strides = [1, 1]} : vector<8x256xf32> to vector<8x16xf32>
    %114 = arith.maximumf %112, %113 : vector<8x16xf32>
    %cst_62 = arith.constant dense<0.000000e+00> : vector<16xf32>
    %115 = vector.multi_reduction <add>, %111, %cst_62 [0] : vector<8x16xf32> to vector<16xf32>
    %116 = vector.shape_cast %115 : vector<16xf32> to vector<1x16xf32>
    %117 = arith.addf %105, %116 : vector<1x16xf32>
    %cst_63 = arith.constant dense<0xFF800000> : vector<16xf32>
    %118 = vector.multi_reduction <maximumf>, %114, %cst_63 [0] : vector<8x16xf32> to vector<16xf32>
    %119 = vector.shape_cast %118 : vector<16xf32> to vector<1x16xf32>
    %120 = arith.maximumf %108, %119 : vector<1x16xf32>
    %121 = vector.extract_strided_slice %90 {offsets = [0, 64], sizes = [8, 16], strides = [1, 1]} : vector<8x256xf32> to vector<8x16xf32>
    %122 = vector.extract_strided_slice %90 {offsets = [0, 80], sizes = [8, 16], strides = [1, 1]} : vector<8x256xf32> to vector<8x16xf32>
    %123 = arith.maximumf %121, %122 : vector<8x16xf32>
    %124 = vector.extract_strided_slice %94 {offsets = [0, 64], sizes = [8, 16], strides = [1, 1]} : vector<8x256xf32> to vector<8x16xf32>
    %125 = vector.extract_strided_slice %94 {offsets = [0, 80], sizes = [8, 16], strides = [1, 1]} : vector<8x256xf32> to vector<8x16xf32>
    %126 = arith.maximumf %124, %125 : vector<8x16xf32>
    %cst_64 = arith.constant dense<0.000000e+00> : vector<16xf32>
    %127 = vector.multi_reduction <add>, %123, %cst_64 [0] : vector<8x16xf32> to vector<16xf32>
    %128 = vector.shape_cast %127 : vector<16xf32> to vector<1x16xf32>
    %129 = arith.addf %117, %128 : vector<1x16xf32>
    %cst_65 = arith.constant dense<0xFF800000> : vector<16xf32>
    %130 = vector.multi_reduction <maximumf>, %126, %cst_65 [0] : vector<8x16xf32> to vector<16xf32>
    %131 = vector.shape_cast %130 : vector<16xf32> to vector<1x16xf32>
    %132 = arith.maximumf %120, %131 : vector<1x16xf32>
    %133 = vector.extract_strided_slice %90 {offsets = [0, 96], sizes = [8, 16], strides = [1, 1]} : vector<8x256xf32> to vector<8x16xf32>
    %134 = vector.extract_strided_slice %90 {offsets = [0, 112], sizes = [8, 16], strides = [1, 1]} : vector<8x256xf32> to vector<8x16xf32>
    %135 = arith.maximumf %133, %134 : vector<8x16xf32>
    %136 = vector.extract_strided_slice %94 {offsets = [0, 96], sizes = [8, 16], strides = [1, 1]} : vector<8x256xf32> to vector<8x16xf32>
    %137 = vector.extract_strided_slice %94 {offsets = [0, 112], sizes = [8, 16], strides = [1, 1]} : vector<8x256xf32> to vector<8x16xf32>
    %138 = arith.maximumf %136, %137 : vector<8x16xf32>
    %cst_66 = arith.constant dense<0.000000e+00> : vector<16xf32>
    %139 = vector.multi_reduction <add>, %135, %cst_66 [0] : vector<8x16xf32> to vector<16xf32>
    %140 = vector.shape_cast %139 : vector<16xf32> to vector<1x16xf32>
    %141 = arith.addf %129, %140 : vector<1x16xf32>
    %cst_67 = arith.constant dense<0xFF800000> : vector<16xf32>
    %142 = vector.multi_reduction <maximumf>, %138, %cst_67 [0] : vector<8x16xf32> to vector<16xf32>
    %143 = vector.shape_cast %142 : vector<16xf32> to vector<1x16xf32>
    %144 = arith.maximumf %132, %143 : vector<1x16xf32>
    %145 = vector.extract_strided_slice %90 {offsets = [0, 128], sizes = [8, 16], strides = [1, 1]} : vector<8x256xf32> to vector<8x16xf32>
    %146 = vector.extract_strided_slice %90 {offsets = [0, 144], sizes = [8, 16], strides = [1, 1]} : vector<8x256xf32> to vector<8x16xf32>
    %147 = arith.maximumf %145, %146 : vector<8x16xf32>
    %148 = vector.extract_strided_slice %94 {offsets = [0, 128], sizes = [8, 16], strides = [1, 1]} : vector<8x256xf32> to vector<8x16xf32>
    %149 = vector.extract_strided_slice %94 {offsets = [0, 144], sizes = [8, 16], strides = [1, 1]} : vector<8x256xf32> to vector<8x16xf32>
    %150 = arith.maximumf %148, %149 : vector<8x16xf32>
    %cst_68 = arith.constant dense<0.000000e+00> : vector<16xf32>
    %151 = vector.multi_reduction <add>, %147, %cst_68 [0] : vector<8x16xf32> to vector<16xf32>
    %152 = vector.shape_cast %151 : vector<16xf32> to vector<1x16xf32>
    %153 = arith.addf %141, %152 : vector<1x16xf32>
    %cst_69 = arith.constant dense<0xFF800000> : vector<16xf32>
    %154 = vector.multi_reduction <maximumf>, %150, %cst_69 [0] : vector<8x16xf32> to vector<16xf32>
    %155 = vector.shape_cast %154 : vector<16xf32> to vector<1x16xf32>
    %156 = arith.maximumf %144, %155 : vector<1x16xf32>
    %157 = vector.extract_strided_slice %90 {offsets = [0, 160], sizes = [8, 16], strides = [1, 1]} : vector<8x256xf32> to vector<8x16xf32>
    %158 = vector.extract_strided_slice %90 {offsets = [0, 176], sizes = [8, 16], strides = [1, 1]} : vector<8x256xf32> to vector<8x16xf32>
    %159 = arith.maximumf %157, %158 : vector<8x16xf32>
    %160 = vector.extract_strided_slice %94 {offsets = [0, 160], sizes = [8, 16], strides = [1, 1]} : vector<8x256xf32> to vector<8x16xf32>
    %161 = vector.extract_strided_slice %94 {offsets = [0, 176], sizes = [8, 16], strides = [1, 1]} : vector<8x256xf32> to vector<8x16xf32>
    %162 = arith.maximumf %160, %161 : vector<8x16xf32>
    %cst_70 = arith.constant dense<0.000000e+00> : vector<16xf32>
    %163 = vector.multi_reduction <add>, %159, %cst_70 [0] : vector<8x16xf32> to vector<16xf32>
    %164 = vector.shape_cast %163 : vector<16xf32> to vector<1x16xf32>
    %165 = arith.addf %153, %164 : vector<1x16xf32>
    %cst_71 = arith.constant dense<0xFF800000> : vector<16xf32>
    %166 = vector.multi_reduction <maximumf>, %162, %cst_71 [0] : vector<8x16xf32> to vector<16xf32>
    %167 = vector.shape_cast %166 : vector<16xf32> to vector<1x16xf32>
    %168 = arith.maximumf %156, %167 : vector<1x16xf32>
    %169 = vector.extract_strided_slice %90 {offsets = [0, 192], sizes = [8, 16], strides = [1, 1]} : vector<8x256xf32> to vector<8x16xf32>
    %170 = vector.extract_strided_slice %90 {offsets = [0, 208], sizes = [8, 16], strides = [1, 1]} : vector<8x256xf32> to vector<8x16xf32>
    %171 = arith.maximumf %169, %170 : vector<8x16xf32>
    %172 = vector.extract_strided_slice %94 {offsets = [0, 192], sizes = [8, 16], strides = [1, 1]} : vector<8x256xf32> to vector<8x16xf32>
    %173 = vector.extract_strided_slice %94 {offsets = [0, 208], sizes = [8, 16], strides = [1, 1]} : vector<8x256xf32> to vector<8x16xf32>
    %174 = arith.maximumf %172, %173 : vector<8x16xf32>
    %cst_72 = arith.constant dense<0.000000e+00> : vector<16xf32>
    %175 = vector.multi_reduction <add>, %171, %cst_72 [0] : vector<8x16xf32> to vector<16xf32>
    %176 = vector.shape_cast %175 : vector<16xf32> to vector<1x16xf32>
    %177 = arith.addf %165, %176 : vector<1x16xf32>
    %cst_73 = arith.constant dense<0xFF800000> : vector<16xf32>
    %178 = vector.multi_reduction <maximumf>, %174, %cst_73 [0] : vector<8x16xf32> to vector<16xf32>
    %179 = vector.shape_cast %178 : vector<16xf32> to vector<1x16xf32>
    %180 = arith.maximumf %168, %179 : vector<1x16xf32>
    %181 = vector.extract_strided_slice %90 {offsets = [0, 224], sizes = [8, 16], strides = [1, 1]} : vector<8x256xf32> to vector<8x16xf32>
    %182 = vector.extract_strided_slice %90 {offsets = [0, 240], sizes = [8, 16], strides = [1, 1]} : vector<8x256xf32> to vector<8x16xf32>
    %183 = arith.maximumf %181, %182 : vector<8x16xf32>
    %184 = vector.extract_strided_slice %94 {offsets = [0, 224], sizes = [8, 16], strides = [1, 1]} : vector<8x256xf32> to vector<8x16xf32>
    %185 = vector.extract_strided_slice %94 {offsets = [0, 240], sizes = [8, 16], strides = [1, 1]} : vector<8x256xf32> to vector<8x16xf32>
    %186 = arith.maximumf %184, %185 : vector<8x16xf32>
    %cst_74 = arith.constant dense<0.000000e+00> : vector<16xf32>
    %187 = vector.multi_reduction <add>, %183, %cst_74 [0] : vector<8x16xf32> to vector<16xf32>
    %188 = vector.shape_cast %187 : vector<16xf32> to vector<1x16xf32>
    %189 = arith.addf %177, %188 : vector<1x16xf32>
    %cst_75 = arith.constant dense<0xFF800000> : vector<16xf32>
    %190 = vector.multi_reduction <maximumf>, %186, %cst_75 [0] : vector<8x16xf32> to vector<16xf32>
    %191 = vector.shape_cast %190 : vector<16xf32> to vector<1x16xf32>
    %192 = arith.maximumf %180, %191 : vector<1x16xf32>
    %c0_i32_76 = arith.constant 0 : i32
    %193 = arith.cmpi eq, %arg1, %c0_i32_76 : i32
    %194 = arith.extui %193 : i1 to i32
    %c0_i32_77 = arith.constant 0 : i32
    %195 = arith.cmpi ne, %194, %c0_i32_77 : i32
    scf.if %195 {
      %cst_92 = arith.constant 0.000000e+00 : f32
      %211 = vector.broadcast %cst_92 : f32 to vector<1x16xf32>
      %c0_93 = arith.constant 0 : index
      %c0_94 = arith.constant 0 : index
      %c0_95 = arith.constant 0 : index
      %212 = vector.load %arg10[%c0_93, %c0_94, %c0_95] : memref<1x1x16xf32, #tpu.memory_space<vmem>>, vector<1x1x16xf32>
      %213 = vector.shape_cast %212 : vector<1x1x16xf32> to vector<1x16xf32>
      %214 = vector.shape_cast %211 : vector<1x16xf32> to vector<1x1x16xf32>
      tpu.vector_store %arg10[%c0_93, %c0_94, %c0_95], %214 {strides = array<i32>} : memref<1x1x16xf32, #tpu.memory_space<vmem>>, vector<1x1x16xf32>,
      %cst_96 = arith.constant 0xFF800000 : f32
      %215 = vector.broadcast %cst_96 : f32 to vector<1x16xf32>
      %c0_97 = arith.constant 0 : index
      %c0_98 = arith.constant 0 : index
      %c0_99 = arith.constant 0 : index
      %216 = vector.load %arg11[%c0_97, %c0_98, %c0_99] : memref<1x1x16xf32, #tpu.memory_space<vmem>>, vector<1x1x16xf32>
      %217 = vector.shape_cast %216 : vector<1x1x16xf32> to vector<1x16xf32>
      %218 = vector.shape_cast %215 : vector<1x16xf32> to vector<1x1x16xf32>
      tpu.vector_store %arg11[%c0_97, %c0_98, %c0_99], %218 {strides = array<i32>} : memref<1x1x16xf32, #tpu.memory_space<vmem>>, vector<1x1x16xf32>,
    } else {
    }
    %c0_78 = arith.constant 0 : index
    %c0_79 = arith.constant 0 : index
    %c0_80 = arith.constant 0 : index
    %196 = vector.load %arg10[%c0_78, %c0_79, %c0_80] : memref<1x1x16xf32, #tpu.memory_space<vmem>>, vector<1x1x16xf32>
    %197 = vector.shape_cast %196 : vector<1x1x16xf32> to vector<1x16xf32>
    %198 = arith.addf %197, %189 : vector<1x16xf32>
    %c0_81 = arith.constant 0 : index
    %c0_82 = arith.constant 0 : index
    %c0_83 = arith.constant 0 : index
    %199 = vector.load %arg10[%c0_81, %c0_82, %c0_83] : memref<1x1x16xf32, #tpu.memory_space<vmem>>, vector<1x1x16xf32>
    %200 = vector.shape_cast %199 : vector<1x1x16xf32> to vector<1x16xf32>
    %201 = vector.shape_cast %198 : vector<1x16xf32> to vector<1x1x16xf32>
    tpu.vector_store %arg10[%c0_81, %c0_82, %c0_83], %201 {strides = array<i32>} : memref<1x1x16xf32, #tpu.memory_space<vmem>>, vector<1x1x16xf32>,
    %c0_84 = arith.constant 0 : index
    %c0_85 = arith.constant 0 : index
    %c0_86 = arith.constant 0 : index
    %202 = vector.load %arg11[%c0_84, %c0_85, %c0_86] : memref<1x1x16xf32, #tpu.memory_space<vmem>>, vector<1x1x16xf32>
    %203 = vector.shape_cast %202 : vector<1x1x16xf32> to vector<1x16xf32>
    %204 = arith.maximumf %203, %192 : vector<1x16xf32>
    %c0_87 = arith.constant 0 : index
    %c0_88 = arith.constant 0 : index
    %c0_89 = arith.constant 0 : index
    %205 = vector.load %arg11[%c0_87, %c0_88, %c0_89] : memref<1x1x16xf32, #tpu.memory_space<vmem>>, vector<1x1x16xf32>
    %206 = vector.shape_cast %205 : vector<1x1x16xf32> to vector<1x16xf32>
    %207 = vector.shape_cast %204 : vector<1x16xf32> to vector<1x1x16xf32>
    tpu.vector_store %arg11[%c0_87, %c0_88, %c0_89], %207 {strides = array<i32>} : memref<1x1x16xf32, #tpu.memory_space<vmem>>, vector<1x1x16xf32>,
    %c1_i32_90 = arith.constant 1 : i32
    %208 = arith.cmpi eq, %arg1, %c1_i32_90 : i32
    %209 = arith.extui %208 : i1 to i32
    %c0_i32_91 = arith.constant 0 : i32
    %210 = arith.cmpi ne, %209, %c0_i32_91 : i32
    scf.if %210 {
      %c0_92 = arith.constant 0 : index
      %c0_93 = arith.constant 0 : index
      %c0_94 = arith.constant 0 : index
      %211 = vector.load %arg10[%c0_92, %c0_93, %c0_94] : memref<1x1x16xf32, #tpu.memory_space<vmem>>, vector<1x1x16xf32>
      %212 = vector.shape_cast %211 : vector<1x1x16xf32> to vector<1x16xf32>
      %cst_95 = arith.constant 1.562500e-02 : f32
      %213 = vector.broadcast %cst_95 : f32 to vector<1x16xf32>
      %214 = arith.mulf %212, %213 : vector<1x16xf32>
      %c0_96 = arith.constant 0 : index
      %c0_97 = arith.constant 0 : index
      %c0_98 = arith.constant 0 : index
      %215 = vector.load %arg10[%c0_96, %c0_97, %c0_98] : memref<1x1x16xf32, #tpu.memory_space<vmem>>, vector<1x1x16xf32>
      %216 = vector.shape_cast %215 : vector<1x1x16xf32> to vector<1x16xf32>
      %217 = vector.shape_cast %214 : vector<1x16xf32> to vector<1x1x16xf32>
      tpu.vector_store %arg10[%c0_96, %c0_97, %c0_98], %217 {strides = array<i32>} : memref<1x1x16xf32, #tpu.memory_space<vmem>>, vector<1x1x16xf32>,
    } else {
    }
    return
  }
  func.func @transform_0(%arg0: i32, %arg1: i32) -> (i32, i32) {
    %c2_i32 = arith.constant 2 : i32
    %0 = arith.muli %arg0, %c2_i32 : i32
    %1 = arith.addi %0, %arg1 : i32
    %c0_i32 = arith.constant 0 : i32
    %c0_i32_0 = arith.constant 0 : i32
    return %1, %c0_i32 : i32, i32
  }
  func.func @transform_1(%arg0: i32, %arg1: i32) -> (i32, i32) {
    %c0_i32 = arith.constant 0 : i32
    %c0_i32_0 = arith.constant 0 : i32
    %c0_i32_1 = arith.constant 0 : i32
    return %c0_i32, %c0_i32_0 : i32, i32
  }
  func.func @transform_2(%arg0: i32, %arg1: i32) -> (i32, i32) {
    %c0_i32 = arith.constant 0 : i32
    %c0_i32_0 = arith.constant 0 : i32
    %c0_i32_1 = arith.constant 0 : i32
    return %c0_i32, %c0_i32_0 : i32, i32
  }
  func.func @transform_3(%arg0: i32, %arg1: i32) -> (i32, i32, i32) {
    %c0_i32 = arith.constant 0 : i32
    %c0_i32_0 = arith.constant 0 : i32
    %c0_i32_1 = arith.constant 0 : i32
    %c0_i32_2 = arith.constant 0 : i32
    return %c0_i32, %c0_i32_0, %c0_i32_1 : i32, i32, i32
  }
  func.func @transform_4(%arg0: i32, %arg1: i32) -> (i32, i32, i32) {
    %c0_i32 = arith.constant 0 : i32
    %c0_i32_0 = arith.constant 0 : i32
    %c0_i32_1 = arith.constant 0 : i32
    %c0_i32_2 = arith.constant 0 : i32
    return %c0_i32, %c0_i32_0, %c0_i32_1 : i32, i32, i32
  }
  func.func @transform_5(%arg0: i32, %arg1: i32) -> (i32, i32, i32) {
    %c0_i32 = arith.constant 0 : i32
    %c0_i32_0 = arith.constant 0 : i32
    %c0_i32_1 = arith.constant 0 : i32
    %c0_i32_2 = arith.constant 0 : i32
    return %c0_i32, %c0_i32_0, %c0_i32_1 : i32, i32, i32
  }
  func.func @transform_6(%arg0: i32, %arg1: i32) -> (i32, i32, i32) {
    %c0_i32 = arith.constant 0 : i32
    %c0_i32_0 = arith.constant 0 : i32
    %c0_i32_1 = arith.constant 0 : i32
    %c0_i32_2 = arith.constant 0 : i32
    return %c0_i32, %c0_i32_0, %c0_i32_1 : i32, i32, i32
  }
  func.func @transform_7(%arg0: i32, %arg1: i32) -> (i32, i32) {
    %c2_i32 = arith.constant 2 : i32
    %0 = arith.muli %arg0, %c2_i32 : i32
    %1 = arith.addi %0, %arg1 : i32
    %c0_i32 = arith.constant 0 : i32
    %c0_i32_0 = arith.constant 0 : i32
    return %1, %c0_i32 : i32, i32
  }
  func.func @transform_8(%arg0: i32, %arg1: i32) -> (i32, i32, i32) {
    %c0_i32 = arith.constant 0 : i32
    %c0_i32_0 = arith.constant 0 : i32
    %c0_i32_1 = arith.constant 0 : i32
    return %arg0, %c0_i32, %c0_i32_0 : i32, i32, i32
  }
  func.func @transform_9(%arg0: i32, %arg1: i32) -> (i32, i32, i32) {
    %c0_i32 = arith.constant 0 : i32
    %c0_i32_0 = arith.constant 0 : i32
    %c0_i32_1 = arith.constant 0 : i32
    return %arg0, %c0_i32, %c0_i32_0 : i32, i32, i32
  }
}

module attributes {stable_mosaic.version = 11 : i64} {
  func.func @_head_kernel(%arg0: i32, %arg1: i32, %arg2: memref<8x256xbf16, #tpu.memory_space<vmem>>, %arg3: memref<1x1x512xf32, #tpu.memory_space<vmem>>, %arg4: memref<512x256xf32, #tpu.memory_space<vmem>>, %arg5: memref<1x256xf32, #tpu.memory_space<vmem>>, %arg6: memref<256x256xf32, #tpu.memory_space<vmem>>, %arg7: memref<1x256xf32, #tpu.memory_space<vmem>>, %arg8: memref<8x256xf32, #tpu.memory_space<vmem>>) attributes {dimension_semantics = [#tpu.dimension_semantics<parallel>, #tpu.dimension_semantics<parallel>], iteration_bounds = array<i64: 2, 2>, scalar_prefetch = 0 : i64, scratch_operands = 0 : i64, tpu.core_type = #tpu.core_type<tc>, window_params = [{transform_indices = @transform_0, window_bounds = array<i64: 8, 256>}, {transform_indices = @transform_1, window_bounds = array<i64: 1, 1, 512>}, {pipeline_mode = #tpu.pipeline_mode<synchronous>, transform_indices = @transform_2, window_bounds = array<i64: 512, 256>}, {pipeline_mode = #tpu.pipeline_mode<synchronous>, transform_indices = @transform_3, window_bounds = array<i64: 1, 256>}, {pipeline_mode = #tpu.pipeline_mode<synchronous>, transform_indices = @transform_4, window_bounds = array<i64: 256, 256>}, {pipeline_mode = #tpu.pipeline_mode<synchronous>, transform_indices = @transform_5, window_bounds = array<i64: 1, 256>}, {transform_indices = @transform_6, window_bounds = array<i64: 8, 256>}]} {
    %c0 = arith.constant 0 : index
    %c0_0 = arith.constant 0 : index
    %c0_1 = arith.constant 0 : index
    %0 = vector.load %arg3[%c0, %c0_0, %c0_1] : memref<1x1x512xf32, #tpu.memory_space<vmem>>, vector<1x1x512xf32>
    %1 = vector.shape_cast %0 : vector<1x1x512xf32> to vector<1x512xf32>
    %c0_2 = arith.constant 0 : index
    %c0_3 = arith.constant 0 : index
    %2 = vector.load %arg4[%c0_2, %c0_3] : memref<512x256xf32, #tpu.memory_space<vmem>>, vector<512x256xf32>
    %cst = arith.constant dense<0.000000e+00> : vector<1x256xf32>
    %3 = tpu.matmul %1, %2, %cst {dimension_numbers = #tpu.dot_dimension_numbers<[1], [0], [0], [1], [0, 0, 1, 1], [], []>} : vector<1x512xf32>, vector<512x256xf32>, vector<1x256xf32> -> vector<1x256xf32>
    %c0_4 = arith.constant 0 : index
    %c0_5 = arith.constant 0 : index
    %4 = vector.load %arg5[%c0_4, %c0_5] : memref<1x256xf32, #tpu.memory_space<vmem>>, vector<1x256xf32>
    %5 = arith.addf %3, %4 : vector<1x256xf32>
    %c0_6 = arith.constant 0 : index
    %c0_7 = arith.constant 0 : index
    %6 = vector.load %arg2[%c0_6, %c0_7] : memref<8x256xbf16, #tpu.memory_space<vmem>>, vector<8x256xbf16>
    %7 = arith.extf %6 : vector<8x256xbf16> to vector<8x256xf32>
    %8 = vector.broadcast %5 : vector<1x256xf32> to vector<8x256xf32>
    %9 = arith.addf %7, %8 : vector<8x256xf32>
    %c0_8 = arith.constant 0 : index
    %c0_9 = arith.constant 0 : index
    %10 = vector.load %arg6[%c0_8, %c0_9] : memref<256x256xf32, #tpu.memory_space<vmem>>, vector<256x256xf32>
    %cst_10 = arith.constant dense<0.000000e+00> : vector<8x256xf32>
    %11 = tpu.matmul %9, %10, %cst_10 {dimension_numbers = #tpu.dot_dimension_numbers<[1], [0], [0], [1], [0, 0, 1, 1], [], []>} : vector<8x256xf32>, vector<256x256xf32>, vector<8x256xf32> -> vector<8x256xf32>
    %c0_11 = arith.constant 0 : index
    %c0_12 = arith.constant 0 : index
    %12 = vector.load %arg7[%c0_11, %c0_12] : memref<1x256xf32, #tpu.memory_space<vmem>>, vector<1x256xf32>
    %13 = vector.broadcast %12 : vector<1x256xf32> to vector<8x256xf32>
    %14 = arith.addf %11, %13 : vector<8x256xf32>
    %c0_13 = arith.constant 0 : index
    %c0_14 = arith.constant 0 : index
    %15 = vector.load %arg8[%c0_13, %c0_14] : memref<8x256xf32, #tpu.memory_space<vmem>>, vector<8x256xf32>
    tpu.vector_store %arg8[%c0_13, %c0_14], %14 {strides = array<i32>} : memref<8x256xf32, #tpu.memory_space<vmem>>, vector<8x256xf32>,
    return
  }
  func.func @transform_0(%arg0: i32, %arg1: i32) -> (i32, i32) {
    %c2_i32 = arith.constant 2 : i32
    %0 = arith.muli %arg0, %c2_i32 : i32
    %1 = arith.addi %0, %arg1 : i32
    %c0_i32 = arith.constant 0 : i32
    %c0_i32_0 = arith.constant 0 : i32
    return %1, %c0_i32 : i32, i32
  }
  func.func @transform_1(%arg0: i32, %arg1: i32) -> (i32, i32, i32) {
    %c0_i32 = arith.constant 0 : i32
    %c0_i32_0 = arith.constant 0 : i32
    %c0_i32_1 = arith.constant 0 : i32
    return %arg0, %c0_i32, %c0_i32_0 : i32, i32, i32
  }
  func.func @transform_2(%arg0: i32, %arg1: i32) -> (i32, i32) {
    %c0_i32 = arith.constant 0 : i32
    %c0_i32_0 = arith.constant 0 : i32
    %c0_i32_1 = arith.constant 0 : i32
    return %c0_i32, %c0_i32_0 : i32, i32
  }
  func.func @transform_3(%arg0: i32, %arg1: i32) -> (i32, i32) {
    %c0_i32 = arith.constant 0 : i32
    %c0_i32_0 = arith.constant 0 : i32
    %c0_i32_1 = arith.constant 0 : i32
    return %c0_i32, %c0_i32_0 : i32, i32
  }
  func.func @transform_4(%arg0: i32, %arg1: i32) -> (i32, i32) {
    %c0_i32 = arith.constant 0 : i32
    %c0_i32_0 = arith.constant 0 : i32
    %c0_i32_1 = arith.constant 0 : i32
    return %c0_i32, %c0_i32_0 : i32, i32
  }
  func.func @transform_5(%arg0: i32, %arg1: i32) -> (i32, i32) {
    %c0_i32 = arith.constant 0 : i32
    %c0_i32_0 = arith.constant 0 : i32
    %c0_i32_1 = arith.constant 0 : i32
    return %c0_i32, %c0_i32_0 : i32, i32
  }
  func.func @transform_6(%arg0: i32, %arg1: i32) -> (i32, i32) {
    %c2_i32 = arith.constant 2 : i32
    %0 = arith.muli %arg0, %c2_i32 : i32
    %1 = arith.addi %0, %arg1 : i32
    %c0_i32 = arith.constant 0 : i32
    %c0_i32_0 = arith.constant 0 : i32
    return %1, %c0_i32 : i32, i32
  }
}

</mosaic_0001>

<llo_original>
// kernel: tile.91
$region0: #{tile.91}
  %s0 = inlined_call_operand.vmem [shape: f32[2,16,16], index: 0, kind: input, shape index: {}]
  %s1 = inlined_call_operand.vmem [shape: f32[2,256], index: 1, kind: output, shape index: {}]
  $region1: #{tile.91} parent=0
    #allocation0 [shape = 'u8[8192]{0}', space=vmem, size = 0x2000, scoped, tag = 'scoped mem for output reshape']
    %v2 = vld [vmem:[%s0] ss:$8 sm:$0xf]
    %vm3 = vcmask 130048
    %4 = vst.msk [vmem:[#allocation0] ss:$8 sm:$0x3] %vm3, %v2
    %s5 = scalar_lea.vmem [#allocation0], 4294967281
    %6 = vst.msk [vmem:[%s5] ss:$8 sm:$0xc] %vm3, %v2
    %s7 = scalar_lea.vmem %s0, 7
    %s8 = smov 3
    %v9 = vld [vmem:[%s7] ss:$16 sm:%s8]
    %s10 = scalar_lea.vmem %s0, 4294967279
    %s11 = smov 12
    %v12 = vld [vmem:[%s10] ss:$16 sm:%s11]
    %vm13 = vcmask 1043458
    %v14 = vsel %vm13, %v12, %v9
    %15 = vrot.lane.b32.xlu0 %v14, 112
    %v16 = vpop.permute.xlu0 %15
    %vm17 = vcmask 1048448
    %18 = vst.msk [vmem:[#allocation0] sm:$0x3] %vm17, %v16
    %s19 = scalar_lea.vmem [#allocation0], 6
    %20 = vst.msk [vmem:[%s19] sm:$0xc] %vm17, %v16
    %s21 = scalar_lea.vmem %s0, 6
    %s22 = smov 3
    %v23 = vld [vmem:[%s21] ss:$16 sm:%s22]
    %s24 = scalar_lea.vmem %s0, 4294967278
    %s25 = smov 12
    %v26 = vld [vmem:[%s24] ss:$16 sm:%s25]
    %vm27 = vcmask 1043458
    %v28 = vsel %vm27, %v26, %v23
    %29 = vrot.lane.b32.xlu0 %v28, 96
    %v30 = vpop.permute.xlu0 %29
    %vm31 = vcmask 917248
    %32 = vst.msk [vmem:[#allocation0] sm:$0x3] %vm31, %v30
    %s33 = scalar_lea.vmem [#allocation0], 6
    %34 = vst.msk [vmem:[%s33] sm:$0xc] %vm31, %v30
    %s35 = scalar_lea.vmem %s0, 5
    %s36 = smov 3
    %v37 = vld [vmem:[%s35] ss:$16 sm:%s36]
    %s38 = scalar_lea.vmem %s0, 4294967277
    %s39 = smov 12
    %v40 = vld [vmem:[%s38] ss:$16 sm:%s39]
    %vm41 = vcmask 1043458
    %v42 = vsel %vm41, %v40, %v37
    %43 = vrot.lane.b32.xlu0 %v42, 80
    %v44 = vpop.permute.xlu0 %43
    %vm45 = vcmask 786048
    %46 = vst.msk [vmem:[#allocation0] sm:$0x3] %vm45, %v44
    %s47 = scalar_lea.vmem [#allocation0], 6
    %48 = vst.msk [vmem:[%s47] sm:$0xc] %vm45, %v44
    %s49 = scalar_lea.vmem %s0, 4
    %s50 = smov 3
    %v51 = vld [vmem:[%s49] ss:$16 sm:%s50]
    %s52 = scalar_lea.vmem %s0, 4294967276
    %s53 = smov 12
    %v54 = vld [vmem:[%s52] ss:$16 sm:%s53]
    %vm55 = vcmask 1043458
    %v56 = vsel %vm55, %v54, %v51
    %57 = vrot.lane.b32.xlu0 %v56, 64
    %v58 = vpop.permute.xlu0 %57
    %vm59 = vcmask 654848
    %60 = vst.msk [vmem:[#allocation0] sm:$0x3] %vm59, %v58
    %s61 = scalar_lea.vmem [#allocation0], 6
    %62 = vst.msk [vmem:[%s61] sm:$0xc] %vm59, %v58
    %s63 = scalar_lea.vmem %s0, 3
    %s64 = smov 3
    %v65 = vld [vmem:[%s63] ss:$16 sm:%s64]
    %s66 = scalar_lea.vmem %s0, 4294967275
    %s67 = smov 12
    %v68 = vld [vmem:[%s66] ss:$16 sm:%s67]
    %vm69 = vcmask 1043458
    %v70 = vsel %vm69, %v68, %v65
    %71 = vrot.lane.b32.xlu0 %v70, 48
    %v72 = vpop.permute.xlu0 %71
    %vm73 = vcmask 523648
    %74 = vst.msk [vmem:[#allocation0] sm:$0x3] %vm73, %v72
    %s75 = scalar_lea.vmem [#allocation0], 6
    %76 = vst.msk [vmem:[%s75] sm:$0xc] %vm73, %v72
    %s77 = scalar_lea.vmem %s0, 2
    %s78 = smov 3
    %v79 = vld [vmem:[%s77] ss:$16 sm:%s78]
    %s80 = scalar_lea.vmem %s0, 4294967274
    %s81 = smov 12
    %v82 = vld [vmem:[%s80] ss:$16 sm:%s81]
    %vm83 = vcmask 1043458
    %v84 = vsel %vm83, %v82, %v79
    %85 = vrot.lane.b32.xlu0 %v84, 32
    %v86 = vpop.permute.xlu0 %85
    %vm87 = vcmask 392448
    %88 = vst.msk [vmem:[#allocation0] sm:$0x3] %vm87, %v86
    %s89 = scalar_lea.vmem [#allocation0], 6
    %90 = vst.msk [vmem:[%s89] sm:$0xc] %vm87, %v86
    %s91 = scalar_lea.vmem %s0, 1
    %s92 = smov 3
    %v93 = vld [vmem:[%s91] ss:$16 sm:%s92]
    %s94 = scalar_lea.vmem %s0, 4294967273
    %s95 = smov 12
    %v96 = vld [vmem:[%s94] ss:$16 sm:%s95]
    %vm97 = vcmask 1043458
    %v98 = vsel %vm97, %v96, %v93
    %99 = vrot.lane.b32.xlu0 %v98, 16
    %v100 = vpop.permute.xlu0 %99
    %vm101 = vcmask 261248
    %102 = vst.msk [vmem:[#allocation0] sm:$0x3] %vm101, %v100
    %s103 = scalar_lea.vmem [#allocation0], 6
    %104 = vst.msk [vmem:[%s103] sm:$0xc] %vm101, %v100
    %s106 = sshll.u32 1, 2
    %s107 = ssub.s32 %s106, 1
    %v109 = vld [vmem:[#allocation0] sm:%s107]
    %s110 = sshll.u32 1, 2
    %s111 = ssub.s32 %s110, 1
    %112 = vst [vmem:[%s1] sm:%s111] %v109
    %s113 = scalar_lea.vmem [#allocation0], 8
    %v114 = vld [vmem:[%s113] sm:%s107]
    %s115 = sshll.u32 1, 2
    %s116 = ssub.s32 %s115, 1
    %s117 = scalar_lea.vmem %s1, 2
    %118 = vst [vmem:[%s117] sm:%s116] %v114

// kernel: resnet_forward.2
$region0: #{resnet_forward.2}
  #allocation0 [shape = 'u32[]', space=smem, size = 0x4, offset = 0x4, fixed_abs, tag = 'smem constant byte address 0x4 - core index']
  #allocation1 [shape = 'u32[144,128]{1,0:T(1,128)}', space=vmem, size = 0x12000, scoped, tag = 'internal scratch']
  %s0 = inlined_call_operand.vmem [shape: f32[32,64], index: 0, kind: input, shape index: {}]
  %s1 = inlined_call_operand.vmem [shape: f32[64,256], index: 1, kind: input, shape index: {}]
  %s2 = inlined_call_operand.vmem [shape: f32[1,256], index: 2, kind: input, shape index: {}]
  %s3 = inlined_call_operand.vmem [shape: f32[3,256,256], index: 3, kind: input, shape index: {}]
  %s4 = inlined_call_operand.vmem [shape: f32[3,1,256], index: 4, kind: input, shape index: {}]
  %s5 = inlined_call_operand.vmem [shape: f32[3,256,256], index: 5, kind: input, shape index: {}]
  %s6 = inlined_call_operand.vmem [shape: f32[3,1,256], index: 6, kind: input, shape index: {}]
  %s7 = inlined_call_operand.vmem [shape: bf16[32,256], index: 7, kind: output, shape index: {0}]
  %s8 = inlined_call_operand.vmem [shape: f32[2,1,16], index: 8, kind: output, shape index: {1}]
  %s9 = inlined_call_operand.vmem [shape: f32[2,1,16], index: 9, kind: output, shape index: {2}]
  %10 = xla_tuple %s7, %s8, %s9
  %s11 = sld [smem:[#allocation0]]
  $region85: #{resnet_forward.2} parent=0
    _
  %s13 = ssub.s32 1, %s11
  %s14 = scalar_select 0, %s13, %s11
  loop: start=0, step=1, limit=6
  $region2: #{resnet_forward.2} parent=0 // loop_pre_header
    _
  $region3: #{resnet_forward.2} parent=0 // loop_header
    %s16 = sphi 0, %s20
    %p17 = scmp.ge.s32.totalorder %s16, 6
    %s23 = sphi 0, %s35
    %s24 = sphi 0, %s31
    %s25 = sphi 0, %s23
    %s26 = sphi 0, %s24
    %s27 = sphi 0, %s25
    %s28 = sphi 0, %s26
    %s42 = sphi 0, %s44
    %s45 = sphi 0, %s42
    %s46 = sphi 0, %s45
    %s62 = sphi 0, %s46
    %s66 = sphi 0, %s66
    %s68 = sphi 0, %s66
    %s69 = sphi 0, %s68
    %s83 = sphi 0, %s69
    %s87 = sphi 0, %s87
    %s89 = sphi 0, %s87
    %s90 = sphi 0, %s89
    %s104 = sphi 0, %s90
    %s108 = sphi 0, %s108
    %s110 = sphi 0, %s108
    %s111 = sphi 0, %s110
    %s125 = sphi 0, %s111
    %s129 = sphi 0, %s129
    %s131 = sphi 0, %s129
    %s132 = sphi 0, %s131
    %s146 = sphi 0, %s132
    %s150 = sphi 0, %s150
    %s152 = sphi 0, %s150
    %s153 = sphi 0, %s152
    %s167 = sphi 0, %s153
    %s171 = sphi 0, %s171
    %s173 = sphi 0, %s171
    %s174 = sphi 0, %s173
    %s188 = sphi 0, %s174
    %s198 = sphi 0, %s200
    %s201 = sphi 0, %s198
    %s202 = sphi 0, %s201
    %s218 = sphi 0, %s202
    %s224 = sphi 0, %s226
    %s227 = sphi 0, %s224
    %s228 = sphi 0, %s227
    %s244 = sphi 0, %s228
    %s250 = sphi 0, %s252
    %s253 = sphi 0, %s250
    %s254 = sphi 0, %s253
    %s270 = sphi 0, %s254
  $region4: #{resnet_forward.2} parent=0 // loop_header_branch
    %19 = sbr.rel (%p17) target = $region8
  $region5: #{resnet_forward.2} parent=0 // loop_body
    %s21 = ssub.s32 %s16, 1
    %s22 = ssub.s32 %s16, 2
    %s29 = sadd.s32 1, %s24
    %p30 = scmp.ge.s32.totalorder %s29, 2
    %s31 = scalar_select %p30, 0, %s29
    %s32 = sadd.s32 1, %s23
    %s33 = scalar_select %p30, %s32, %s23
    %p34 = scmp.ge.s32.totalorder %s33, 2
    %s35 = scalar_select %p34, 0, %s33
    %s36 = smul.u32 %s23, 2
    %s37 = sadd.s32 %s36, %s24
    %s38 = smul.u32 %s35, 2
    %s39 = sadd.s32 %s38, %s31
    %s40 = ssub.s32 %s37, %s39
    %p41 = scmp.eq.s32.totalorder %s40, 0
    %s43 = sadd.s32 %s42, 1
    %s44 = scalar_select %p41, %s42, %s43
    %p47 = pneg %p41
    %p48 = scmp.eq.s32.totalorder %s16, 3
    %p49 = por %p47, %p48
    %p50 = scmp.ne.s32.totalorder %s42, %s45
    %p51 = scmp.eq.s32.totalorder %s16, 0
    %p52 = por %p50, %p51
    %p53 = scmp.ne.s32.totalorder %s42, %s45
    %p54 = scmp.eq.s32.totalorder %s21, 3
    %p55 = por %p53, %p54
    %p56 = scmp.ne.s32.totalorder %s45, %s46
    %p57 = scmp.eq.s32.totalorder %s21, 0
    %p58 = por %p56, %p57
    %p59 = scmp.ne.s32.totalorder %s45, %s46
    %p60 = scmp.eq.s32.totalorder %s22, 3
    %p61 = por %p59, %p60
    %p63 = scmp.ne.s32.totalorder %s46, %s62
    %p64 = scmp.eq.s32.totalorder %s22, 0
    %p65 = por %p63, %p64
    %s67 = sadd.s32 %s66, 1
    %p70 = scmp.eq.s32.totalorder %s16, 3
    %p71 = scmp.ne.s32.totalorder %s66, %s68
    %p72 = scmp.eq.s32.totalorder %s16, 0
    %p73 = por %p71, %p72
    %p74 = scmp.ne.s32.totalorder %s66, %s68
    %p75 = scmp.eq.s32.totalorder %s21, 3
    %p76 = por %p74, %p75
    %p77 = scmp.ne.s32.totalorder %s68, %s69
    %p78 = scmp.eq.s32.totalorder %s21, 0
    %p79 = por %p77, %p78
    %p80 = scmp.ne.s32.totalorder %s68, %s69
    %p81 = scmp.eq.s32.totalorder %s22, 3
    %p82 = por %p80, %p81
    %p84 = scmp.ne.s32.totalorder %s69, %s83
    %p85 = scmp.eq.s32.totalorder %s22, 0
    %p86 = por %p84, %p85
    %s88 = sadd.s32 %s87, 1
    %p91 = scmp.eq.s32.totalorder %s16, 3
    %p92 = scmp.ne.s32.totalorder %s87, %s89
    %p93 = scmp.eq.s32.totalorder %s16, 0
    %p94 = por %p92, %p93
    %p95 = scmp.ne.s32.totalorder %s87, %s89
    %p96 = scmp.eq.s32.totalorder %s21, 3
    %p97 = por %p95, %p96
    %p98 = scmp.ne.s32.totalorder %s89, %s90
    %p99 = scmp.eq.s32.totalorder %s21, 0
    %p100 = por %p98, %p99
    %p101 = scmp.ne.s32.totalorder %s89, %s90
    %p102 = scmp.eq.s32.totalorder %s22, 3
    %p103 = por %p101, %p102
    %p105 = scmp.ne.s32.totalorder %s90, %s104
    %p106 = scmp.eq.s32.totalorder %s22, 0
    %p107 = por %p105, %p106
    %s109 = sadd.s32 %s108, 1
    %p112 = scmp.eq.s32.totalorder %s16, 3
    %p113 = scmp.ne.s32.totalorder %s108, %s110
    %p114 = scmp.eq.s32.totalorder %s16, 0
    %p115 = por %p113, %p114
    %p116 = scmp.ne.s32.totalorder %s108, %s110
    %p117 = scmp.eq.s32.totalorder %s21, 3
    %p118 = por %p116, %p117
    %p119 = scmp.ne.s32.totalorder %s110, %s111
    %p120 = scmp.eq.s32.totalorder %s21, 0
    %p121 = por %p119, %p120
    %p122 = scmp.ne.s32.totalorder %s110, %s111
    %p123 = scmp.eq.s32.totalorder %s22, 3
    %p124 = por %p122, %p123
    %p126 = scmp.ne.s32.totalorder %s111, %s125
    %p127 = scmp.eq.s32.totalorder %s22, 0
    %p128 = por %p126, %p127
    %s130 = sadd.s32 %s129, 1
    %p133 = scmp.eq.s32.totalorder %s16, 3
    %p134 = scmp.ne.s32.totalorder %s129, %s131
    %p135 = scmp.eq.s32.totalorder %s16, 0
    %p136 = por %p134, %p135
    %p137 = scmp.ne.s32.totalorder %s129, %s131
    %p138 = scmp.eq.s32.totalorder %s21, 3
    %p139 = por %p137, %p138
    %p140 = scmp.ne.s32.totalorder %s131, %s132
    %p141 = scmp.eq.s32.totalorder %s21, 0
    %p142 = por %p140, %p141
    %p143 = scmp.ne.s32.totalorder %s131, %s132
    %p144 = scmp.eq.s32.totalorder %s22, 3
    %p145 = por %p143, %p144
    %p147 = scmp.ne.s32.totalorder %s132, %s146
    %p148 = scmp.eq.s32.totalorder %s22, 0
    %p149 = por %p147, %p148
    %s151 = sadd.s32 %s150, 1
    %p154 = scmp.eq.s32.totalorder %s16, 3
    %p155 = scmp.ne.s32.totalorder %s150, %s152
    %p156 = scmp.eq.s32.totalorder %s16, 0
    %p157 = por %p155, %p156
    %p158 = scmp.ne.s32.totalorder %s150, %s152
    %p159 = scmp.eq.s32.totalorder %s21, 3
    %p160 = por %p158, %p159
    %p161 = scmp.ne.s32.totalorder %s152, %s153
    %p162 = scmp.eq.s32.totalorder %s21, 0
    %p163 = por %p161, %p162
    %p164 = scmp.ne.s32.totalorder %s152, %s153
    %p165 = scmp.eq.s32.totalorder %s22, 3
    %p166 = por %p164, %p165
    %p168 = scmp.ne.s32.totalorder %s153, %s167
    %p169 = scmp.eq.s32.totalorder %s22, 0
    %p170 = por %p168, %p169
    %s172 = sadd.s32 %s171, 1
    %p175 = scmp.eq.s32.totalorder %s16, 3
    %p176 = scmp.ne.s32.totalorder %s171, %s173
    %p177 = scmp.eq.s32.totalorder %s16, 0
    %p178 = por %p176, %p177
    %p179 = scmp.ne.s32.totalorder %s171, %s173
    %p180 = scmp.eq.s32.totalorder %s21, 3
    %p181 = por %p179, %p180
    %p182 = scmp.ne.s32.totalorder %s173, %s174
    %p183 = scmp.eq.s32.totalorder %s21, 0
    %p184 = por %p182, %p183
    %p185 = scmp.ne.s32.totalorder %s173, %s174
    %p186 = scmp.eq.s32.totalorder %s22, 3
    %p187 = por %p185, %p186
    %p189 = scmp.ne.s32.totalorder %s174, %s188
    %p190 = scmp.eq.s32.totalorder %s22, 0
    %p191 = por %p189, %p190
    %s192 = smul.u32 %s23, 2
    %s193 = sadd.s32 %s192, %s24
    %s194 = smul.u32 %s35, 2
    %s195 = sadd.s32 %s194, %s31
    %s196 = ssub.s32 %s193, %s195
    %p197 = scmp.eq.s32.totalorder %s196, 0
    %s199 = sadd.s32 %s198, 1
    %s200 = scalar_select %p197, %s198, %s199
    %p203 = pneg %p197
    %p204 = scmp.eq.s32.totalorder %s16, 3
    %p205 = por %p203, %p204
    %p206 = scmp.ne.s32.totalorder %s198, %s201
    %p207 = scmp.eq.s32.totalorder %s16, 0
    %p208 = por %p206, %p207
    %p209 = scmp.ne.s32.totalorder %s198, %s201
    %p210 = scmp.eq.s32.totalorder %s21, 3
    %p211 = por %p209, %p210
    %p212 = scmp.ne.s32.totalorder %s201, %s202
    %p213 = scmp.eq.s32.totalorder %s21, 0
    %p214 = por %p212, %p213
    %p215 = scmp.ne.s32.totalorder %s201, %s202
    %p216 = scmp.eq.s32.totalorder %s22, 3
    %p217 = por %p215, %p216
    %p219 = scmp.ne.s32.totalorder %s202, %s218
    %p220 = scmp.eq.s32.totalorder %s22, 0
    %p221 = por %p219, %p220
    %s222 = ssub.s32 %s23, %s35
    %p223 = scmp.eq.s32.totalorder %s222, 0
    %s225 = sadd.s32 %s224, 1
    %s226 = scalar_select %p223, %s224, %s225
    %p229 = pneg %p223
    %p230 = scmp.eq.s32.totalorder %s16, 3
    %p231 = por %p229, %p230
    %p232 = scmp.ne.s32.totalorder %s224, %s227
    %p233 = scmp.eq.s32.totalorder %s16, 0
    %p234 = por %p232, %p233
    %p235 = scmp.ne.s32.totalorder %s224, %s227
    %p236 = scmp.eq.s32.totalorder %s21, 3
    %p237 = por %p235, %p236
    %p238 = scmp.ne.s32.totalorder %s227, %s228
    %p239 = scmp.eq.s32.totalorder %s21, 0
    %p240 = por %p238, %p239
    %p241 = scmp.ne.s32.totalorder %s227, %s228
    %p242 = scmp.eq.s32.totalorder %s22, 3
    %p243 = por %p241, %p242
    %p245 = scmp.ne.s32.totalorder %s228, %s244
    %p246 = scmp.eq.s32.totalorder %s22, 0
    %p247 = por %p245, %p246
    %s248 = ssub.s32 %s23, %s35
    %p249 = scmp.eq.s32.totalorder %s248, 0
    %s251 = sadd.s32 %s250, 1
    %s252 = scalar_select %p249, %s250, %s251
    %p255 = pneg %p249
    %p256 = scmp.eq.s32.totalorder %s16, 3
    %p257 = por %p255, %p256
    %p258 = scmp.ne.s32.totalorder %s250, %s253
    %p259 = scmp.eq.s32.totalorder %s16, 0
    %p260 = por %p258, %p259
    %p261 = scmp.ne.s32.totalorder %s250, %s253
    %p262 = scmp.eq.s32.totalorder %s21, 3
    %p263 = por %p261, %p262
    %p264 = scmp.ne.s32.totalorder %s253, %s254
    %p265 = scmp.eq.s32.totalorder %s21, 0
    %p266 = por %p264, %p265
    %p267 = scmp.ne.s32.totalorder %s253, %s254
    %p268 = scmp.eq.s32.totalorder %s22, 3
    %p269 = por %p267, %p268
    %p271 = scmp.ne.s32.totalorder %s254, %s270
    %p272 = scmp.eq.s32.totalorder %s22, 0
    %p273 = por %p271, %p272
    %p274 = scmp.le.s32.totalorder 1, %s16
    %p275 = scmp.lt.s32.totalorder %s16, 5
    %p276 = pnand %p274, %p275
    %p277 = pneg %p276
    // Predicated region
    $region9: #{resnet_forward.2} parent=5 // pred_check
      _
    $region10: #{resnet_forward.2} parent=5 // pred_check_branch
      %279 = sbr.rel (%p276) target = $region12
    $region11: #{resnet_forward.2} parent=5 // pred_region
      %s280 = ssub.s32 %s16, 1
      // Predicated region
      $region13: #{resnet_forward.2} parent=11 // pred_check
        %p281 = pneg %p79
      $region14: #{resnet_forward.2} parent=11 // pred_check_branch
        %283 = sbr.rel (%p281) target = $region16
      $region15: #{resnet_forward.2} parent=11 // pred_region
        _
      $region16: #{resnet_forward.2} parent=11 // pred_fallthru
        _
      // Predicated region
      $region17: #{resnet_forward.2} parent=11 // pred_check
        %p284 = pneg %p100
      $region18: #{resnet_forward.2} parent=11 // pred_check_branch
        %286 = sbr.rel (%p284) target = $region20
      $region19: #{resnet_forward.2} parent=11 // pred_region
        _
      $region20: #{resnet_forward.2} parent=11 // pred_fallthru
        _
      // Predicated region
      $region21: #{resnet_forward.2} parent=11 // pred_check
        %p287 = pneg %p121
      $region22: #{resnet_forward.2} parent=11 // pred_check_branch
        %289 = sbr.rel (%p287) target = $region24
      $region23: #{resnet_forward.2} parent=11 // pred_region
        _
      $region24: #{resnet_forward.2} parent=11 // pred_fallthru
        _
      // Predicated region
      $region25: #{resnet_forward.2} parent=11 // pred_check
        %p290 = pneg %p142
      $region26: #{resnet_forward.2} parent=11 // pred_check_branch
        %292 = sbr.rel (%p290) target = $region28
      $region27: #{resnet_forward.2} parent=11 // pred_region
        _
      $region28: #{resnet_forward.2} parent=11 // pred_fallthru
        _
      // Predicated region
      $region29: #{resnet_forward.2} parent=11 // pred_check
        %p293 = pneg %p163
      $region30: #{resnet_forward.2} parent=11 // pred_check_branch
        %295 = sbr.rel (%p293) target = $region32
      $region31: #{resnet_forward.2} parent=11 // pred_region
        _
      $region32: #{resnet_forward.2} parent=11 // pred_fallthru
        _
      // Predicated region
      $region33: #{resnet_forward.2} parent=11 // pred_check
        %p296 = pneg %p184
      $region34: #{resnet_forward.2} parent=11 // pred_check_branch
        %298 = sbr.rel (%p296) target = $region36
      $region35: #{resnet_forward.2} parent=11 // pred_region
        _
      $region36: #{resnet_forward.2} parent=11 // pred_fallthru
        _
    $region12: #{resnet_forward.2} parent=5 // pred_fallthru
      _
    %p299 = scmp.lt.s32.totalorder %s16, 4
    // Predicated region
    $region37: #{resnet_forward.2} parent=5 // pred_check
      %p300 = pneg %p299
    $region38: #{resnet_forward.2} parent=5 // pred_check_branch
      %302 = sbr.rel (%p300) target = $region40
    $region39: #{resnet_forward.2} parent=5 // pred_region
      // Predicated region
      $region41: #{resnet_forward.2} parent=39 // pred_check
        %p303 = pneg %p52
      $region42: #{resnet_forward.2} parent=39 // pred_check_branch
        %305 = sbr.rel (%p303) target = $region44
      $region43: #{resnet_forward.2} parent=39 // pred_region
        %s306 = smul.u32 %s23, 2
        %s307 = sadd.s32 %s306, %s24
        %p308 = scmp.lt.s32.totalorder %s307, 3
        %s309 = scalar_select %p308, %s307, 3
        %s310 = smul.addr %s309, 8
        %s311 = scalar_lea.vmem %s0, %s310
        %s312 = smul.u32 %s23, 2
        %s313 = sadd.s32 %s312, %s24
      $region44: #{resnet_forward.2} parent=39 // pred_fallthru
        _
    $region40: #{resnet_forward.2} parent=5 // pred_fallthru
      _
    %p314 = scmp.le.s32.totalorder 1, %s16
    %p315 = scmp.lt.s32.totalorder %s16, 5
    %p316 = pnand %p314, %p315
    %p317 = pneg %p316
    // Predicated region
    $region45: #{resnet_forward.2} parent=5 // pred_check
      _
    $region46: #{resnet_forward.2} parent=5 // pred_check_branch
      %319 = sbr.rel (%p316) target = $region48
    $region47: #{resnet_forward.2} parent=5 // pred_region
      %s320 = ssub.s32 %s16, 1
      %s321 = smul.u32 %s25, 2
      %s322 = sadd.s32 %s321, %s26
      %p323 = scmp.lt.s32.totalorder %s322, 3
      %s324 = scalar_select %p323, %s322, 3
      %s325 = smul.addr %s324, 8
      %s326 = scalar_lea.vmem %s0, %s325
      %p327 = pneg %p58
      %p328 = pneg %p55
      %p329 = pneg %p79
      %p330 = pneg %p76
      %p331 = pneg %p100
      %p332 = pneg %p97
      %p333 = pneg %p121
      %p334 = pneg %p118
      %p335 = pneg %p142
      %p336 = pneg %p139
      %p337 = pneg %p163
      %p338 = pneg %p160
      %p339 = pneg %p184
      %p340 = pneg %p181
      %p341 = pneg %p214
      %p342 = pneg %p211
      %s343 = smul.u32 %s25, 2
      %s344 = sadd.s32 %s343, %s26
      %p345 = scmp.lt.s32.totalorder %s344, 3
      %s346 = scalar_select %p345, %s344, 3
      %s347 = smul.addr %s346, 2
      %s348 = smul.addr %s347, 4
      %s349 = scalar_lea.vmem %s7, %s348
      %p350 = pneg %p240
      %p351 = pneg %p237
      %p352 = scmp.lt.s32.totalorder %s25, 1
      %s353 = scalar_select %p352, %s25, 1
      %s354 = scalar_lea.vmem %s8, %s353
      %p355 = pneg %p266
      %p356 = pneg %p263
      %p357 = scmp.lt.s32.totalorder %s25, 1
      %s358 = scalar_select %p357, %s25, 1
      %s359 = scalar_lea.vmem %s9, %s358
      %s360 = smul.u32 %s25, 2
      %s361 = sadd.s32 %s360, %s26
      %p362 = scmp.lt.s32.totalorder %s361, 3
      %s363 = scalar_select %p362, %s361, 3
      %s364 = smul.addr %s363, 8
      %s365 = scalar_lea.vmem %s0, %s364
      %s366 = smul.u32 %s25, 2
      %s367 = sadd.s32 %s366, %s26
      %s368 = smul.u32 %s25, 2
      %s369 = sadd.s32 %s368, %s26
      %p370 = scmp.lt.s32.totalorder %s369, 3
      %s371 = scalar_select %p370, %s369, 3
      %s372 = smul.addr %s371, 2
      %s373 = smul.addr %s372, 4
      %s374 = scalar_lea.vmem %s7, %s373
      %s375 = smul.u32 %s25, 2
      %s376 = sadd.s32 %s375, %s26
      %p377 = scmp.lt.s32.totalorder %s25, 1
      %s378 = scalar_select %p377, %s25, 1
      %s379 = scalar_lea.vmem %s8, %s378
      %p380 = scmp.lt.s32.totalorder %s25, 1
      %s381 = scalar_select %p380, %s25, 1
      %s382 = scalar_lea.vmem %s9, %s381
      %v383 = vld [vmem:[%s365] sm:$0xff]
      %v384 = vld [vmem:[%s1] sm:$0xff]
      %v385 = vld [vmem:[%s1 + $0x8] sm:$0xff]
      %v386 = vld [vmem:[%s1 + $0x10] sm:$0xff]
      %v387 = vld [vmem:[%s1 + $0x18] sm:$0xff]
      %v388 = vld [vmem:[%s1 + $0x20] sm:$0xff]
      %v389 = vld [vmem:[%s1 + $0x28] sm:$0xff]
      %v390 = vld [vmem:[%s1 + $0x30] sm:$0xff]
      %v391 = vld [vmem:[%s1 + $0x38] sm:$0xff]
      %v392 = vld [vmem:[%s1 + $0x40] sm:$0xff]
      %v393 = vld [vmem:[%s1 + $0x48] sm:$0xff]
      %v394 = vld [vmem:[%s1 + $0x50] sm:$0xff]
      %v395 = vld [vmem:[%s1 + $0x58] sm:$0xff]
      %v396 = vld [vmem:[%s1 + $0x60] sm:$0xff]
      %v397 = vld [vmem:[%s1 + $0x68] sm:$0xff]
      %v398 = vld [vmem:[%s1 + $0x70] sm:$0xff]
      %v399 = vld [vmem:[%s1 + $0x78] sm:$0xff]
      %v400 = vld [vmem:[%s2] sm:$0x3]
      %v402 = vlaneseq
      %v403 = vshrl.u32 %v402, 7
      %v404 = vsub.s32 0, %v403
      %v405 = vrot.slane %v400, %v404
      %v406 = vlaneseq
      %v407 = vshrl.u32 %v406, 7
      %v408 = vsub.s32 1, %v407
      %v409 = vrot.slane %v400, %v408
      %vm412 = vcmask 523264
      %v414 = vsel %vm412, %v383, 0
      %416 = vmatprep.subr.mxu0 0.0
      %417 = vmatpush1.msra.mxu0 0.0
      %418 = vmatprep.subr.mxu0 0.0
      %419 = vmatpush1.msra.mxu0 0.0
      %420 = vmatprep.subr.mxu0 0.0
      %421 = vmatpush1.msra.mxu0 0.0
      %422 = vmatprep.subr.mxu0 0.0
      %423 = vmatpush1.msra.mxu0 0.0
      %424 = vmatprep.subr.mxu0 0.0
      %425 = vmatpush1.msra.mxu0 0.0
      %426 = vmatprep.subr.mxu0 0.0
      %427 = vmatpush1.msra.mxu0 0.0
      %428 = vmatprep.subr.mxu0 0.0
      %429 = vmatpush1.msra.mxu0 0.0
      %430 = vmatprep.subr.mxu0 0.0
      %431 = vmatpush1.msra.mxu0 0.0
      %432 = vmatprep.subr.mxu0 %v399
      %433 = vmatpush1.msra.mxu0 %v398
      %434 = vmatprep.subr.mxu0 %v397
      %435 = vmatpush1.msra.mxu0 %v396
      %436 = vmatprep.subr.mxu0 %v395
      %437 = vmatpush1.msra.mxu0 %v394
      %438 = vmatprep.subr.mxu0 %v393
      %439 = vmatpush1.msra.mxu0 %v392
      %440 = vmatprep.subr.mxu0 %v391
      %441 = vmatpush1.msra.mxu0 %v390
      %442 = vmatprep.subr.mxu0 %v389
      %443 = vmatpush1.msra.mxu0 %v388
      %444 = vmatprep.subr.mxu0 %v387
      %445 = vmatpush1.msra.mxu0 %v386
      %446 = vmatprep.subr.mxu0 %v385
      %447 = vmatpush1.msra.mxu0 %v384
      %448 = vmatprep.subr.mxu0 0.0
      %449 = vmatpush2.msra.mxu0 0.0
      %450 = vmatprep.subr.mxu0 0.0
      %451 = vmatpush2.msra.mxu0 0.0
      %452 = vmatprep.subr.mxu0 0.0
      %453 = vmatpush2.msra.mxu0 0.0
      %454 = vmatprep.subr.mxu0 0.0
      %455 = vmatpush2.msra.mxu0 0.0
      %456 = vmatprep.subr.mxu0 0.0
      %457 = vmatpush2.msra.mxu0 0.0
      %458 = vmatprep.subr.mxu0 0.0
      %459 = vmatpush2.msra.mxu0 0.0
      %460 = vmatprep.subr.mxu0 0.0
      %461 = vmatpush2.msra.mxu0 0.0
      %462 = vmatprep.subr.mxu0 0.0
      %463 = vmatpush2.msra.mxu0 0.0
      %464 = vmatprep.subr.mxu0 0.0
      %465 = vmatpush2.msra.mxu0 0.0
      %466 = vmatprep.subr.mxu0 0.0
      %467 = vmatpush2.msra.mxu0 0.0
      %468 = vmatprep.subr.mxu0 0.0
      %469 = vmatpush2.msra.mxu0 0.0
      %470 = vmatprep.subr.mxu0 0.0
      %471 = vmatpush2.msra.mxu0 0.0
      %472 = vmatprep.subr.mxu0 0.0
      %473 = vmatpush2.msra.mxu0 0.0
      %474 = vmatprep.subr.mxu0 0.0
      %475 = vmatpush2.msra.mxu0 0.0
      %476 = vmatprep.subr.mxu0 0.0
      %477 = vmatpush2.msra.mxu0 0.0
      %478 = vmatprep.subr.mxu0 0.0
      %479 = vmatpush2.msra.mxu0 0.0
      %480 = vmatprep.mubr.f32.mxu0 0.0
      %481 = vmatmul.mubr.f32.gmra.mxu0 %v414
      %v482 = vpop.f32.mrf.mxu0
      %v483 = vadd.f32 %v405, %v482
      %v484 = vpop.f32.mrf.mxu0
      %v485 = vadd.f32 %v409, %v484
      %486 = vdwg.mxu0
      %v487 = vld [vmem:[%s3] sm:$0xff]
      %v488 = vld [vmem:[%s3 + $0x8] sm:$0xff]
      %v489 = vld [vmem:[%s3 + $0x10] sm:$0xff]
      %v490 = vld [vmem:[%s3 + $0x18] sm:$0xff]
      %v491 = vld [vmem:[%s3 + $0x20] sm:$0xff]
      %v492 = vld [vmem:[%s3 + $0x28] sm:$0xff]
      %v493 = vld [vmem:[%s3 + $0x30] sm:$0xff]
      %v494 = vld [vmem:[%s3 + $0x38] sm:$0xff]
      %v495 = vld [vmem:[%s3 + $0x40] sm:$0xff]
      %v496 = vld [vmem:[%s3 + $0x48] sm:$0xff]
      %v497 = vld [vmem:[%s3 + $0x50] sm:$0xff]
      %v498 = vld [vmem:[%s3 + $0x58] sm:$0xff]
      %v499 = vld [vmem:[%s3 + $0x60] sm:$0xff]
      %v500 = vld [vmem:[%s3 + $0x68] sm:$0xff]
      %v501 = vld [vmem:[%s3 + $0x70] sm:$0xff]
      %v502 = vld [vmem:[%s3 + $0x78] sm:$0xff]
      %v503 = vld [vmem:[%s3 + $0x80] sm:$0xff]
      %v504 = vld [vmem:[%s3 + $0x88] sm:$0xff]
      %v505 = vld [vmem:[%s3 + $0x90] sm:$0xff]
      %v506 = vld [vmem:[%s3 + $0x98] sm:$0xff]
      %v507 = vld [vmem:[%s3 + $0xa0] sm:$0xff]
      %v508 = vld [vmem:[%s3 + $0xa8] sm:$0xff]
      %v509 = vld [vmem:[%s3 + $0xb0] sm:$0xff]
      %v510 = vld [vmem:[%s3 + $0xb8] sm:$0xff]
      %v511 = vld [vmem:[%s3 + $0xc0] sm:$0xff]
      %v512 = vld [vmem:[%s3 + $0xc8] sm:$0xff]
      %v513 = vld [vmem:[%s3 + $0xd0] sm:$0xff]
      %v514 = vld [vmem:[%s3 + $0xd8] sm:$0xff]
      %v515 = vld [vmem:[%s3 + $0xe0] sm:$0xff]
      %v516 = vld [vmem:[%s3 + $0xe8] sm:$0xff]
      %v517 = vld [vmem:[%s3 + $0xf0] sm:$0xff]
      %v518 = vld [vmem:[%s3 + $0xf8] sm:$0xff]
      %v519 = vld [vmem:[%s3 + $0x100] sm:$0xff]
      %v520 = vld [vmem:[%s3 + $0x108] sm:$0xff]
      %v521 = vld [vmem:[%s3 + $0x110] sm:$0xff]
      %v522 = vld [vmem:[%s3 + $0x118] sm:$0xff]
      %v523 = vld [vmem:[%s3 + $0x120] sm:$0xff]
      %v524 = vld [vmem:[%s3 + $0x128] sm:$0xff]
      %v525 = vld [vmem:[%s3 + $0x130] sm:$0xff]
      %v526 = vld [vmem:[%s3 + $0x138] sm:$0xff]
      %v527 = vld [vmem:[%s3 + $0x140] sm:$0xff]
      %v528 = vld [vmem:[%s3 + $0x148] sm:$0xff]
      %v529 = vld [vmem:[%s3 + $0x150] sm:$0xff]
      %v530 = vld [vmem:[%s3 + $0x158] sm:$0xff]
      %v531 = vld [vmem:[%s3 + $0x160] sm:$0xff]
      %v532 = vld [vmem:[%s3 + $0x168] sm:$0xff]
      %v533 = vld [vmem:[%s3 + $0x170] sm:$0xff]
      %v534 = vld [vmem:[%s3 + $0x178] sm:$0xff]
      %v535 = vld [vmem:[%s3 + $0x180] sm:$0xff]
      %v536 = vld [vmem:[%s3 + $0x188] sm:$0xff]
      %v537 = vld [vmem:[%s3 + $0x190] sm:$0xff]
      %v538 = vld [vmem:[%s3 + $0x198] sm:$0xff]
      %v539 = vld [vmem:[%s3 + $0x1a0] sm:$0xff]
      %v540 = vld [vmem:[%s3 + $0x1a8] sm:$0xff]
      %v541 = vld [vmem:[%s3 + $0x1b0] sm:$0xff]
      %v542 = vld [vmem:[%s3 + $0x1b8] sm:$0xff]
      %v543 = vld [vmem:[%s3 + $0x1c0] sm:$0xff]
      %v544 = vld [vmem:[%s3 + $0x1c8] sm:$0xff]
      %v545 = vld [vmem:[%s3 + $0x1d0] sm:$0xff]
      %v546 = vld [vmem:[%s3 + $0x1d8] sm:$0xff]
      %v547 = vld [vmem:[%s3 + $0x1e0] sm:$0xff]
      %v548 = vld [vmem:[%s3 + $0x1e8] sm:$0xff]
      %v549 = vld [vmem:[%s3 + $0x1f0] sm:$0xff]
      %v550 = vld [vmem:[%s3 + $0x1f8] sm:$0xff]
      %v551 = vld [vmem:[%s4] sm:$0x3]
      %v553 = vlaneseq
      %v554 = vshrl.u32 %v553, 7
      %v555 = vsub.s32 0, %v554
      %v556 = vrot.slane %v551, %v555
      %v557 = vlaneseq
      %v558 = vshrl.u32 %v557, 7
      %v559 = vsub.s32 1, %v558
      %v560 = vrot.slane %v551, %v559
      %563 = vmatprep.subr.mxu0 %v518
      %564 = vmatpush1.msra.mxu0 %v517
      %565 = vmatprep.subr.mxu0 %v516
      %566 = vmatpush1.msra.mxu0 %v515
      %567 = vmatprep.subr.mxu0 %v514
      %568 = vmatpush1.msra.mxu0 %v513
      %569 = vmatprep.subr.mxu0 %v512
      %570 = vmatpush1.msra.mxu0 %v511
      %571 = vmatprep.subr.mxu0 %v510
      %572 = vmatpush1.msra.mxu0 %v509
      %573 = vmatprep.subr.mxu0 %v508
      %574 = vmatpush1.msra.mxu0 %v507
      %575 = vmatprep.subr.mxu0 %v506
      %576 = vmatpush1.msra.mxu0 %v505
      %577 = vmatprep.subr.mxu0 %v504
      %578 = vmatpush1.msra.mxu0 %v503
      %579 = vmatprep.subr.mxu0 %v502
      %580 = vmatpush1.msra.mxu0 %v501
      %581 = vmatprep.subr.mxu0 %v500
      %582 = vmatpush1.msra.mxu0 %v499
      %583 = vmatprep.subr.mxu0 %v498
      %584 = vmatpush1.msra.mxu0 %v497
      %585 = vmatprep.subr.mxu0 %v496
      %586 = vmatpush1.msra.mxu0 %v495
      %587 = vmatprep.subr.mxu0 %v494
      %588 = vmatpush1.msra.mxu0 %v493
      %589 = vmatprep.subr.mxu0 %v492
      %590 = vmatpush1.msra.mxu0 %v491
      %591 = vmatprep.subr.mxu0 %v490
      %592 = vmatpush1.msra.mxu0 %v489
      %593 = vmatprep.subr.mxu0 %v488
      %594 = vmatpush1.msra.mxu0 %v487
      %595 = vmatprep.subr.mxu0 %v550
      %596 = vmatpush2.msra.mxu0 %v549
      %597 = vmatprep.subr.mxu0 %v548
      %598 = vmatpush2.msra.mxu0 %v547
      %599 = vmatprep.subr.mxu0 %v546
      %600 = vmatpush2.msra.mxu0 %v545
      %601 = vmatprep.subr.mxu0 %v544
      %602 = vmatpush2.msra.mxu0 %v543
      %603 = vmatprep.subr.mxu0 %v542
      %604 = vmatpush2.msra.mxu0 %v541
      %605 = vmatprep.subr.mxu0 %v540
      %606 = vmatpush2.msra.mxu0 %v539
      %607 = vmatprep.subr.mxu0 %v538
      %608 = vmatpush2.msra.mxu0 %v537
      %609 = vmatprep.subr.mxu0 %v536
      %610 = vmatpush2.msra.mxu0 %v535
      %611 = vmatprep.subr.mxu0 %v534
      %612 = vmatpush2.msra.mxu0 %v533
      %613 = vmatprep.subr.mxu0 %v532
      %614 = vmatpush2.msra.mxu0 %v531
      %615 = vmatprep.subr.mxu0 %v530
      %616 = vmatpush2.msra.mxu0 %v529
      %617 = vmatprep.subr.mxu0 %v528
      %618 = vmatpush2.msra.mxu0 %v527
      %619 = vmatprep.subr.mxu0 %v526
      %620 = vmatpush2.msra.mxu0 %v525
      %621 = vmatprep.subr.mxu0 %v524
      %622 = vmatpush2.msra.mxu0 %v523
      %623 = vmatprep.subr.mxu0 %v522
      %624 = vmatpush2.msra.mxu0 %v521
      %625 = vmatprep.subr.mxu0 %v520
      %626 = vmatpush2.msra.mxu0 %v519
      %627 = vmatprep.mubr.f32.mxu0 %v485
      %628 = vmatmul.mubr.f32.gmra.mxu0 %v483
      %v629 = vpop.f32.mrf.mxu0
      %v630 = vadd.f32 %v556, %v629
      %v631 = vpop.f32.mrf.mxu0
      %v632 = vadd.f32 %v560, %v631
      %633 = vdwg.mxu0
      %v634 = vmax.f32 %v630, 0.0
      %v635 = vmax.f32 %v632, 0.0
      %v636 = vld [vmem:[%s5] sm:$0xff]
      %v637 = vld [vmem:[%s5 + $0x8] sm:$0xff]
      %v638 = vld [vmem:[%s5 + $0x10] sm:$0xff]
      %v639 = vld [vmem:[%s5 + $0x18] sm:$0xff]
      %v640 = vld [vmem:[%s5 + $0x20] sm:$0xff]
      %v641 = vld [vmem:[%s5 + $0x28] sm:$0xff]
      %v642 = vld [vmem:[%s5 + $0x30] sm:$0xff]
      %v643 = vld [vmem:[%s5 + $0x38] sm:$0xff]
      %v644 = vld [vmem:[%s5 + $0x40] sm:$0xff]
      %v645 = vld [vmem:[%s5 + $0x48] sm:$0xff]
      %v646 = vld [vmem:[%s5 + $0x50] sm:$0xff]
      %v647 = vld [vmem:[%s5 + $0x58] sm:$0xff]
      %v648 = vld [vmem:[%s5 + $0x60] sm:$0xff]
      %v649 = vld [vmem:[%s5 + $0x68] sm:$0xff]
      %v650 = vld [vmem:[%s5 + $0x70] sm:$0xff]
      %v651 = vld [vmem:[%s5 + $0x78] sm:$0xff]
      %v652 = vld [vmem:[%s5 + $0x80] sm:$0xff]
      %v653 = vld [vmem:[%s5 + $0x88] sm:$0xff]
      %v654 = vld [vmem:[%s5 + $0x90] sm:$0xff]
      %v655 = vld [vmem:[%s5 + $0x98] sm:$0xff]
      %v656 = vld [vmem:[%s5 + $0xa0] sm:$0xff]
      %v657 = vld [vmem:[%s5 + $0xa8] sm:$0xff]
      %v658 = vld [vmem:[%s5 + $0xb0] sm:$0xff]
      %v659 = vld [vmem:[%s5 + $0xb8] sm:$0xff]
      %v660 = vld [vmem:[%s5 + $0xc0] sm:$0xff]
      %v661 = vld [vmem:[%s5 + $0xc8] sm:$0xff]
      %v662 = vld [vmem:[%s5 + $0xd0] sm:$0xff]
      %v663 = vld [vmem:[%s5 + $0xd8] sm:$0xff]
      %v664 = vld [vmem:[%s5 + $0xe0] sm:$0xff]
      %v665 = vld [vmem:[%s5 + $0xe8] sm:$0xff]
      %v666 = vld [vmem:[%s5 + $0xf0] sm:$0xff]
      %v667 = vld [vmem:[%s5 + $0xf8] sm:$0xff]
      %v668 = vld [vmem:[%s5 + $0x100] sm:$0xff]
      %v669 = vld [vmem:[%s5 + $0x108] sm:$0xff]
      %v670 = vld [vmem:[%s5 + $0x110] sm:$0xff]
      %v671 = vld [vmem:[%s5 + $0x118] sm:$0xff]
      %v672 = vld [vmem:[%s5 + $0x120] sm:$0xff]
      %v673 = vld [vmem:[%s5 + $0x128] sm:$0xff]
      %v674 = vld [vmem:[%s5 + $0x130] sm:$0xff]
      %v675 = vld [vmem:[%s5 + $0x138] sm:$0xff]
      %v676 = vld [vmem:[%s5 + $0x140] sm:$0xff]
      %v677 = vld [vmem:[%s5 + $0x148] sm:$0xff]
      %v678 = vld [vmem:[%s5 + $0x150] sm:$0xff]
      %v679 = vld [vmem:[%s5 + $0x158] sm:$0xff]
      %v680 = vld [vmem:[%s5 + $0x160] sm:$0xff]
      %v681 = vld [vmem:[%s5 + $0x168] sm:$0xff]
      %v682 = vld [vmem:[%s5 + $0x170] sm:$0xff]
      %v683 = vld [vmem:[%s5 + $0x178] sm:$0xff]
      %v684 = vld [vmem:[%s5 + $0x180] sm:$0xff]
      %v685 = vld [vmem:[%s5 + $0x188] sm:$0xff]
      %v686 = vld [vmem:[%s5 + $0x190] sm:$0xff]
      %v687 = vld [vmem:[%s5 + $0x198] sm:$0xff]
      %v688 = vld [vmem:[%s5 + $0x1a0] sm:$0xff]
      %v689 = vld [vmem:[%s5 + $0x1a8] sm:$0xff]
      %v690 = vld [vmem:[%s5 + $0x1b0] sm:$0xff]
      %v691 = vld [vmem:[%s5 + $0x1b8] sm:$0xff]
      %v692 = vld [vmem:[%s5 + $0x1c0] sm:$0xff]
      %v693 = vld [vmem:[%s5 + $0x1c8] sm:$0xff]
      %v694 = vld [vmem:[%s5 + $0x1d0] sm:$0xff]
      %v695 = vld [vmem:[%s5 + $0x1d8] sm:$0xff]
      %v696 = vld [vmem:[%s5 + $0x1e0] sm:$0xff]
      %v697 = vld [vmem:[%s5 + $0x1e8] sm:$0xff]
      %v698 = vld [vmem:[%s5 + $0x1f0] sm:$0xff]
      %v699 = vld [vmem:[%s5 + $0x1f8] sm:$0xff]
      %700 = vmatprep.subr.mxu0 %v667
      %701 = vmatpush1.msra.mxu0 %v666
      %702 = vmatprep.subr.mxu0 %v665
      %703 = vmatpush1.msra.mxu0 %v664
      %704 = vmatprep.subr.mxu0 %v663
      %705 = vmatpush1.msra.mxu0 %v662
      %706 = vmatprep.subr.mxu0 %v661
      %707 = vmatpush1.msra.mxu0 %v660
      %708 = vmatprep.subr.mxu0 %v659
      %709 = vmatpush1.msra.mxu0 %v658
      %710 = vmatprep.subr.mxu0 %v657
      %711 = vmatpush1.msra.mxu0 %v656
      %712 = vmatprep.subr.mxu0 %v655
      %713 = vmatpush1.msra.mxu0 %v654
      %714 = vmatprep.subr.mxu0 %v653
      %715 = vmatpush1.msra.mxu0 %v652
      %716 = vmatprep.subr.mxu0 %v651
      %717 = vmatpush1.msra.mxu0 %v650
      %718 = vmatprep.subr.mxu0 %v649
      %719 = vmatpush1.msra.mxu0 %v648
      %720 = vmatprep.subr.mxu0 %v647
      %721 = vmatpush1.msra.mxu0 %v646
      %722 = vmatprep.subr.mxu0 %v645
      %723 = vmatpush1.msra.mxu0 %v644
      %724 = vmatprep.subr.mxu0 %v643
      %725 = vmatpush1.msra.mxu0 %v642
      %726 = vmatprep.subr.mxu0 %v641
      %727 = vmatpush1.msra.mxu0 %v640
      %728 = vmatprep.subr.mxu0 %v639
      %729 = vmatpush1.msra.mxu0 %v638
      %730 = vmatprep.subr.mxu0 %v637
      %731 = vmatpush1.msra.mxu0 %v636
      %732 = vmatprep.subr.mxu0 %v699
      %733 = vmatpush2.msra.mxu0 %v698
      %734 = vmatprep.subr.mxu0 %v697
      %735 = vmatpush2.msra.mxu0 %v696
      %736 = vmatprep.subr.mxu0 %v695
      %737 = vmatpush2.msra.mxu0 %v694
      %738 = vmatprep.subr.mxu0 %v693
      %739 = vmatpush2.msra.mxu0 %v692
      %740 = vmatprep.subr.mxu0 %v691
      %741 = vmatpush2.msra.mxu0 %v690
      %742 = vmatprep.subr.mxu0 %v689
      %743 = vmatpush2.msra.mxu0 %v688
      %744 = vmatprep.subr.mxu0 %v687
      %745 = vmatpush2.msra.mxu0 %v686
      %746 = vmatprep.subr.mxu0 %v685
      %747 = vmatpush2.msra.mxu0 %v684
      %748 = vmatprep.subr.mxu0 %v683
      %749 = vmatpush2.msra.mxu0 %v682
      %750 = vmatprep.subr.mxu0 %v681
      %751 = vmatpush2.msra.mxu0 %v680
      %752 = vmatprep.subr.mxu0 %v679
      %753 = vmatpush2.msra.mxu0 %v678
      %754 = vmatprep.subr.mxu0 %v677
      %755 = vmatpush2.msra.mxu0 %v676
      %756 = vmatprep.subr.mxu0 %v675
      %757 = vmatpush2.msra.mxu0 %v674
      %758 = vmatprep.subr.mxu0 %v673
      %759 = vmatpush2.msra.mxu0 %v672
      %760 = vmatprep.subr.mxu0 %v671
      %761 = vmatpush2.msra.mxu0 %v670
      %762 = vmatprep.subr.mxu0 %v669
      %763 = vmatpush2.msra.mxu0 %v668
      %764 = vmatprep.mubr.f32.mxu0 %v635
      %765 = vmatmul.mubr.f32.gmra.mxu0 %v634
      %v766 = vpop.f32.mrf.mxu0
      %v767 = vadd.f32 0.0, %v766
      %v768 = vpop.f32.mrf.mxu0
      %v769 = vadd.f32 0.0, %v768
      %770 = vdwg.mxu0
      %v771 = vadd.f32 %v483, %v767
      %v772 = vadd.f32 %v485, %v769
      %v773 = vld [vmem:[%s6] sm:$0x3]
      %v775 = vlaneseq
      %v776 = vshrl.u32 %v775, 7
      %v777 = vsub.s32 0, %v776
      %v778 = vrot.slane %v773, %v777
      %v779 = vlaneseq
      %v780 = vshrl.u32 %v779, 7
      %v781 = vsub.s32 1, %v780
      %v782 = vrot.slane %v773, %v781
      %v785 = vadd.f32 %v771, %v778
      %v786 = vadd.f32 %v772, %v782
      %s787 = scalar_lea.vmem %s3, 512
      %v788 = vld [vmem:[%s787] sm:$0xff]
      %v789 = vld [vmem:[%s787 + $0x8] sm:$0xff]
      %v790 = vld [vmem:[%s787 + $0x10] sm:$0xff]
      %v791 = vld [vmem:[%s787 + $0x18] sm:$0xff]
      %v792 = vld [vmem:[%s787 + $0x20] sm:$0xff]
      %v793 = vld [vmem:[%s787 + $0x28] sm:$0xff]
      %v794 = vld [vmem:[%s787 + $0x30] sm:$0xff]
      %v795 = vld [vmem:[%s787 + $0x38] sm:$0xff]
      %v796 = vld [vmem:[%s787 + $0x40] sm:$0xff]
      %v797 = vld [vmem:[%s787 + $0x48] sm:$0xff]
      %v798 = vld [vmem:[%s787 + $0x50] sm:$0xff]
      %v799 = vld [vmem:[%s787 + $0x58] sm:$0xff]
      %v800 = vld [vmem:[%s787 + $0x60] sm:$0xff]
      %v801 = vld [vmem:[%s787 + $0x68] sm:$0xff]
      %v802 = vld [vmem:[%s787 + $0x70] sm:$0xff]
      %v803 = vld [vmem:[%s787 + $0x78] sm:$0xff]
      %v804 = vld [vmem:[%s787 + $0x80] sm:$0xff]
      %v805 = vld [vmem:[%s787 + $0x88] sm:$0xff]
      %v806 = vld [vmem:[%s787 + $0x90] sm:$0xff]
      %v807 = vld [vmem:[%s787 + $0x98] sm:$0xff]
      %v808 = vld [vmem:[%s787 + $0xa0] sm:$0xff]
      %v809 = vld [vmem:[%s787 + $0xa8] sm:$0xff]
      %v810 = vld [vmem:[%s787 + $0xb0] sm:$0xff]
      %v811 = vld [vmem:[%s787 + $0xb8] sm:$0xff]
      %v812 = vld [vmem:[%s787 + $0xc0] sm:$0xff]
      %v813 = vld [vmem:[%s787 + $0xc8] sm:$0xff]
      %v814 = vld [vmem:[%s787 + $0xd0] sm:$0xff]
      %v815 = vld [vmem:[%s787 + $0xd8] sm:$0xff]
      %v816 = vld [vmem:[%s787 + $0xe0] sm:$0xff]
      %v817 = vld [vmem:[%s787 + $0xe8] sm:$0xff]
      %v818 = vld [vmem:[%s787 + $0xf0] sm:$0xff]
      %v819 = vld [vmem:[%s787 + $0xf8] sm:$0xff]
      %v820 = vld [vmem:[%s787 + $0x100] sm:$0xff]
      %v821 = vld [vmem:[%s787 + $0x108] sm:$0xff]
      %v822 = vld [vmem:[%s787 + $0x110] sm:$0xff]
      %v823 = vld [vmem:[%s787 + $0x118] sm:$0xff]
      %v824 = vld [vmem:[%s787 + $0x120] sm:$0xff]
      %v825 = vld [vmem:[%s787 + $0x128] sm:$0xff]
      %v826 = vld [vmem:[%s787 + $0x130] sm:$0xff]
      %v827 = vld [vmem:[%s787 + $0x138] sm:$0xff]
      %v828 = vld [vmem:[%s787 + $0x140] sm:$0xff]
      %v829 = vld [vmem:[%s787 + $0x148] sm:$0xff]
      %v830 = vld [vmem:[%s787 + $0x150] sm:$0xff]
      %v831 = vld [vmem:[%s787 + $0x158] sm:$0xff]
      %v832 = vld [vmem:[%s787 + $0x160] sm:$0xff]
      %v833 = vld [vmem:[%s787 + $0x168] sm:$0xff]
      %v834 = vld [vmem:[%s787 + $0x170] sm:$0xff]
      %v835 = vld [vmem:[%s787 + $0x178] sm:$0xff]
      %v836 = vld [vmem:[%s787 + $0x180] sm:$0xff]
      %v837 = vld [vmem:[%s787 + $0x188] sm:$0xff]
      %v838 = vld [vmem:[%s787 + $0x190] sm:$0xff]
      %v839 = vld [vmem:[%s787 + $0x198] sm:$0xff]
      %v840 = vld [vmem:[%s787 + $0x1a0] sm:$0xff]
      %v841 = vld [vmem:[%s787 + $0x1a8] sm:$0xff]
      %v842 = vld [vmem:[%s787 + $0x1b0] sm:$0xff]
      %v843 = vld [vmem:[%s787 + $0x1b8] sm:$0xff]
      %v844 = vld [vmem:[%s787 + $0x1c0] sm:$0xff]
      %v845 = vld [vmem:[%s787 + $0x1c8] sm:$0xff]
      %v846 = vld [vmem:[%s787 + $0x1d0] sm:$0xff]
      %v847 = vld [vmem:[%s787 + $0x1d8] sm:$0xff]
      %v848 = vld [vmem:[%s787 + $0x1e0] sm:$0xff]
      %v849 = vld [vmem:[%s787 + $0x1e8] sm:$0xff]
      %v850 = vld [vmem:[%s787 + $0x1f0] sm:$0xff]
      %v851 = vld [vmem:[%s787 + $0x1f8] sm:$0xff]
      %s852 = scalar_lea.vmem %s4, 2
      %v853 = vld [vmem:[%s852] sm:$0x3]
      %v855 = vlaneseq
      %v856 = vshrl.u32 %v855, 7
      %v857 = vsub.s32 0, %v856
      %v858 = vrot.slane %v853, %v857
      %v859 = vlaneseq
      %v860 = vshrl.u32 %v859, 7
      %v861 = vsub.s32 1, %v860
      %v862 = vrot.slane %v853, %v861
      %865 = vmatprep.subr.mxu0 %v819
      %866 = vmatpush1.msra.mxu0 %v818
      %867 = vmatprep.subr.mxu0 %v817
      %868 = vmatpush1.msra.mxu0 %v816
      %869 = vmatprep.subr.mxu0 %v815
      %870 = vmatpush1.msra.mxu0 %v814
      %871 = vmatprep.subr.mxu0 %v813
      %872 = vmatpush1.msra.mxu0 %v812
      %873 = vmatprep.subr.mxu0 %v811
      %874 = vmatpush1.msra.mxu0 %v810
      %875 = vmatprep.subr.mxu0 %v809
      %876 = vmatpush1.msra.mxu0 %v808
      %877 = vmatprep.subr.mxu0 %v807
      %878 = vmatpush1.msra.mxu0 %v806
      %879 = vmatprep.subr.mxu0 %v805
      %880 = vmatpush1.msra.mxu0 %v804
      %881 = vmatprep.subr.mxu0 %v803
      %882 = vmatpush1.msra.mxu0 %v802
      %883 = vmatprep.subr.mxu0 %v801
      %884 = vmatpush1.msra.mxu0 %v800
      %885 = vmatprep.subr.mxu0 %v799
      %886 = vmatpush1.msra.mxu0 %v798
      %887 = vmatprep.subr.mxu0 %v797
      %888 = vmatpush1.msra.mxu0 %v796
      %889 = vmatprep.subr.mxu0 %v795
      %890 = vmatpush1.msra.mxu0 %v794
      %891 = vmatprep.subr.mxu0 %v793
      %892 = vmatpush1.msra.mxu0 %v792
      %893 = vmatprep.subr.mxu0 %v791
      %894 = vmatpush1.msra.mxu0 %v790
      %895 = vmatprep.subr.mxu0 %v789
      %896 = vmatpush1.msra.mxu0 %v788
      %897 = vmatprep.subr.mxu0 %v851
      %898 = vmatpush2.msra.mxu0 %v850
      %899 = vmatprep.subr.mxu0 %v849
      %900 = vmatpush2.msra.mxu0 %v848
      %901 = vmatprep.subr.mxu0 %v847
      %902 = vmatpush2.msra.mxu0 %v846
      %903 = vmatprep.subr.mxu0 %v845
      %904 = vmatpush2.msra.mxu0 %v844
      %905 = vmatprep.subr.mxu0 %v843
      %906 = vmatpush2.msra.mxu0 %v842
      %907 = vmatprep.subr.mxu0 %v841
      %908 = vmatpush2.msra.mxu0 %v840
      %909 = vmatprep.subr.mxu0 %v839
      %910 = vmatpush2.msra.mxu0 %v838
      %911 = vmatprep.subr.mxu0 %v837
      %912 = vmatpush2.msra.mxu0 %v836
      %913 = vmatprep.subr.mxu0 %v835
      %914 = vmatpush2.msra.mxu0 %v834
      %915 = vmatprep.subr.mxu0 %v833
      %916 = vmatpush2.msra.mxu0 %v832
      %917 = vmatprep.subr.mxu0 %v831
      %918 = vmatpush2.msra.mxu0 %v830
      %919 = vmatprep.subr.mxu0 %v829
      %920 = vmatpush2.msra.mxu0 %v828
      %921 = vmatprep.subr.mxu0 %v827
      %922 = vmatpush2.msra.mxu0 %v826
      %923 = vmatprep.subr.mxu0 %v825
      %924 = vmatpush2.msra.mxu0 %v824
      %925 = vmatprep.subr.mxu0 %v823
      %926 = vmatpush2.msra.mxu0 %v822
      %927 = vmatprep.subr.mxu0 %v821
      %928 = vmatpush2.msra.mxu0 %v820
      %929 = vmatprep.mubr.f32.mxu0 %v786
      %930 = vmatmul.mubr.f32.gmra.mxu0 %v785
      %v931 = vpop.f32.mrf.mxu0
      %v932 = vadd.f32 %v858, %v931
      %v933 = vpop.f32.mrf.mxu0
      %v934 = vadd.f32 %v862, %v933
      %935 = vdwg.mxu0
      %v936 = vmax.f32 %v932, 0.0
      %v937 = vmax.f32 %v934, 0.0
      %s938 = scalar_lea.vmem %s5, 512
      %v939 = vld [vmem:[%s938] sm:$0xff]
      %v940 = vld [vmem:[%s938 + $0x8] sm:$0xff]
      %v941 = vld [vmem:[%s938 + $0x10] sm:$0xff]
      %v942 = vld [vmem:[%s938 + $0x18] sm:$0xff]
      %v943 = vld [vmem:[%s938 + $0x20] sm:$0xff]
      %v944 = vld [vmem:[%s938 + $0x28] sm:$0xff]
      %v945 = vld [vmem:[%s938 + $0x30] sm:$0xff]
      %v946 = vld [vmem:[%s938 + $0x38] sm:$0xff]
      %v947 = vld [vmem:[%s938 + $0x40] sm:$0xff]
      %v948 = vld [vmem:[%s938 + $0x48] sm:$0xff]
      %v949 = vld [vmem:[%s938 + $0x50] sm:$0xff]
      %v950 = vld [vmem:[%s938 + $0x58] sm:$0xff]
      %v951 = vld [vmem:[%s938 + $0x60] sm:$0xff]
      %v952 = vld [vmem:[%s938 + $0x68] sm:$0xff]
      %v953 = vld [vmem:[%s938 + $0x70] sm:$0xff]
      %v954 = vld [vmem:[%s938 + $0x78] sm:$0xff]
      %v955 = vld [vmem:[%s938 + $0x80] sm:$0xff]
      %v956 = vld [vmem:[%s938 + $0x88] sm:$0xff]
      %v957 = vld [vmem:[%s938 + $0x90] sm:$0xff]
      %v958 = vld [vmem:[%s938 + $0x98] sm:$0xff]
      %v959 = vld [vmem:[%s938 + $0xa0] sm:$0xff]
      %v960 = vld [vmem:[%s938 + $0xa8] sm:$0xff]
      %v961 = vld [vmem:[%s938 + $0xb0] sm:$0xff]
      %v962 = vld [vmem:[%s938 + $0xb8] sm:$0xff]
      %v963 = vld [vmem:[%s938 + $0xc0] sm:$0xff]
      %v964 = vld [vmem:[%s938 + $0xc8] sm:$0xff]
      %v965 = vld [vmem:[%s938 + $0xd0] sm:$0xff]
      %v966 = vld [vmem:[%s938 + $0xd8] sm:$0xff]
      %v967 = vld [vmem:[%s938 + $0xe0] sm:$0xff]
      %v968 = vld [vmem:[%s938 + $0xe8] sm:$0xff]
      %v969 = vld [vmem:[%s938 + $0xf0] sm:$0xff]
      %v970 = vld [vmem:[%s938 + $0xf8] sm:$0xff]
      %v971 = vld [vmem:[%s938 + $0x100] sm:$0xff]
      %v972 = vld [vmem:[%s938 + $0x108] sm:$0xff]
      %v973 = vld [vmem:[%s938 + $0x110] sm:$0xff]
      %v974 = vld [vmem:[%s938 + $0x118] sm:$0xff]
      %v975 = vld [vmem:[%s938 + $0x120] sm:$0xff]
      %v976 = vld [vmem:[%s938 + $0x128] sm:$0xff]
      %v977 = vld [vmem:[%s938 + $0x130] sm:$0xff]
      %v978 = vld [vmem:[%s938 + $0x138] sm:$0xff]
      %v979 = vld [vmem:[%s938 + $0x140] sm:$0xff]
      %v980 = vld [vmem:[%s938 + $0x148] sm:$0xff]
      %v981 = vld [vmem:[%s938 + $0x150] sm:$0xff]
      %v982 = vld [vmem:[%s938 + $0x158] sm:$0xff]
      %v983 = vld [vmem:[%s938 + $0x160] sm:$0xff]
      %v984 = vld [vmem:[%s938 + $0x168] sm:$0xff]
      %v985 = vld [vmem:[%s938 + $0x170] sm:$0xff]
      %v986 = vld [vmem:[%s938 + $0x178] sm:$0xff]
      %v987 = vld [vmem:[%s938 + $0x180] sm:$0xff]
      %v988 = vld [vmem:[%s938 + $0x188] sm:$0xff]
      %v989 = vld [vmem:[%s938 + $0x190] sm:$0xff]
      %v990 = vld [vmem:[%s938 + $0x198] sm:$0xff]
      %v991 = vld [vmem:[%s938 + $0x1a0] sm:$0xff]
      %v992 = vld [vmem:[%s938 + $0x1a8] sm:$0xff]
      %v993 = vld [vmem:[%s938 + $0x1b0] sm:$0xff]
      %v994 = vld [vmem:[%s938 + $0x1b8] sm:$0xff]
      %v995 = vld [vmem:[%s938 + $0x1c0] sm:$0xff]
      %v996 = vld [vmem:[%s938 + $0x1c8] sm:$0xff]
      %v997 = vld [vmem:[%s938 + $0x1d0] sm:$0xff]
      %v998 = vld [vmem:[%s938 + $0x1d8] sm:$0xff]
      %v999 = vld [vmem:[%s938 + $0x1e0] sm:$0xff]
      %v1000 = vld [vmem:[%s938 + $0x1e8] sm:$0xff]
      %v1001 = vld [vmem:[%s938 + $0x1f0] sm:$0xff]
      %v1002 = vld [vmem:[%s938 + $0x1f8] sm:$0xff]
      %1003 = vmatprep.subr.mxu0 %v970
      %1004 = vmatpush1.msra.mxu0 %v969
      %1005 = vmatprep.subr.mxu0 %v968
      %1006 = vmatpush1.msra.mxu0 %v967
      %1007 = vmatprep.subr.mxu0 %v966
      %1008 = vmatpush1.msra.mxu0 %v965
      %1009 = vmatprep.subr.mxu0 %v964
      %1010 = vmatpush1.msra.mxu0 %v963
      %1011 = vmatprep.subr.mxu0 %v962
      %1012 = vmatpush1.msra.mxu0 %v961
      %1013 = vmatprep.subr.mxu0 %v960
      %1014 = vmatpush1.msra.mxu0 %v959
      %1015 = vmatprep.subr.mxu0 %v958
      %1016 = vmatpush1.msra.mxu0 %v957
      %1017 = vmatprep.subr.mxu0 %v956
      %1018 = vmatpush1.msra.mxu0 %v955
      %1019 = vmatprep.subr.mxu0 %v954
      %1020 = vmatpush1.msra.mxu0 %v953
      %1021 = vmatprep.subr.mxu0 %v952
      %1022 = vmatpush1.msra.mxu0 %v951
      %1023 = vmatprep.subr.mxu0 %v950
      %1024 = vmatpush1.msra.mxu0 %v949
      %1025 = vmatprep.subr.mxu0 %v948
      %1026 = vmatpush1.msra.mxu0 %v947
      %1027 = vmatprep.subr.mxu0 %v946
      %1028 = vmatpush1.msra.mxu0 %v945
      %1029 = vmatprep.subr.mxu0 %v944
      %1030 = vmatpush1.msra.mxu0 %v943
      %1031 = vmatprep.subr.mxu0 %v942
      %1032 = vmatpush1.msra.mxu0 %v941
      %1033 = vmatprep.subr.mxu0 %v940
      %1034 = vmatpush1.msra.mxu0 %v939
      %1035 = vmatprep.subr.mxu0 %v1002
      %1036 = vmatpush2.msra.mxu0 %v1001
      %1037 = vmatprep.subr.mxu0 %v1000
      %1038 = vmatpush2.msra.mxu0 %v999
      %1039 = vmatprep.subr.mxu0 %v998
      %1040 = vmatpush2.msra.mxu0 %v997
      %1041 = vmatprep.subr.mxu0 %v996
      %1042 = vmatpush2.msra.mxu0 %v995
      %1043 = vmatprep.subr.mxu0 %v994
      %1044 = vmatpush2.msra.mxu0 %v993
      %1045 = vmatprep.subr.mxu0 %v992
      %1046 = vmatpush2.msra.mxu0 %v991
      %1047 = vmatprep.subr.mxu0 %v990
      %1048 = vmatpush2.msra.mxu0 %v989
      %1049 = vmatprep.subr.mxu0 %v988
      %1050 = vmatpush2.msra.mxu0 %v987
      %1051 = vmatprep.subr.mxu0 %v986
      %1052 = vmatpush2.msra.mxu0 %v985
      %1053 = vmatprep.subr.mxu0 %v984
      %1054 = vmatpush2.msra.mxu0 %v983
      %1055 = vmatprep.subr.mxu0 %v982
      %1056 = vmatpush2.msra.mxu0 %v981
      %1057 = vmatprep.subr.mxu0 %v980
      %1058 = vmatpush2.msra.mxu0 %v979
      %1059 = vmatprep.subr.mxu0 %v978
      %1060 = vmatpush2.msra.mxu0 %v977
      %1061 = vmatprep.subr.mxu0 %v976
      %1062 = vmatpush2.msra.mxu0 %v975
      %1063 = vmatprep.subr.mxu0 %v974
      %1064 = vmatpush2.msra.mxu0 %v973
      %1065 = vmatprep.subr.mxu0 %v972
      %1066 = vmatpush2.msra.mxu0 %v971
      %1067 = vmatprep.mubr.f32.mxu0 %v937
      %1068 = vmatmul.mubr.f32.gmra.mxu0 %v936
      %v1069 = vpop.f32.mrf.mxu0
      %v1070 = vadd.f32 0.0, %v1069
      %v1071 = vpop.f32.mrf.mxu0
      %v1072 = vadd.f32 0.0, %v1071
      %1073 = vdwg.mxu0
      %v1074 = vadd.f32 %v785, %v1070
      %v1075 = vadd.f32 %v786, %v1072
      %s1076 = scalar_lea.vmem %s6, 2
      %v1077 = vld [vmem:[%s1076] sm:$0x3]
      %v1079 = vlaneseq
      %v1080 = vshrl.u32 %v1079, 7
      %v1081 = vsub.s32 0, %v1080
      %v1082 = vrot.slane %v1077, %v1081
      %v1083 = vlaneseq
      %v1084 = vshrl.u32 %v1083, 7
      %v1085 = vsub.s32 1, %v1084
      %v1086 = vrot.slane %v1077, %v1085
      %v1089 = vadd.f32 %v1074, %v1082
      %v1090 = vadd.f32 %v1075, %v1086
      %s1091 = scalar_lea.vmem %s3, 1024
      %v1092 = vld [vmem:[%s1091] sm:$0xff]
      %v1093 = vld [vmem:[%s1091 + $0x8] sm:$0xff]
      %v1094 = vld [vmem:[%s1091 + $0x10] sm:$0xff]
      %v1095 = vld [vmem:[%s1091 + $0x18] sm:$0xff]
      %v1096 = vld [vmem:[%s1091 + $0x20] sm:$0xff]
      %v1097 = vld [vmem:[%s1091 + $0x28] sm:$0xff]
      %v1098 = vld [vmem:[%s1091 + $0x30] sm:$0xff]
      %v1099 = vld [vmem:[%s1091 + $0x38] sm:$0xff]
      %v1100 = vld [vmem:[%s1091 + $0x40] sm:$0xff]
      %v1101 = vld [vmem:[%s1091 + $0x48] sm:$0xff]
      %v1102 = vld [vmem:[%s1091 + $0x50] sm:$0xff]
      %v1103 = vld [vmem:[%s1091 + $0x58] sm:$0xff]
      %v1104 = vld [vmem:[%s1091 + $0x60] sm:$0xff]
      %v1105 = vld [vmem:[%s1091 + $0x68] sm:$0xff]
      %v1106 = vld [vmem:[%s1091 + $0x70] sm:$0xff]
      %v1107 = vld [vmem:[%s1091 + $0x78] sm:$0xff]
      %v1108 = vld [vmem:[%s1091 + $0x80] sm:$0xff]
      %v1109 = vld [vmem:[%s1091 + $0x88] sm:$0xff]
      %v1110 = vld [vmem:[%s1091 + $0x90] sm:$0xff]
      %v1111 = vld [vmem:[%s1091 + $0x98] sm:$0xff]
      %v1112 = vld [vmem:[%s1091 + $0xa0] sm:$0xff]
      %v1113 = vld [vmem:[%s1091 + $0xa8] sm:$0xff]
      %v1114 = vld [vmem:[%s1091 + $0xb0] sm:$0xff]
      %v1115 = vld [vmem:[%s1091 + $0xb8] sm:$0xff]
      %v1116 = vld [vmem:[%s1091 + $0xc0] sm:$0xff]
      %v1117 = vld [vmem:[%s1091 + $0xc8] sm:$0xff]
      %v1118 = vld [vmem:[%s1091 + $0xd0] sm:$0xff]
      %v1119 = vld [vmem:[%s1091 + $0xd8] sm:$0xff]
      %v1120 = vld [vmem:[%s1091 + $0xe0] sm:$0xff]
      %v1121 = vld [vmem:[%s1091 + $0xe8] sm:$0xff]
      %v1122 = vld [vmem:[%s1091 + $0xf0] sm:$0xff]
      %v1123 = vld [vmem:[%s1091 + $0xf8] sm:$0xff]
      %v1124 = vld [vmem:[%s1091 + $0x100] sm:$0xff]
      %v1125 = vld [vmem:[%s1091 + $0x108] sm:$0xff]
      %v1126 = vld [vmem:[%s1091 + $0x110] sm:$0xff]
      %v1127 = vld [vmem:[%s1091 + $0x118] sm:$0xff]
      %v1128 = vld [vmem:[%s1091 + $0x120] sm:$0xff]
      %v1129 = vld [vmem:[%s1091 + $0x128] sm:$0xff]
      %v1130 = vld [vmem:[%s1091 + $0x130] sm:$0xff]
      %v1131 = vld [vmem:[%s1091 + $0x138] sm:$0xff]
      %v1132 = vld [vmem:[%s1091 + $0x140] sm:$0xff]
      %v1133 = vld [vmem:[%s1091 + $0x148] sm:$0xff]
      %v1134 = vld [vmem:[%s1091 + $0x150] sm:$0xff]
      %v1135 = vld [vmem:[%s1091 + $0x158] sm:$0xff]
      %v1136 = vld [vmem:[%s1091 + $0x160] sm:$0xff]
      %v1137 = vld [vmem:[%s1091 + $0x168] sm:$0xff]
      %v1138 = vld [vmem:[%s1091 + $0x170] sm:$0xff]
      %v1139 = vld [vmem:[%s1091 + $0x178] sm:$0xff]
      %v1140 = vld [vmem:[%s1091 + $0x180] sm:$0xff]
      %v1141 = vld [vmem:[%s1091 + $0x188] sm:$0xff]
      %v1142 = vld [vmem:[%s1091 + $0x190] sm:$0xff]
      %v1143 = vld [vmem:[%s1091 + $0x198] sm:$0xff]
      %v1144 = vld [vmem:[%s1091 + $0x1a0] sm:$0xff]
      %v1145 = vld [vmem:[%s1091 + $0x1a8] sm:$0xff]
      %v1146 = vld [vmem:[%s1091 + $0x1b0] sm:$0xff]
      %v1147 = vld [vmem:[%s1091 + $0x1b8] sm:$0xff]
      %v1148 = vld [vmem:[%s1091 + $0x1c0] sm:$0xff]
      %v1149 = vld [vmem:[%s1091 + $0x1c8] sm:$0xff]
      %v1150 = vld [vmem:[%s1091 + $0x1d0] sm:$0xff]
      %v1151 = vld [vmem:[%s1091 + $0x1d8] sm:$0xff]
      %v1152 = vld [vmem:[%s1091 + $0x1e0] sm:$0xff]
      %v1153 = vld [vmem:[%s1091 + $0x1e8] sm:$0xff]
      %v1154 = vld [vmem:[%s1091 + $0x1f0] sm:$0xff]
      %v1155 = vld [vmem:[%s1091 + $0x1f8] sm:$0xff]
      %s1156 = scalar_lea.vmem %s4, 4
      %v1157 = vld [vmem:[%s1156] sm:$0x3]
      %v1159 = vlaneseq
      %v1160 = vshrl.u32 %v1159, 7
      %v1161 = vsub.s32 0, %v1160
      %v1162 = vrot.slane %v1157, %v1161
      %v1163 = vlaneseq
      %v1164 = vshrl.u32 %v1163, 7
      %v1165 = vsub.s32 1, %v1164
      %v1166 = vrot.slane %v1157, %v1165
      %1169 = vmatprep.subr.mxu0 %v1123
      %1170 = vmatpush1.msra.mxu0 %v1122
      %1171 = vmatprep.subr.mxu0 %v1121
      %1172 = vmatpush1.msra.mxu0 %v1120
      %1173 = vmatprep.subr.mxu0 %v1119
      %1174 = vmatpush1.msra.mxu0 %v1118
      %1175 = vmatprep.subr.mxu0 %v1117
      %1176 = vmatpush1.msra.mxu0 %v1116
      %1177 = vmatprep.subr.mxu0 %v1115
      %1178 = vmatpush1.msra.mxu0 %v1114
      %1179 = vmatprep.subr.mxu0 %v1113
      %1180 = vmatpush1.msra.mxu0 %v1112
      %1181 = vmatprep.subr.mxu0 %v1111
      %1182 = vmatpush1.msra.mxu0 %v1110
      %1183 = vmatprep.subr.mxu0 %v1109
      %1184 = vmatpush1.msra.mxu0 %v1108
      %1185 = vmatprep.subr.mxu0 %v1107
      %1186 = vmatpush1.msra.mxu0 %v1106
      %1187 = vmatprep.subr.mxu0 %v1105
      %1188 = vmatpush1.msra.mxu0 %v1104
      %1189 = vmatprep.subr.mxu0 %v1103
      %1190 = vmatpush1.msra.mxu0 %v1102
      %1191 = vmatprep.subr.mxu0 %v1101
      %1192 = vmatpush1.msra.mxu0 %v1100
      %1193 = vmatprep.subr.mxu0 %v1099
      %1194 = vmatpush1.msra.mxu0 %v1098
      %1195 = vmatprep.subr.mxu0 %v1097
      %1196 = vmatpush1.msra.mxu0 %v1096
      %1197 = vmatprep.subr.mxu0 %v1095
      %1198 = vmatpush1.msra.mxu0 %v1094
      %1199 = vmatprep.subr.mxu0 %v1093
      %1200 = vmatpush1.msra.mxu0 %v1092
      %1201 = vmatprep.subr.mxu0 %v1155
      %1202 = vmatpush2.msra.mxu0 %v1154
      %1203 = vmatprep.subr.mxu0 %v1153
      %1204 = vmatpush2.msra.mxu0 %v1152
      %1205 = vmatprep.subr.mxu0 %v1151
      %1206 = vmatpush2.msra.mxu0 %v1150
      %1207 = vmatprep.subr.mxu0 %v1149
      %1208 = vmatpush2.msra.mxu0 %v1148
      %1209 = vmatprep.subr.mxu0 %v1147
      %1210 = vmatpush2.msra.mxu0 %v1146
      %1211 = vmatprep.subr.mxu0 %v1145
      %1212 = vmatpush2.msra.mxu0 %v1144
      %1213 = vmatprep.subr.mxu0 %v1143
      %1214 = vmatpush2.msra.mxu0 %v1142
      %1215 = vmatprep.subr.mxu0 %v1141
      %1216 = vmatpush2.msra.mxu0 %v1140
      %1217 = vmatprep.subr.mxu0 %v1139
      %1218 = vmatpush2.msra.mxu0 %v1138
      %1219 = vmatprep.subr.mxu0 %v1137
      %1220 = vmatpush2.msra.mxu0 %v1136
      %1221 = vmatprep.subr.mxu0 %v1135
      %1222 = vmatpush2.msra.mxu0 %v1134
      %1223 = vmatprep.subr.mxu0 %v1133
      %1224 = vmatpush2.msra.mxu0 %v1132
      %1225 = vmatprep.subr.mxu0 %v1131
      %1226 = vmatpush2.msra.mxu0 %v1130
      %1227 = vmatprep.subr.mxu0 %v1129
      %1228 = vmatpush2.msra.mxu0 %v1128
      %1229 = vmatprep.subr.mxu0 %v1127
      %1230 = vmatpush2.msra.mxu0 %v1126
      %1231 = vmatprep.subr.mxu0 %v1125
      %1232 = vmatpush2.msra.mxu0 %v1124
      %1233 = vmatprep.mubr.f32.mxu0 %v1090
      %1234 = vmatmul.mubr.f32.gmra.mxu0 %v1089
      %v1235 = vpop.f32.mrf.mxu0
      %v1236 = vadd.f32 %v1162, %v1235
      %v1237 = vpop.f32.mrf.mxu0
      %v1238 = vadd.f32 %v1166, %v1237
      %1239 = vdwg.mxu0
      %v1240 = vmax.f32 %v1236, 0.0
      %v1241 = vmax.f32 %v1238, 0.0
      %s1242 = scalar_lea.vmem %s5, 1024
      %v1243 = vld [vmem:[%s1242] sm:$0xff]
      %v1244 = vld [vmem:[%s1242 + $0x8] sm:$0xff]
      %v1245 = vld [vmem:[%s1242 + $0x10] sm:$0xff]
      %v1246 = vld [vmem:[%s1242 + $0x18] sm:$0xff]
      %v1247 = vld [vmem:[%s1242 + $0x20] sm:$0xff]
      %v1248 = vld [vmem:[%s1242 + $0x28] sm:$0xff]
      %v1249 = vld [vmem:[%s1242 + $0x30] sm:$0xff]
      %v1250 = vld [vmem:[%s1242 + $0x38] sm:$0xff]
      %v1251 = vld [vmem:[%s1242 + $0x40] sm:$0xff]
      %v1252 = vld [vmem:[%s1242 + $0x48] sm:$0xff]
      %v1253 = vld [vmem:[%s1242 + $0x50] sm:$0xff]
      %v1254 = vld [vmem:[%s1242 + $0x58] sm:$0xff]
      %v1255 = vld [vmem:[%s1242 + $0x60] sm:$0xff]
      %v1256 = vld [vmem:[%s1242 + $0x68] sm:$0xff]
      %v1257 = vld [vmem:[%s1242 + $0x70] sm:$0xff]
      %v1258 = vld [vmem:[%s1242 + $0x78] sm:$0xff]
      %v1259 = vld [vmem:[%s1242 + $0x80] sm:$0xff]
      %v1260 = vld [vmem:[%s1242 + $0x88] sm:$0xff]
      %v1261 = vld [vmem:[%s1242 + $0x90] sm:$0xff]
      %v1262 = vld [vmem:[%s1242 + $0x98] sm:$0xff]
      %v1263 = vld [vmem:[%s1242 + $0xa0] sm:$0xff]
      %v1264 = vld [vmem:[%s1242 + $0xa8] sm:$0xff]
      %v1265 = vld [vmem:[%s1242 + $0xb0] sm:$0xff]
      %v1266 = vld [vmem:[%s1242 + $0xb8] sm:$0xff]
      %v1267 = vld [vmem:[%s1242 + $0xc0] sm:$0xff]
      %v1268 = vld [vmem:[%s1242 + $0xc8] sm:$0xff]
      %v1269 = vld [vmem:[%s1242 + $0xd0] sm:$0xff]
      %v1270 = vld [vmem:[%s1242 + $0xd8] sm:$0xff]
      %v1271 = vld [vmem:[%s1242 + $0xe0] sm:$0xff]
      %v1272 = vld [vmem:[%s1242 + $0xe8] sm:$0xff]
      %v1273 = vld [vmem:[%s1242 + $0xf0] sm:$0xff]
      %v1274 = vld [vmem:[%s1242 + $0xf8] sm:$0xff]
      %v1275 = vld [vmem:[%s1242 + $0x100] sm:$0xff]
      %v1276 = vld [vmem:[%s1242 + $0x108] sm:$0xff]
      %v1277 = vld [vmem:[%s1242 + $0x110] sm:$0xff]
      %v1278 = vld [vmem:[%s1242 + $0x118] sm:$0xff]
      %v1279 = vld [vmem:[%s1242 + $0x120] sm:$0xff]
      %v1280 = vld [vmem:[%s1242 + $0x128] sm:$0xff]
      %v1281 = vld [vmem:[%s1242 + $0x130] sm:$0xff]
      %v1282 = vld [vmem:[%s1242 + $0x138] sm:$0xff]
      %v1283 = vld [vmem:[%s1242 + $0x140] sm:$0xff]
      %v1284 = vld [vmem:[%s1242 + $0x148] sm:$0xff]
      %v1285 = vld [vmem:[%s1242 + $0x150] sm:$0xff]
      %v1286 = vld [vmem:[%s1242 + $0x158] sm:$0xff]
      %v1287 = vld [vmem:[%s1242 + $0x160] sm:$0xff]
      %v1288 = vld [vmem:[%s1242 + $0x168] sm:$0xff]
      %v1289 = vld [vmem:[%s1242 + $0x170] sm:$0xff]
      %v1290 = vld [vmem:[%s1242 + $0x178] sm:$0xff]
      %v1291 = vld [vmem:[%s1242 + $0x180] sm:$0xff]
      %v1292 = vld [vmem:[%s1242 + $0x188] sm:$0xff]
      %v1293 = vld [vmem:[%s1242 + $0x190] sm:$0xff]
      %v1294 = vld [vmem:[%s1242 + $0x198] sm:$0xff]
      %v1295 = vld [vmem:[%s1242 + $0x1a0] sm:$0xff]
      %v1296 = vld [vmem:[%s1242 + $0x1a8] sm:$0xff]
      %v1297 = vld [vmem:[%s1242 + $0x1b0] sm:$0xff]
      %v1298 = vld [vmem:[%s1242 + $0x1b8] sm:$0xff]
      %v1299 = vld [vmem:[%s1242 + $0x1c0] sm:$0xff]
      %v1300 = vld [vmem:[%s1242 + $0x1c8] sm:$0xff]
      %v1301 = vld [vmem:[%s1242 + $0x1d0] sm:$0xff]
      %v1302 = vld [vmem:[%s1242 + $0x1d8] sm:$0xff]
      %v1303 = vld [vmem:[%s1242 + $0x1e0] sm:$0xff]
      %v1304 = vld [vmem:[%s1242 + $0x1e8] sm:$0xff]
      %v1305 = vld [vmem:[%s1242 + $0x1f0] sm:$0xff]
      %v1306 = vld [vmem:[%s1242 + $0x1f8] sm:$0xff]
      %1307 = vmatprep.subr.mxu0 %v1274
      %1308 = vmatpush1.msra.mxu0 %v1273
      %1309 = vmatprep.subr.mxu0 %v1272
      %1310 = vmatpush1.msra.mxu0 %v1271
      %1311 = vmatprep.subr.mxu0 %v1270
      %1312 = vmatpush1.msra.mxu0 %v1269
      %1313 = vmatprep.subr.mxu0 %v1268
      %1314 = vmatpush1.msra.mxu0 %v1267
      %1315 = vmatprep.subr.mxu0 %v1266
      %1316 = vmatpush1.msra.mxu0 %v1265
      %1317 = vmatprep.subr.mxu0 %v1264
      %1318 = vmatpush1.msra.mxu0 %v1263
      %1319 = vmatprep.subr.mxu0 %v1262
      %1320 = vmatpush1.msra.mxu0 %v1261
      %1321 = vmatprep.subr.mxu0 %v1260
      %1322 = vmatpush1.msra.mxu0 %v1259
      %1323 = vmatprep.subr.mxu0 %v1258
      %1324 = vmatpush1.msra.mxu0 %v1257
      %1325 = vmatprep.subr.mxu0 %v1256
      %1326 = vmatpush1.msra.mxu0 %v1255
      %1327 = vmatprep.subr.mxu0 %v1254
      %1328 = vmatpush1.msra.mxu0 %v1253
      %1329 = vmatprep.subr.mxu0 %v1252
      %1330 = vmatpush1.msra.mxu0 %v1251
      %1331 = vmatprep.subr.mxu0 %v1250
      %1332 = vmatpush1.msra.mxu0 %v1249
      %1333 = vmatprep.subr.mxu0 %v1248
      %1334 = vmatpush1.msra.mxu0 %v1247
      %1335 = vmatprep.subr.mxu0 %v1246
      %1336 = vmatpush1.msra.mxu0 %v1245
      %1337 = vmatprep.subr.mxu0 %v1244
      %1338 = vmatpush1.msra.mxu0 %v1243
      %1339 = vmatprep.subr.mxu0 %v1306
      %1340 = vmatpush2.msra.mxu0 %v1305
      %1341 = vmatprep.subr.mxu0 %v1304
      %1342 = vmatpush2.msra.mxu0 %v1303
      %1343 = vmatprep.subr.mxu0 %v1302
      %1344 = vmatpush2.msra.mxu0 %v1301
      %1345 = vmatprep.subr.mxu0 %v1300
      %1346 = vmatpush2.msra.mxu0 %v1299
      %1347 = vmatprep.subr.mxu0 %v1298
      %1348 = vmatpush2.msra.mxu0 %v1297
      %1349 = vmatprep.subr.mxu0 %v1296
      %1350 = vmatpush2.msra.mxu0 %v1295
      %1351 = vmatprep.subr.mxu0 %v1294
      %1352 = vmatpush2.msra.mxu0 %v1293
      %1353 = vmatprep.subr.mxu0 %v1292
      %1354 = vmatpush2.msra.mxu0 %v1291
      %1355 = vmatprep.subr.mxu0 %v1290
      %1356 = vmatpush2.msra.mxu0 %v1289
      %1357 = vmatprep.subr.mxu0 %v1288
      %1358 = vmatpush2.msra.mxu0 %v1287
      %1359 = vmatprep.subr.mxu0 %v1286
      %1360 = vmatpush2.msra.mxu0 %v1285
      %1361 = vmatprep.subr.mxu0 %v1284
      %1362 = vmatpush2.msra.mxu0 %v1283
      %1363 = vmatprep.subr.mxu0 %v1282
      %1364 = vmatpush2.msra.mxu0 %v1281
      %1365 = vmatprep.subr.mxu0 %v1280
      %1366 = vmatpush2.msra.mxu0 %v1279
      %1367 = vmatprep.subr.mxu0 %v1278
      %1368 = vmatpush2.msra.mxu0 %v1277
      %1369 = vmatprep.subr.mxu0 %v1276
      %1370 = vmatpush2.msra.mxu0 %v1275
      %1371 = vmatprep.mubr.f32.mxu0 %v1241
      %1372 = vmatmul.mubr.f32.gmra.mxu0 %v1240
      %v1373 = vpop.f32.mrf.mxu0
      %v1374 = vadd.f32 0.0, %v1373
      %v1375 = vpop.f32.mrf.mxu0
      %v1376 = vadd.f32 0.0, %v1375
      %1377 = vdwg.mxu0
      %v1378 = vadd.f32 %v1089, %v1374
      %v1379 = vadd.f32 %v1090, %v1376
      %s1380 = scalar_lea.vmem %s6, 4
      %v1381 = vld [vmem:[%s1380] sm:$0x3]
      %v1383 = vlaneseq
      %v1384 = vshrl.u32 %v1383, 7
      %v1385 = vsub.s32 0, %v1384
      %v1386 = vrot.slane %v1381, %v1385
      %v1387 = vlaneseq
      %v1388 = vshrl.u32 %v1387, 7
      %v1389 = vsub.s32 1, %v1388
      %v1390 = vrot.slane %v1381, %v1389
      %v1393 = vadd.f32 %v1378, %v1386
      %v1394 = vadd.f32 %v1379, %v1390
      %v1395 = vpack.c.bf16 %v1393, %v1393
      %v1396 = vpack.c.bf16 %v1394, %v1394
      %v1399 = vunpack.c.l.b16 %v1395
      %v1400 = vunpack.c.l.b16 %v1396
      %v1401 = vpack.c.b16 %v1400, %v1399
      %1403 = vst [vmem:[%s374] sm:$0xff] %v1401
      %v1404 = vlaneseq
      %v1405 = vshrl.u32 %v1404, 7
      %v1406 = vlaneseq
      %v1407 = vand.u32 %v1406, 127
      %v1408 = vadd.s32 %v1407, 1
      %vm1409 = vcmp.eq.s32.totalorder %v1405, %v1408
      %v1410 = vsel %vm1409, 1, 0
      %v1411 = vcvt.s32.f32 %v1410
      %vm1412 = vcmask 64512
      %v1414 = vsel %vm1412, %v1411, 0
      %1416 = vmatprep.subr.mxu0 0.0
      %1417 = vmatpush1.msra.mxu0 0.0
      %1418 = vmatprep.subr.mxu0 0.0
      %1419 = vmatpush1.msra.mxu0 0.0
      %1420 = vmatprep.subr.mxu0 0.0
      %1421 = vmatpush1.msra.mxu0 0.0
      %1422 = vmatprep.subr.mxu0 0.0
      %1423 = vmatpush1.msra.mxu0 0.0
      %1424 = vmatprep.subr.mxu0 0.0
      %1425 = vmatpush1.msra.mxu0 0.0
      %1426 = vmatprep.subr.mxu0 0.0
      %1427 = vmatpush1.msra.mxu0 0.0
      %1428 = vmatprep.subr.mxu0 0.0
      %1429 = vmatpush1.msra.mxu0 0.0
      %1430 = vmatprep.subr.mxu0 0.0
      %1431 = vmatpush1.msra.mxu0 0.0
      %1432 = vmatprep.subr.mxu0 0.0
      %1433 = vmatpush1.msra.mxu0 0.0
      %1434 = vmatprep.subr.mxu0 0.0
      %1435 = vmatpush1.msra.mxu0 0.0
      %1436 = vmatprep.subr.mxu0 0.0
      %1437 = vmatpush1.msra.mxu0 0.0
      %1438 = vmatprep.subr.mxu0 0.0
      %1439 = vmatpush1.msra.mxu0 0.0
      %1440 = vmatprep.subr.mxu0 0.0
      %1441 = vmatpush1.msra.mxu0 0.0
      %1442 = vmatprep.subr.mxu0 0.0
      %1443 = vmatpush1.msra.mxu0 0.0
      %1444 = vmatprep.subr.mxu0 0.0
      %1445 = vmatpush1.msra.mxu0 0.0
      %1446 = vmatprep.subr.mxu0 %v1394
      %1447 = vmatpush1.msra.mxu0 %v1393
      %1448 = vmatprep.subr.mxu0 0.0
      %1449 = vmatpush2.msra.mxu0 0.0
      %1450 = vmatprep.subr.mxu0 0.0
      %1451 = vmatpush2.msra.mxu0 0.0
      %1452 = vmatprep.subr.mxu0 0.0
      %1453 = vmatpush2.msra.mxu0 0.0
      %1454 = vmatprep.subr.mxu0 0.0
      %1455 = vmatpush2.msra.mxu0 0.0
      %1456 = vmatprep.subr.mxu0 0.0
      %1457 = vmatpush2.msra.mxu0 0.0
      %1458 = vmatprep.subr.mxu0 0.0
      %1459 = vmatpush2.msra.mxu0 0.0
      %1460 = vmatprep.subr.mxu0 0.0
      %1461 = vmatpush2.msra.mxu0 0.0
      %1462 = vmatprep.subr.mxu0 0.0
      %1463 = vmatpush2.msra.mxu0 0.0
      %1464 = vmatprep.subr.mxu0 0.0
      %1465 = vmatpush2.msra.mxu0 0.0
      %1466 = vmatprep.subr.mxu0 0.0
      %1467 = vmatpush2.msra.mxu0 0.0
      %1468 = vmatprep.subr.mxu0 0.0
      %1469 = vmatpush2.msra.mxu0 0.0
      %1470 = vmatprep.subr.mxu0 0.0
      %1471 = vmatpush2.msra.mxu0 0.0
      %1472 = vmatprep.subr.mxu0 0.0
      %1473 = vmatpush2.msra.mxu0 0.0
      %1474 = vmatprep.subr.mxu0 0.0
      %1475 = vmatpush2.msra.mxu0 0.0
      %1476 = vmatprep.subr.mxu0 0.0
      %1477 = vmatpush2.msra.mxu0 0.0
      %1478 = vmatprep.subr.mxu0 0.0
      %1479 = vmatpush2.msra.mxu0 0.0
      %1480 = vmatprep.mubr.f32.mxu0 0.0
      %1481 = vmatmul.mubr.f32.gmra.mxu0 %v1414
      %v1482 = vpop.f32.mrf.mxu0
      %v1483 = vadd.f32 0.0, %v1482
      %v1484 = vpop.f32.mrf.mxu0
      %v1485 = vadd.f32 0.0, %v1484
      %1486 = vdwg.mxu0
      %v1487 = vmax.f32 %v1393, %v1483
      %v1488 = vmax.f32 %v1394, %v1485
      %vm1489 = vcmp.lt.s32.totalorder %v1405, 0
      %v1490 = vsub.s32 0, %v1405
      %v1491 = vsel %vm1489, %v1490, %v1405
      %v1492 = vshrl.u32 %v1491, 1
      %v1493 = vand.u32 %v1491, 1
      %v1494 = vsub.s32 0, %v1493
      %v1495 = vsel %vm1489, %v1494, %v1493
      %vm1496 = vcmp.ne.s32.totalorder %v1495, 0
      %vm1497 = vcmp.lt.s32.totalorder %v1495, 0
      %vm1498 = vmand %vm1497, %vm1496
      %v1499 = vadd.s32 %v1495, 2
      %v1500 = vsel %vm1498, %v1499, %v1495
      %vm1501 = vcmp.eq.s32.totalorder %v1500, 1
      %v1502 = vsel %vm1501, 1, 0
      %vm1503 = vcmp.eq.s32.totalorder %v1502, 1
      %v1504 = vsel %vm1503, %v1487, 0.0
      %v1505 = vsel %vm1503, %v1488, 0.0
      %v1506 = vsel %vm1503, %v1487, -inf
      %v1507 = vsel %vm1503, %v1488, -inf
      %1509 = vrot.lane.b32.xlu0 %v1504, 112
      %v1510 = vpop.permute.xlu0 %1509
      %v1512 = vmax.f32 %v1504, %v1510
      %1514 = vrot.lane.b32.xlu0 %v1506, 112
      %v1515 = vpop.permute.xlu0 %1514
      %v1517 = vmax.f32 %v1506, %v1515
      %vm1518 = vcmask 130048
      %v1519 = vsel %vm1518, %v1512, 0.0
      %v1520 = vrot.slane %v1519, 4
      %v1521 = vadd.f32 %v1519, %v1520
      %v1522 = vrot.slane %v1521, 2
      %v1523 = vadd.f32 %v1521, %v1522
      %v1524 = vrot.slane %v1523, 1
      %v1525 = vadd.f32 %v1523, %v1524
      %v1526 = vadd.f32 %v1525, 0.0
      %v1527 = vsel %vm1518, %v1517, -inf
      %v1528 = vrot.slane %v1527, 4
      %v1529 = vmax.f32 %v1527, %v1528
      %v1530 = vrot.slane %v1529, 2
      %v1531 = vmax.f32 %v1529, %v1530
      %v1532 = vrot.slane %v1531, 1
      %v1533 = vmax.f32 %v1531, %v1532
      %vm1534 = vcmask 392448
      %v1535 = vsel %vm1534, %v1512, 0.0
      %v1536 = vrot.slane %v1535, 4
      %v1537 = vadd.f32 %v1535, %v1536
      %v1538 = vrot.slane %v1537, 2
      %v1539 = vadd.f32 %v1537, %v1538
      %v1540 = vrot.slane %v1539, 1
      %v1541 = vadd.f32 %v1539, %v1540
      %1543 = vrot.lane.b32.xlu0 %v1541, 96
      %v1544 = vpop.permute.xlu0 %1543
      %v1546 = vadd.f32 %v1526, %v1544
      %v1547 = vsel %vm1534, %v1517, -inf
      %v1548 = vrot.slane %v1547, 4
      %v1549 = vmax.f32 %v1547, %v1548
      %v1550 = vrot.slane %v1549, 2
      %v1551 = vmax.f32 %v1549, %v1550
      %v1552 = vrot.slane %v1551, 1
      %v1553 = vmax.f32 %v1551, %v1552
      %1555 = vrot.lane.b32.xlu0 %v1553, 96
      %v1556 = vpop.permute.xlu0 %1555
      %v1558 = vmax.f32 %v1533, %v1556
      %vm1559 = vcmask 654848
      %v1560 = vsel %vm1559, %v1512, 0.0
      %v1561 = vrot.slane %v1560, 4
      %v1562 = vadd.f32 %v1560, %v1561
      %v1563 = vrot.slane %v1562, 2
      %v1564 = vadd.f32 %v1562, %v1563
      %v1565 = vrot.slane %v1564, 1
      %v1566 = vadd.f32 %v1564, %v1565
      %1568 = vrot.lane.b32.xlu0 %v1566, 64
      %v1569 = vpop.permute.xlu0 %1568
      %v1571 = vadd.f32 %v1546, %v1569
      %v1572 = vsel %vm1559, %v1517, -inf
      %v1573 = vrot.slane %v1572, 4
      %v1574 = vmax.f32 %v1572, %v1573
      %v1575 = vrot.slane %v1574, 2
      %v1576 = vmax.f32 %v1574, %v1575
      %v1577 = vrot.slane %v1576, 1
      %v1578 = vmax.f32 %v1576, %v1577
      %1580 = vrot.lane.b32.xlu0 %v1578, 64
      %v1581 = vpop.permute.xlu0 %1580
      %v1583 = vmax.f32 %v1558, %v1581
      %vm1584 = vcmask 917248
      %v1585 = vsel %vm1584, %v1512, 0.0
      %v1586 = vrot.slane %v1585, 4
      %v1587 = vadd.f32 %v1585, %v1586
      %v1588 = vrot.slane %v1587, 2
      %v1589 = vadd.f32 %v1587, %v1588
      %v1590 = vrot.slane %v1589, 1
      %v1591 = vadd.f32 %v1589, %v1590
      %1593 = vrot.lane.b32.xlu0 %v1591, 32
      %v1594 = vpop.permute.xlu0 %1593
      %v1596 = vadd.f32 %v1571, %v1594
      %v1597 = vsel %vm1584, %v1517, -inf
      %v1598 = vrot.slane %v1597, 4
      %v1599 = vmax.f32 %v1597, %v1598
      %v1600 = vrot.slane %v1599, 2
      %v1601 = vmax.f32 %v1599, %v1600
      %v1602 = vrot.slane %v1601, 1
      %v1603 = vmax.f32 %v1601, %v1602
      %1605 = vrot.lane.b32.xlu0 %v1603, 32
      %v1606 = vpop.permute.xlu0 %1605
      %v1608 = vmax.f32 %v1583, %v1606
      %1610 = vrot.lane.b32.xlu0 %v1505, 112
      %v1611 = vpop.permute.xlu0 %1610
      %v1613 = vmax.f32 %v1505, %v1611
      %1615 = vrot.lane.b32.xlu0 %v1507, 112
      %v1616 = vpop.permute.xlu0 %1615
      %v1618 = vmax.f32 %v1507, %v1616
      %v1619 = vsel %vm1518, %v1613, 0.0
      %v1620 = vrot.slane %v1619, 4
      %v1621 = vadd.f32 %v1619, %v1620
      %v1622 = vrot.slane %v1621, 2
      %v1623 = vadd.f32 %v1621, %v1622
      %v1624 = vrot.slane %v1623, 1
      %v1625 = vadd.f32 %v1623, %v1624
      %v1626 = vadd.f32 %v1596, %v1625
      %v1627 = vsel %vm1518, %v1618, -inf
      %v1628 = vrot.slane %v1627, 4
      %v1629 = vmax.f32 %v1627, %v1628
      %v1630 = vrot.slane %v1629, 2
      %v1631 = vmax.f32 %v1629, %v1630
      %v1632 = vrot.slane %v1631, 1
      %v1633 = vmax.f32 %v1631, %v1632
      %v1634 = vmax.f32 %v1608, %v1633
      %v1635 = vsel %vm1534, %v1613, 0.0
      %v1636 = vrot.slane %v1635, 4
      %v1637 = vadd.f32 %v1635, %v1636
      %v1638 = vrot.slane %v1637, 2
      %v1639 = vadd.f32 %v1637, %v1638
      %v1640 = vrot.slane %v1639, 1
      %v1641 = vadd.f32 %v1639, %v1640
      %1643 = vrot.lane.b32.xlu0 %v1641, 96
      %v1644 = vpop.permute.xlu0 %1643
      %v1646 = vadd.f32 %v1626, %v1644
      %v1647 = vsel %vm1534, %v1618, -inf
      %v1648 = vrot.slane %v1647, 4
      %v1649 = vmax.f32 %v1647, %v1648
      %v1650 = vrot.slane %v1649, 2
      %v1651 = vmax.f32 %v1649, %v1650
      %v1652 = vrot.slane %v1651, 1
      %v1653 = vmax.f32 %v1651, %v1652
      %1655 = vrot.lane.b32.xlu0 %v1653, 96
      %v1656 = vpop.permute.xlu0 %1655
      %v1658 = vmax.f32 %v1634, %v1656
      %v1659 = vsel %vm1559, %v1613, 0.0
      %v1660 = vrot.slane %v1659, 4
      %v1661 = vadd.f32 %v1659, %v1660
      %v1662 = vrot.slane %v1661, 2
      %v1663 = vadd.f32 %v1661, %v1662
      %v1664 = vrot.slane %v1663, 1
      %v1665 = vadd.f32 %v1663, %v1664
      %1667 = vrot.lane.b32.xlu0 %v1665, 64
      %v1668 = vpop.permute.xlu0 %1667
      %v1670 = vadd.f32 %v1646, %v1668
      %v1671 = vsel %vm1559, %v1618, -inf
      %v1672 = vrot.slane %v1671, 4
      %v1673 = vmax.f32 %v1671, %v1672
      %v1674 = vrot.slane %v1673, 2
      %v1675 = vmax.f32 %v1673, %v1674
      %v1676 = vrot.slane %v1675, 1
      %v1677 = vmax.f32 %v1675, %v1676
      %1679 = vrot.lane.b32.xlu0 %v1677, 64
      %v1680 = vpop.permute.xlu0 %1679
      %v1682 = vmax.f32 %v1658, %v1680
      %v1683 = vsel %vm1584, %v1613, 0.0
      %v1684 = vrot.slane %v1683, 4
      %v1685 = vadd.f32 %v1683, %v1684
      %v1686 = vrot.slane %v1685, 2
      %v1687 = vadd.f32 %v1685, %v1686
      %v1688 = vrot.slane %v1687, 1
      %v1689 = vadd.f32 %v1687, %v1688
      %1691 = vrot.lane.b32.xlu0 %v1689, 32
      %v1692 = vpop.permute.xlu0 %1691
      %v1694 = vadd.f32 %v1670, %v1692
      %v1695 = vsel %vm1584, %v1618, -inf
      %v1696 = vrot.slane %v1695, 4
      %v1697 = vmax.f32 %v1695, %v1696
      %v1698 = vrot.slane %v1697, 2
      %v1699 = vmax.f32 %v1697, %v1698
      %v1700 = vrot.slane %v1699, 1
      %v1701 = vmax.f32 %v1699, %v1700
      %1703 = vrot.lane.b32.xlu0 %v1701, 32
      %v1704 = vpop.permute.xlu0 %1703
      %v1706 = vmax.f32 %v1682, %v1704
      %p1707 = scmp.eq.s32.totalorder %s26, 0
      // Predicated region
      $region49: #{resnet_forward.2} parent=47 // pred_check
        %p1708 = pneg %p1707
      $region50: #{resnet_forward.2} parent=47 // pred_check_branch
        %1710 = sbr.rel (%p1708) target = $region52
      $region51: #{resnet_forward.2} parent=47 // pred_region
        %vm1711 = vcmask 122880
        %1712 = vst.msk [vmem:[%s379] sm:$0x1] %vm1711, 0.0
        %1713 = vst.msk [vmem:[%s382] sm:$0x1] %vm1711, -inf
      $region52: #{resnet_forward.2} parent=47 // pred_fallthru
        _
      %v1714 = vld [vmem:[%s379] sm:$0x1]
      %v1715 = vadd.f32 %v1714, %v1694
      %vm1716 = vcmask 122880
      %1717 = vst.msk [vmem:[%s379] sm:$0x1] %vm1716, %v1715
      %v1718 = vld [vmem:[%s382] sm:$0x1]
      %v1719 = vmax.f32 %v1718, %v1706
      %1720 = vst.msk [vmem:[%s382] sm:$0x1] %vm1716, %v1719
      %p1721 = scmp.eq.s32.totalorder %s26, 1
      // Predicated region
      $region53: #{resnet_forward.2} parent=47 // pred_check
        %p1722 = pneg %p1721
      $region54: #{resnet_forward.2} parent=47 // pred_check_branch
        %1724 = sbr.rel (%p1722) target = $region56
      $region55: #{resnet_forward.2} parent=47 // pred_region
        %v1725 = vld [vmem:[%s379] sm:$0x1]
        %v1726 = vmul.f32 %v1725, 0.015625
        %1727 = vst.msk [vmem:[%s379] sm:$0x1] %vm1716, %v1726
      $region56: #{resnet_forward.2} parent=47 // pred_fallthru
        _
      %s1728 = smul.u32 %s25, 2
      %s1729 = sadd.s32 %s1728, %s26
      %p1730 = scmp.lt.s32.totalorder %s1729, 3
      %s1731 = scalar_select %p1730, %s1729, 3
      %s1732 = smul.addr %s1731, 2
      %s1733 = smul.addr %s1732, 4
      %s1734 = scalar_lea.vmem %s7, %s1733
      %p1735 = scmp.lt.s32.totalorder %s25, 1
      %s1736 = scalar_select %p1735, %s25, 1
      %s1737 = scalar_lea.vmem %s8, %s1736
      %p1738 = scmp.lt.s32.totalorder %s25, 1
      %s1739 = scalar_select %p1738, %s25, 1
      %s1740 = scalar_lea.vmem %s9, %s1739
      // Predicated region
      $region57: #{resnet_forward.2} parent=47 // pred_check
        %p1741 = pneg %p211
      $region58: #{resnet_forward.2} parent=47 // pred_check_branch
        %1743 = sbr.rel (%p1741) target = $region60
      $region59: #{resnet_forward.2} parent=47 // pred_region
        %s1744 = smul.u32 %s25, 2
        %s1745 = sadd.s32 %s1744, %s26
      $region60: #{resnet_forward.2} parent=47 // pred_fallthru
        _
      // Predicated region
      $region61: #{resnet_forward.2} parent=47 // pred_check
        %p1746 = pneg %p237
      $region62: #{resnet_forward.2} parent=47 // pred_check_branch
        %1748 = sbr.rel (%p1746) target = $region64
      $region63: #{resnet_forward.2} parent=47 // pred_region
        _
      $region64: #{resnet_forward.2} parent=47 // pred_fallthru
        _
      // Predicated region
      $region65: #{resnet_forward.2} parent=47 // pred_check
        %p1749 = pneg %p263
      $region66: #{resnet_forward.2} parent=47 // pred_check_branch
        %1751 = sbr.rel (%p1749) target = $region68
      $region67: #{resnet_forward.2} parent=47 // pred_region
        _
      $region68: #{resnet_forward.2} parent=47 // pred_fallthru
        _
    $region48: #{resnet_forward.2} parent=5 // pred_fallthru
      _
    %p1752 = scmp.le.s32.totalorder 2, %s16
    // Predicated region
    $region69: #{resnet_forward.2} parent=5 // pred_check
      %p1753 = pneg %p1752
    $region70: #{resnet_forward.2} parent=5 // pred_check_branch
      %1755 = sbr.rel (%p1753) target = $region72
    $region71: #{resnet_forward.2} parent=5 // pred_region
      %s1756 = ssub.s32 %s16, 2
      // Predicated region
      $region73: #{resnet_forward.2} parent=71 // pred_check
        %p1757 = pneg %p217
      $region74: #{resnet_forward.2} parent=71 // pred_check_branch
        %1759 = sbr.rel (%p1757) target = $region76
      $region75: #{resnet_forward.2} parent=71 // pred_region
        %s1760 = smul.u32 %s27, 2
        %s1761 = sadd.s32 %s1760, %s28
        %p1762 = scmp.lt.s32.totalorder %s1761, 3
        %s1763 = scalar_select %p1762, %s1761, 3
        %s1764 = smul.addr %s1763, 2
        %s1765 = smul.addr %s1764, 4
        %s1766 = scalar_lea.vmem %s7, %s1765
      $region76: #{resnet_forward.2} parent=71 // pred_fallthru
        _
      // Predicated region
      $region77: #{resnet_forward.2} parent=71 // pred_check
        %p1767 = pneg %p243
      $region78: #{resnet_forward.2} parent=71 // pred_check_branch
        %1769 = sbr.rel (%p1767) target = $region80
      $region79: #{resnet_forward.2} parent=71 // pred_region
        %p1770 = scmp.lt.s32.totalorder %s27, 1
        %s1771 = scalar_select %p1770, %s27, 1
        %s1772 = scalar_lea.vmem %s8, %s1771
      $region80: #{resnet_forward.2} parent=71 // pred_fallthru
        _
      // Predicated region
      $region81: #{resnet_forward.2} parent=71 // pred_check
        %p1773 = pneg %p269
      $region82: #{resnet_forward.2} parent=71 // pred_check_branch
        %1775 = sbr.rel (%p1773) target = $region84
      $region83: #{resnet_forward.2} parent=71 // pred_region
        %p1776 = scmp.lt.s32.totalorder %s27, 1
        %s1777 = scalar_select %p1776, %s27, 1
        %s1778 = scalar_lea.vmem %s9, %s1777
      $region84: #{resnet_forward.2} parent=71 // pred_fallthru
        _
    $region72: #{resnet_forward.2} parent=5 // pred_fallthru
      _
  $region6: #{resnet_forward.2} parent=0 // loop_footer
    %s20 = sadd.s32 1, %s16
  $region7: #{resnet_forward.2} parent=0 // loop_footer_branch
    %15 = sbr.rel target = $region3
  $region8: #{resnet_forward.2} parent=0 // loop_exit
    _

// kernel: resnet_forward.3
$region0: #{resnet_forward.3}
  #allocation0 [shape = 'u32[]', space=smem, size = 0x4, offset = 0x4, fixed_abs, tag = 'smem constant byte address 0x4 - core index']
  #allocation1 [shape = 'u32[144,128]{1,0:T(1,128)}', space=vmem, size = 0x12000, scoped, tag = 'internal scratch']
  %s0 = inlined_call_operand.vmem [shape: bf16[32,256], index: 0, kind: input, shape index: {}]
  %s1 = inlined_call_operand.vmem [shape: f32[2,1,512], index: 1, kind: input, shape index: {}]
  %s2 = inlined_call_operand.vmem [shape: f32[512,256], index: 2, kind: input, shape index: {}]
  %s3 = inlined_call_operand.vmem [shape: f32[1,256], index: 3, kind: input, shape index: {}]
  %s4 = inlined_call_operand.vmem [shape: f32[256,256], index: 4, kind: input, shape index: {}]
  %s5 = inlined_call_operand.vmem [shape: f32[1,256], index: 5, kind: input, shape index: {}]
  %s6 = inlined_call_operand.vmem [shape: f32[32,256], index: 6, kind: output, shape index: {}]
  %s7 = sld [smem:[#allocation0]]
  $region57: #{resnet_forward.3} parent=0
    _
  %s9 = ssub.s32 1, %s7
  %s10 = scalar_select 0, %s9, %s7
  loop: start=0, step=1, limit=6
  $region2: #{resnet_forward.3} parent=0 // loop_pre_header
    _
  $region3: #{resnet_forward.3} parent=0 // loop_header
    %s12 = sphi 0, %s16
    %p13 = scmp.ge.s32.totalorder %s12, 6
    %s19 = sphi 0, %s31
    %s20 = sphi 0, %s27
    %s21 = sphi 0, %s19
    %s22 = sphi 0, %s20
    %s23 = sphi 0, %s21
    %s24 = sphi 0, %s22
    %s38 = sphi 0, %s40
    %s41 = sphi 0, %s38
    %s42 = sphi 0, %s41
    %s58 = sphi 0, %s42
    %s64 = sphi 0, %s66
    %s67 = sphi 0, %s64
    %s68 = sphi 0, %s67
    %s84 = sphi 0, %s68
    %s88 = sphi 0, %s88
    %s90 = sphi 0, %s88
    %s91 = sphi 0, %s90
    %s105 = sphi 0, %s91
    %s109 = sphi 0, %s109
    %s111 = sphi 0, %s109
    %s112 = sphi 0, %s111
    %s126 = sphi 0, %s112
    %s130 = sphi 0, %s130
    %s132 = sphi 0, %s130
    %s133 = sphi 0, %s132
    %s147 = sphi 0, %s133
    %s151 = sphi 0, %s151
    %s153 = sphi 0, %s151
    %s154 = sphi 0, %s153
    %s168 = sphi 0, %s154
    %s178 = sphi 0, %s180
    %s181 = sphi 0, %s178
    %s182 = sphi 0, %s181
    %s198 = sphi 0, %s182
  $region4: #{resnet_forward.3} parent=0 // loop_header_branch
    %15 = sbr.rel (%p13) target = $region8
  $region5: #{resnet_forward.3} parent=0 // loop_body
    %s17 = ssub.s32 %s12, 1
    %s18 = ssub.s32 %s12, 2
    %s25 = sadd.s32 1, %s20
    %p26 = scmp.ge.s32.totalorder %s25, 2
    %s27 = scalar_select %p26, 0, %s25
    %s28 = sadd.s32 1, %s19
    %s29 = scalar_select %p26, %s28, %s19
    %p30 = scmp.ge.s32.totalorder %s29, 2
    %s31 = scalar_select %p30, 0, %s29
    %s32 = smul.u32 %s19, 2
    %s33 = sadd.s32 %s32, %s20
    %s34 = smul.u32 %s31, 2
    %s35 = sadd.s32 %s34, %s27
    %s36 = ssub.s32 %s33, %s35
    %p37 = scmp.eq.s32.totalorder %s36, 0
    %s39 = sadd.s32 %s38, 1
    %s40 = scalar_select %p37, %s38, %s39
    %p43 = pneg %p37
    %p44 = scmp.eq.s32.totalorder %s12, 3
    %p45 = por %p43, %p44
    %p46 = scmp.ne.s32.totalorder %s38, %s41
    %p47 = scmp.eq.s32.totalorder %s12, 0
    %p48 = por %p46, %p47
    %p49 = scmp.ne.s32.totalorder %s38, %s41
    %p50 = scmp.eq.s32.totalorder %s17, 3
    %p51 = por %p49, %p50
    %p52 = scmp.ne.s32.totalorder %s41, %s42
    %p53 = scmp.eq.s32.totalorder %s17, 0
    %p54 = por %p52, %p53
    %p55 = scmp.ne.s32.totalorder %s41, %s42
    %p56 = scmp.eq.s32.totalorder %s18, 3
    %p57 = por %p55, %p56
    %p59 = scmp.ne.s32.totalorder %s42, %s58
    %p60 = scmp.eq.s32.totalorder %s18, 0
    %p61 = por %p59, %p60
    %s62 = ssub.s32 %s19, %s31
    %p63 = scmp.eq.s32.totalorder %s62, 0
    %s65 = sadd.s32 %s64, 1
    %s66 = scalar_select %p63, %s64, %s65
    %p69 = pneg %p63
    %p70 = scmp.eq.s32.totalorder %s12, 3
    %p71 = por %p69, %p70
    %p72 = scmp.ne.s32.totalorder %s64, %s67
    %p73 = scmp.eq.s32.totalorder %s12, 0
    %p74 = por %p72, %p73
    %p75 = scmp.ne.s32.totalorder %s64, %s67
    %p76 = scmp.eq.s32.totalorder %s17, 3
    %p77 = por %p75, %p76
    %p78 = scmp.ne.s32.totalorder %s67, %s68
    %p79 = scmp.eq.s32.totalorder %s17, 0
    %p80 = por %p78, %p79
    %p81 = scmp.ne.s32.totalorder %s67, %s68
    %p82 = scmp.eq.s32.totalorder %s18, 3
    %p83 = por %p81, %p82
    %p85 = scmp.ne.s32.totalorder %s68, %s84
    %p86 = scmp.eq.s32.totalorder %s18, 0
    %p87 = por %p85, %p86
    %s89 = sadd.s32 %s88, 1
    %p92 = scmp.eq.s32.totalorder %s12, 3
    %p93 = scmp.ne.s32.totalorder %s88, %s90
    %p94 = scmp.eq.s32.totalorder %s12, 0
    %p95 = por %p93, %p94
    %p96 = scmp.ne.s32.totalorder %s88, %s90
    %p97 = scmp.eq.s32.totalorder %s17, 3
    %p98 = por %p96, %p97
    %p99 = scmp.ne.s32.totalorder %s90, %s91
    %p100 = scmp.eq.s32.totalorder %s17, 0
    %p101 = por %p99, %p100
    %p102 = scmp.ne.s32.totalorder %s90, %s91
    %p103 = scmp.eq.s32.totalorder %s18, 3
    %p104 = por %p102, %p103
    %p106 = scmp.ne.s32.totalorder %s91, %s105
    %p107 = scmp.eq.s32.totalorder %s18, 0
    %p108 = por %p106, %p107
    %s110 = sadd.s32 %s109, 1
    %p113 = scmp.eq.s32.totalorder %s12, 3
    %p114 = scmp.ne.s32.totalorder %s109, %s111
    %p115 = scmp.eq.s32.totalorder %s12, 0
    %p116 = por %p114, %p115
    %p117 = scmp.ne.s32.totalorder %s109, %s111
    %p118 = scmp.eq.s32.totalorder %s17, 3
    %p119 = por %p117, %p118
    %p120 = scmp.ne.s32.totalorder %s111, %s112
    %p121 = scmp.eq.s32.totalorder %s17, 0
    %p122 = por %p120, %p121
    %p123 = scmp.ne.s32.totalorder %s111, %s112
    %p124 = scmp.eq.s32.totalorder %s18, 3
    %p125 = por %p123, %p124
    %p127 = scmp.ne.s32.totalorder %s112, %s126
    %p128 = scmp.eq.s32.totalorder %s18, 0
    %p129 = por %p127, %p128
    %s131 = sadd.s32 %s130, 1
    %p134 = scmp.eq.s32.totalorder %s12, 3
    %p135 = scmp.ne.s32.totalorder %s130, %s132
    %p136 = scmp.eq.s32.totalorder %s12, 0
    %p137 = por %p135, %p136
    %p138 = scmp.ne.s32.totalorder %s130, %s132
    %p139 = scmp.eq.s32.totalorder %s17, 3
    %p140 = por %p138, %p139
    %p141 = scmp.ne.s32.totalorder %s132, %s133
    %p142 = scmp.eq.s32.totalorder %s17, 0
    %p143 = por %p141, %p142
    %p144 = scmp.ne.s32.totalorder %s132, %s133
    %p145 = scmp.eq.s32.totalorder %s18, 3
    %p146 = por %p144, %p145
    %p148 = scmp.ne.s32.totalorder %s133, %s147
    %p149 = scmp.eq.s32.totalorder %s18, 0
    %p150 = por %p148, %p149
    %s152 = sadd.s32 %s151, 1
    %p155 = scmp.eq.s32.totalorder %s12, 3
    %p156 = scmp.ne.s32.totalorder %s151, %s153
    %p157 = scmp.eq.s32.totalorder %s12, 0
    %p158 = por %p156, %p157
    %p159 = scmp.ne.s32.totalorder %s151, %s153
    %p160 = scmp.eq.s32.totalorder %s17, 3
    %p161 = por %p159, %p160
    %p162 = scmp.ne.s32.totalorder %s153, %s154
    %p163 = scmp.eq.s32.totalorder %s17, 0
    %p164 = por %p162, %p163
    %p165 = scmp.ne.s32.totalorder %s153, %s154
    %p166 = scmp.eq.s32.totalorder %s18, 3
    %p167 = por %p165, %p166
    %p169 = scmp.ne.s32.totalorder %s154, %s168
    %p170 = scmp.eq.s32.totalorder %s18, 0
    %p171 = por %p169, %p170
    %s172 = smul.u32 %s19, 2
    %s173 = sadd.s32 %s172, %s20
    %s174 = smul.u32 %s31, 2
    %s175 = sadd.s32 %s174, %s27
    %s176 = ssub.s32 %s173, %s175
    %p177 = scmp.eq.s32.totalorder %s176, 0
    %s179 = sadd.s32 %s178, 1
    %s180 = scalar_select %p177, %s178, %s179
    %p183 = pneg %p177
    %p184 = scmp.eq.s32.totalorder %s12, 3
    %p185 = por %p183, %p184
    %p186 = scmp.ne.s32.totalorder %s178, %s181
    %p187 = scmp.eq.s32.totalorder %s12, 0
    %p188 = por %p186, %p187
    %p189 = scmp.ne.s32.totalorder %s178, %s181
    %p190 = scmp.eq.s32.totalorder %s17, 3
    %p191 = por %p189, %p190
    %p192 = scmp.ne.s32.totalorder %s181, %s182
    %p193 = scmp.eq.s32.totalorder %s17, 0
    %p194 = por %p192, %p193
    %p195 = scmp.ne.s32.totalorder %s181, %s182
    %p196 = scmp.eq.s32.totalorder %s18, 3
    %p197 = por %p195, %p196
    %p199 = scmp.ne.s32.totalorder %s182, %s198
    %p200 = scmp.eq.s32.totalorder %s18, 0
    %p201 = por %p199, %p200
    %p202 = scmp.le.s32.totalorder 1, %s12
    %p203 = scmp.lt.s32.totalorder %s12, 5
    %p204 = pnand %p202, %p203
    %p205 = pneg %p204
    // Predicated region
    $region9: #{resnet_forward.3} parent=5 // pred_check
      _
    $region10: #{resnet_forward.3} parent=5 // pred_check_branch
      %207 = sbr.rel (%p204) target = $region12
    $region11: #{resnet_forward.3} parent=5 // pred_region
      %s208 = ssub.s32 %s12, 1
      // Predicated region
      $region13: #{resnet_forward.3} parent=11 // pred_check
        %p209 = pneg %p101
      $region14: #{resnet_forward.3} parent=11 // pred_check_branch
        %211 = sbr.rel (%p209) target = $region16
      $region15: #{resnet_forward.3} parent=11 // pred_region
        _
      $region16: #{resnet_forward.3} parent=11 // pred_fallthru
        _
      // Predicated region
      $region17: #{resnet_forward.3} parent=11 // pred_check
        %p212 = pneg %p122
      $region18: #{resnet_forward.3} parent=11 // pred_check_branch
        %214 = sbr.rel (%p212) target = $region20
      $region19: #{resnet_forward.3} parent=11 // pred_region
        _
      $region20: #{resnet_forward.3} parent=11 // pred_fallthru
        _
      // Predicated region
      $region21: #{resnet_forward.3} parent=11 // pred_check
        %p215 = pneg %p143
      $region22: #{resnet_forward.3} parent=11 // pred_check_branch
        %217 = sbr.rel (%p215) target = $region24
      $region23: #{resnet_forward.3} parent=11 // pred_region
        _
      $region24: #{resnet_forward.3} parent=11 // pred_fallthru
        _
      // Predicated region
      $region25: #{resnet_forward.3} parent=11 // pred_check
        %p218 = pneg %p164
      $region26: #{resnet_forward.3} parent=11 // pred_check_branch
        %220 = sbr.rel (%p218) target = $region28
      $region27: #{resnet_forward.3} parent=11 // pred_region
        _
      $region28: #{resnet_forward.3} parent=11 // pred_fallthru
        _
    $region12: #{resnet_forward.3} parent=5 // pred_fallthru
      _
    %p221 = scmp.lt.s32.totalorder %s12, 4
    // Predicated region
    $region29: #{resnet_forward.3} parent=5 // pred_check
      %p222 = pneg %p221
    $region30: #{resnet_forward.3} parent=5 // pred_check_branch
      %224 = sbr.rel (%p222) target = $region32
    $region31: #{resnet_forward.3} parent=5 // pred_region
      // Predicated region
      $region33: #{resnet_forward.3} parent=31 // pred_check
        %p225 = pneg %p48
      $region34: #{resnet_forward.3} parent=31 // pred_check_branch
        %227 = sbr.rel (%p225) target = $region36
      $region35: #{resnet_forward.3} parent=31 // pred_region
        %s228 = smul.u32 %s19, 2
        %s229 = sadd.s32 %s228, %s20
        %p230 = scmp.lt.s32.totalorder %s229, 3
        %s231 = scalar_select %p230, %s229, 3
        %s232 = smul.addr %s231, 2
        %s233 = smul.addr %s232, 4
        %s234 = scalar_lea.vmem %s0, %s233
        %s235 = smul.u32 %s19, 2
        %s236 = sadd.s32 %s235, %s20
      $region36: #{resnet_forward.3} parent=31 // pred_fallthru
        _
      // Predicated region
      $region37: #{resnet_forward.3} parent=31 // pred_check
        %p237 = pneg %p74
      $region38: #{resnet_forward.3} parent=31 // pred_check_branch
        %239 = sbr.rel (%p237) target = $region40
      $region39: #{resnet_forward.3} parent=31 // pred_region
        %p240 = scmp.lt.s32.totalorder %s19, 1
        %s241 = scalar_select %p240, %s19, 1
        %s242 = smul.addr %s241, 4
        %s243 = scalar_lea.vmem %s1, %s242
      $region40: #{resnet_forward.3} parent=31 // pred_fallthru
        _
    $region32: #{resnet_forward.3} parent=5 // pred_fallthru
      _
    %p244 = scmp.le.s32.totalorder 1, %s12
    %p245 = scmp.lt.s32.totalorder %s12, 5
    %p246 = pnand %p244, %p245
    %p247 = pneg %p246
    // Predicated region
    $region41: #{resnet_forward.3} parent=5 // pred_check
      _
    $region42: #{resnet_forward.3} parent=5 // pred_check_branch
      %249 = sbr.rel (%p246) target = $region44
    $region43: #{resnet_forward.3} parent=5 // pred_region
      %s250 = ssub.s32 %s12, 1
      %s251 = smul.u32 %s21, 2
      %s252 = sadd.s32 %s251, %s22
      %p253 = scmp.lt.s32.totalorder %s252, 3
      %s254 = scalar_select %p253, %s252, 3
      %s255 = smul.addr %s254, 2
      %s256 = smul.addr %s255, 4
      %s257 = scalar_lea.vmem %s0, %s256
      %p258 = pneg %p54
      %p259 = pneg %p51
      %p260 = scmp.lt.s32.totalorder %s21, 1
      %s261 = scalar_select %p260, %s21, 1
      %s262 = smul.addr %s261, 4
      %s263 = scalar_lea.vmem %s1, %s262
      %p264 = pneg %p80
      %p265 = pneg %p77
      %p266 = pneg %p101
      %p267 = pneg %p98
      %p268 = pneg %p122
      %p269 = pneg %p119
      %p270 = pneg %p143
      %p271 = pneg %p140
      %p272 = pneg %p164
      %p273 = pneg %p161
      %p274 = pneg %p194
      %p275 = pneg %p191
      %s276 = smul.u32 %s21, 2
      %s277 = sadd.s32 %s276, %s22
      %p278 = scmp.lt.s32.totalorder %s277, 3
      %s279 = scalar_select %p278, %s277, 3
      %s280 = smul.addr %s279, 2
      %s281 = smul.addr %s280, 8
      %s282 = scalar_lea.vmem %s6, %s281
      %s283 = smul.u32 %s21, 2
      %s284 = sadd.s32 %s283, %s22
      %p285 = scmp.lt.s32.totalorder %s284, 3
      %s286 = scalar_select %p285, %s284, 3
      %s287 = smul.addr %s286, 2
      %s288 = smul.addr %s287, 4
      %s289 = scalar_lea.vmem %s0, %s288
      %s290 = smul.u32 %s21, 2
      %s291 = sadd.s32 %s290, %s22
      %p292 = scmp.lt.s32.totalorder %s21, 1
      %s293 = scalar_select %p292, %s21, 1
      %s294 = smul.addr %s293, 4
      %s295 = scalar_lea.vmem %s1, %s294
      %s296 = smul.u32 %s21, 2
      %s297 = sadd.s32 %s296, %s22
      %p298 = scmp.lt.s32.totalorder %s297, 3
      %s299 = scalar_select %p298, %s297, 3
      %s300 = smul.addr %s299, 2
      %s301 = smul.addr %s300, 8
      %s302 = scalar_lea.vmem %s6, %s301
      %s303 = smul.u32 %s21, 2
      %s304 = sadd.s32 %s303, %s22
      %v305 = vld [vmem:[%s295] sm:$0xf]
      %v306 = vld [vmem:[%s2] sm:$0xff]
      %v307 = vld [vmem:[%s2 + $0x8] sm:$0xff]
      %v308 = vld [vmem:[%s2 + $0x10] sm:$0xff]
      %v309 = vld [vmem:[%s2 + $0x18] sm:$0xff]
      %v310 = vld [vmem:[%s2 + $0x20] sm:$0xff]
      %v311 = vld [vmem:[%s2 + $0x28] sm:$0xff]
      %v312 = vld [vmem:[%s2 + $0x30] sm:$0xff]
      %v313 = vld [vmem:[%s2 + $0x38] sm:$0xff]
      %v314 = vld [vmem:[%s2 + $0x40] sm:$0xff]
      %v315 = vld [vmem:[%s2 + $0x48] sm:$0xff]
      %v316 = vld [vmem:[%s2 + $0x50] sm:$0xff]
      %v317 = vld [vmem:[%s2 + $0x58] sm:$0xff]
      %v318 = vld [vmem:[%s2 + $0x60] sm:$0xff]
      %v319 = vld [vmem:[%s2 + $0x68] sm:$0xff]
      %v320 = vld [vmem:[%s2 + $0x70] sm:$0xff]
      %v321 = vld [vmem:[%s2 + $0x78] sm:$0xff]
      %v322 = vld [vmem:[%s2 + $0x80] sm:$0xff]
      %v323 = vld [vmem:[%s2 + $0x88] sm:$0xff]
      %v324 = vld [vmem:[%s2 + $0x90] sm:$0xff]
      %v325 = vld [vmem:[%s2 + $0x98] sm:$0xff]
      %v326 = vld [vmem:[%s2 + $0xa0] sm:$0xff]
      %v327 = vld [vmem:[%s2 + $0xa8] sm:$0xff]
      %v328 = vld [vmem:[%s2 + $0xb0] sm:$0xff]
      %v329 = vld [vmem:[%s2 + $0xb8] sm:$0xff]
      %v330 = vld [vmem:[%s2 + $0xc0] sm:$0xff]
      %v331 = vld [vmem:[%s2 + $0xc8] sm:$0xff]
      %v332 = vld [vmem:[%s2 + $0xd0] sm:$0xff]
      %v333 = vld [vmem:[%s2 + $0xd8] sm:$0xff]
      %v334 = vld [vmem:[%s2 + $0xe0] sm:$0xff]
      %v335 = vld [vmem:[%s2 + $0xe8] sm:$0xff]
      %v336 = vld [vmem:[%s2 + $0xf0] sm:$0xff]
      %v337 = vld [vmem:[%s2 + $0xf8] sm:$0xff]
      %v338 = vld [vmem:[%s2 + $0x100] sm:$0xff]
      %v339 = vld [vmem:[%s2 + $0x108] sm:$0xff]
      %v340 = vld [vmem:[%s2 + $0x110] sm:$0xff]
      %v341 = vld [vmem:[%s2 + $0x118] sm:$0xff]
      %v342 = vld [vmem:[%s2 + $0x120] sm:$0xff]
      %v343 = vld [vmem:[%s2 + $0x128] sm:$0xff]
      %v344 = vld [vmem:[%s2 + $0x130] sm:$0xff]
      %v345 = vld [vmem:[%s2 + $0x138] sm:$0xff]
      %v346 = vld [vmem:[%s2 + $0x140] sm:$0xff]
      %v347 = vld [vmem:[%s2 + $0x148] sm:$0xff]
      %v348 = vld [vmem:[%s2 + $0x150] sm:$0xff]
      %v349 = vld [vmem:[%s2 + $0x158] sm:$0xff]
      %v350 = vld [vmem:[%s2 + $0x160] sm:$0xff]
      %v351 = vld [vmem:[%s2 + $0x168] sm:$0xff]
      %v352 = vld [vmem:[%s2 + $0x170] sm:$0xff]
      %v353 = vld [vmem:[%s2 + $0x178] sm:$0xff]
      %v354 = vld [vmem:[%s2 + $0x180] sm:$0xff]
      %v355 = vld [vmem:[%s2 + $0x188] sm:$0xff]
      %v356 = vld [vmem:[%s2 + $0x190] sm:$0xff]
      %v357 = vld [vmem:[%s2 + $0x198] sm:$0xff]
      %v358 = vld [vmem:[%s2 + $0x1a0] sm:$0xff]
      %v359 = vld [vmem:[%s2 + $0x1a8] sm:$0xff]
      %v360 = vld [vmem:[%s2 + $0x1b0] sm:$0xff]
      %v361 = vld [vmem:[%s2 + $0x1b8] sm:$0xff]
      %v362 = vld [vmem:[%s2 + $0x1c0] sm:$0xff]
      %v363 = vld [vmem:[%s2 + $0x1c8] sm:$0xff]
      %v364 = vld [vmem:[%s2 + $0x1d0] sm:$0xff]
      %v365 = vld [vmem:[%s2 + $0x1d8] sm:$0xff]
      %v366 = vld [vmem:[%s2 + $0x1e0] sm:$0xff]
      %v367 = vld [vmem:[%s2 + $0x1e8] sm:$0xff]
      %v368 = vld [vmem:[%s2 + $0x1f0] sm:$0xff]
      %v369 = vld [vmem:[%s2 + $0x1f8] sm:$0xff]
      %v370 = vld [vmem:[%s2 + $0x200] sm:$0xff]
      %v371 = vld [vmem:[%s2 + $0x208] sm:$0xff]
      %v372 = vld [vmem:[%s2 + $0x210] sm:$0xff]
      %v373 = vld [vmem:[%s2 + $0x218] sm:$0xff]
      %v374 = vld [vmem:[%s2 + $0x220] sm:$0xff]
      %v375 = vld [vmem:[%s2 + $0x228] sm:$0xff]
      %v376 = vld [vmem:[%s2 + $0x230] sm:$0xff]
      %v377 = vld [vmem:[%s2 + $0x238] sm:$0xff]
      %v378 = vld [vmem:[%s2 + $0x240] sm:$0xff]
      %v379 = vld [vmem:[%s2 + $0x248] sm:$0xff]
      %v380 = vld [vmem:[%s2 + $0x250] sm:$0xff]
      %v381 = vld [vmem:[%s2 + $0x258] sm:$0xff]
      %v382 = vld [vmem:[%s2 + $0x260] sm:$0xff]
      %v383 = vld [vmem:[%s2 + $0x268] sm:$0xff]
      %v384 = vld [vmem:[%s2 + $0x270] sm:$0xff]
      %v385 = vld [vmem:[%s2 + $0x278] sm:$0xff]
      %v386 = vld [vmem:[%s2 + $0x280] sm:$0xff]
      %v387 = vld [vmem:[%s2 + $0x288] sm:$0xff]
      %v388 = vld [vmem:[%s2 + $0x290] sm:$0xff]
      %v389 = vld [vmem:[%s2 + $0x298] sm:$0xff]
      %v390 = vld [vmem:[%s2 + $0x2a0] sm:$0xff]
      %v391 = vld [vmem:[%s2 + $0x2a8] sm:$0xff]
      %v392 = vld [vmem:[%s2 + $0x2b0] sm:$0xff]
      %v393 = vld [vmem:[%s2 + $0x2b8] sm:$0xff]
      %v394 = vld [vmem:[%s2 + $0x2c0] sm:$0xff]
      %v395 = vld [vmem:[%s2 + $0x2c8] sm:$0xff]
      %v396 = vld [vmem:[%s2 + $0x2d0] sm:$0xff]
      %v397 = vld [vmem:[%s2 + $0x2d8] sm:$0xff]
      %v398 = vld [vmem:[%s2 + $0x2e0] sm:$0xff]
      %v399 = vld [vmem:[%s2 + $0x2e8] sm:$0xff]
      %v400 = vld [vmem:[%s2 + $0x2f0] sm:$0xff]
      %v401 = vld [vmem:[%s2 + $0x2f8] sm:$0xff]
      %v402 = vld [vmem:[%s2 + $0x300] sm:$0xff]
      %v403 = vld [vmem:[%s2 + $0x308] sm:$0xff]
      %v404 = vld [vmem:[%s2 + $0x310] sm:$0xff]
      %v405 = vld [vmem:[%s2 + $0x318] sm:$0xff]
      %v406 = vld [vmem:[%s2 + $0x320] sm:$0xff]
      %v407 = vld [vmem:[%s2 + $0x328] sm:$0xff]
      %v408 = vld [vmem:[%s2 + $0x330] sm:$0xff]
      %v409 = vld [vmem:[%s2 + $0x338] sm:$0xff]
      %v410 = vld [vmem:[%s2 + $0x340] sm:$0xff]
      %v411 = vld [vmem:[%s2 + $0x348] sm:$0xff]
      %v412 = vld [vmem:[%s2 + $0x350] sm:$0xff]
      %v413 = vld [vmem:[%s2 + $0x358] sm:$0xff]
      %v414 = vld [vmem:[%s2 + $0x360] sm:$0xff]
      %v415 = vld [vmem:[%s2 + $0x368] sm:$0xff]
      %v416 = vld [vmem:[%s2 + $0x370] sm:$0xff]
      %v417 = vld [vmem:[%s2 + $0x378] sm:$0xff]
      %v418 = vld [vmem:[%s2 + $0x380] sm:$0xff]
      %v419 = vld [vmem:[%s2 + $0x388] sm:$0xff]
      %v420 = vld [vmem:[%s2 + $0x390] sm:$0xff]
      %v421 = vld [vmem:[%s2 + $0x398] sm:$0xff]
      %v422 = vld [vmem:[%s2 + $0x3a0] sm:$0xff]
      %v423 = vld [vmem:[%s2 + $0x3a8] sm:$0xff]
      %v424 = vld [vmem:[%s2 + $0x3b0] sm:$0xff]
      %v425 = vld [vmem:[%s2 + $0x3b8] sm:$0xff]
      %v426 = vld [vmem:[%s2 + $0x3c0] sm:$0xff]
      %v427 = vld [vmem:[%s2 + $0x3c8] sm:$0xff]
      %v428 = vld [vmem:[%s2 + $0x3d0] sm:$0xff]
      %v429 = vld [vmem:[%s2 + $0x3d8] sm:$0xff]
      %v430 = vld [vmem:[%s2 + $0x3e0] sm:$0xff]
      %v431 = vld [vmem:[%s2 + $0x3e8] sm:$0xff]
      %v432 = vld [vmem:[%s2 + $0x3f0] sm:$0xff]
      %v433 = vld [vmem:[%s2 + $0x3f8] sm:$0xff]
      %v434 = vld [vmem:[%s3] sm:$0x3]
      %v436 = vlaneseq
      %v437 = vshrl.u32 %v436, 7
      %v438 = vsub.s32 0, %v437
      %v439 = vrot.slane %v305, %v438
      %v440 = vlaneseq
      %v441 = vshrl.u32 %v440, 7
      %v442 = vsub.s32 1, %v441
      %v443 = vrot.slane %v305, %v442
      %v444 = vlaneseq
      %v445 = vshrl.u32 %v444, 7
      %v446 = vsub.s32 2, %v445
      %v447 = vrot.slane %v305, %v446
      %v448 = vlaneseq
      %v449 = vshrl.u32 %v448, 7
      %v450 = vsub.s32 3, %v449
      %v451 = vrot.slane %v305, %v450
      %v457 = vlaneseq
      %v458 = vshrl.u32 %v457, 7
      %v459 = vsub.s32 0, %v458
      %v460 = vrot.slane %v434, %v459
      %v461 = vlaneseq
      %v462 = vshrl.u32 %v461, 7
      %v463 = vsub.s32 1, %v462
      %v464 = vrot.slane %v434, %v463
      %467 = vmatprep.subr.mxu0 %v337
      %468 = vmatpush1.msra.mxu0 %v336
      %469 = vmatprep.subr.mxu0 %v335
      %470 = vmatpush1.msra.mxu0 %v334
      %471 = vmatprep.subr.mxu0 %v333
      %472 = vmatpush1.msra.mxu0 %v332
      %473 = vmatprep.subr.mxu0 %v331
      %474 = vmatpush1.msra.mxu0 %v330
      %475 = vmatprep.subr.mxu0 %v329
      %476 = vmatpush1.msra.mxu0 %v328
      %477 = vmatprep.subr.mxu0 %v327
      %478 = vmatpush1.msra.mxu0 %v326
      %479 = vmatprep.subr.mxu0 %v325
      %480 = vmatpush1.msra.mxu0 %v324
      %481 = vmatprep.subr.mxu0 %v323
      %482 = vmatpush1.msra.mxu0 %v322
      %483 = vmatprep.subr.mxu0 %v321
      %484 = vmatpush1.msra.mxu0 %v320
      %485 = vmatprep.subr.mxu0 %v319
      %486 = vmatpush1.msra.mxu0 %v318
      %487 = vmatprep.subr.mxu0 %v317
      %488 = vmatpush1.msra.mxu0 %v316
      %489 = vmatprep.subr.mxu0 %v315
      %490 = vmatpush1.msra.mxu0 %v314
      %491 = vmatprep.subr.mxu0 %v313
      %492 = vmatpush1.msra.mxu0 %v312
      %493 = vmatprep.subr.mxu0 %v311
      %494 = vmatpush1.msra.mxu0 %v310
      %495 = vmatprep.subr.mxu0 %v309
      %496 = vmatpush1.msra.mxu0 %v308
      %497 = vmatprep.subr.mxu0 %v307
      %498 = vmatpush1.msra.mxu0 %v306
      %499 = vmatprep.subr.mxu0 %v369
      %500 = vmatpush2.msra.mxu0 %v368
      %501 = vmatprep.subr.mxu0 %v367
      %502 = vmatpush2.msra.mxu0 %v366
      %503 = vmatprep.subr.mxu0 %v365
      %504 = vmatpush2.msra.mxu0 %v364
      %505 = vmatprep.subr.mxu0 %v363
      %506 = vmatpush2.msra.mxu0 %v362
      %507 = vmatprep.subr.mxu0 %v361
      %508 = vmatpush2.msra.mxu0 %v360
      %509 = vmatprep.subr.mxu0 %v359
      %510 = vmatpush2.msra.mxu0 %v358
      %511 = vmatprep.subr.mxu0 %v357
      %512 = vmatpush2.msra.mxu0 %v356
      %513 = vmatprep.subr.mxu0 %v355
      %514 = vmatpush2.msra.mxu0 %v354
      %515 = vmatprep.subr.mxu0 %v353
      %516 = vmatpush2.msra.mxu0 %v352
      %517 = vmatprep.subr.mxu0 %v351
      %518 = vmatpush2.msra.mxu0 %v350
      %519 = vmatprep.subr.mxu0 %v349
      %520 = vmatpush2.msra.mxu0 %v348
      %521 = vmatprep.subr.mxu0 %v347
      %522 = vmatpush2.msra.mxu0 %v346
      %523 = vmatprep.subr.mxu0 %v345
      %524 = vmatpush2.msra.mxu0 %v344
      %525 = vmatprep.subr.mxu0 %v343
      %526 = vmatpush2.msra.mxu0 %v342
      %527 = vmatprep.subr.mxu0 %v341
      %528 = vmatpush2.msra.mxu0 %v340
      %529 = vmatprep.subr.mxu0 %v339
      %530 = vmatpush2.msra.mxu0 %v338
      %531 = vmatprep.mubr.f32.mxu0 %v443
      %532 = vmatmul.mubr.f32.gmra.mxu0 %v439
      %v533 = vpop.f32.mrf.mxu0
      %v534 = vadd.f32 %v460, %v533
      %v535 = vpop.f32.mrf.mxu0
      %v536 = vadd.f32 %v464, %v535
      %537 = vdwg.mxu0
      %538 = vmatprep.subr.mxu0 %v401
      %539 = vmatpush1.msra.mxu0 %v400
      %540 = vmatprep.subr.mxu0 %v399
      %541 = vmatpush1.msra.mxu0 %v398
      %542 = vmatprep.subr.mxu0 %v397
      %543 = vmatpush1.msra.mxu0 %v396
      %544 = vmatprep.subr.mxu0 %v395
      %545 = vmatpush1.msra.mxu0 %v394
      %546 = vmatprep.subr.mxu0 %v393
      %547 = vmatpush1.msra.mxu0 %v392
      %548 = vmatprep.subr.mxu0 %v391
      %549 = vmatpush1.msra.mxu0 %v390
      %550 = vmatprep.subr.mxu0 %v389
      %551 = vmatpush1.msra.mxu0 %v388
      %552 = vmatprep.subr.mxu0 %v387
      %553 = vmatpush1.msra.mxu0 %v386
      %554 = vmatprep.subr.mxu0 %v385
      %555 = vmatpush1.msra.mxu0 %v384
      %556 = vmatprep.subr.mxu0 %v383
      %557 = vmatpush1.msra.mxu0 %v382
      %558 = vmatprep.subr.mxu0 %v381
      %559 = vmatpush1.msra.mxu0 %v380
      %560 = vmatprep.subr.mxu0 %v379
      %561 = vmatpush1.msra.mxu0 %v378
      %562 = vmatprep.subr.mxu0 %v377
      %563 = vmatpush1.msra.mxu0 %v376
      %564 = vmatprep.subr.mxu0 %v375
      %565 = vmatpush1.msra.mxu0 %v374
      %566 = vmatprep.subr.mxu0 %v373
      %567 = vmatpush1.msra.mxu0 %v372
      %568 = vmatprep.subr.mxu0 %v371
      %569 = vmatpush1.msra.mxu0 %v370
      %570 = vmatprep.subr.mxu0 %v433
      %571 = vmatpush2.msra.mxu0 %v432
      %572 = vmatprep.subr.mxu0 %v431
      %573 = vmatpush2.msra.mxu0 %v430
      %574 = vmatprep.subr.mxu0 %v429
      %575 = vmatpush2.msra.mxu0 %v428
      %576 = vmatprep.subr.mxu0 %v427
      %577 = vmatpush2.msra.mxu0 %v426
      %578 = vmatprep.subr.mxu0 %v425
      %579 = vmatpush2.msra.mxu0 %v424
      %580 = vmatprep.subr.mxu0 %v423
      %581 = vmatpush2.msra.mxu0 %v422
      %582 = vmatprep.subr.mxu0 %v421
      %583 = vmatpush2.msra.mxu0 %v420
      %584 = vmatprep.subr.mxu0 %v419
      %585 = vmatpush2.msra.mxu0 %v418
      %586 = vmatprep.subr.mxu0 %v417
      %587 = vmatpush2.msra.mxu0 %v416
      %588 = vmatprep.subr.mxu0 %v415
      %589 = vmatpush2.msra.mxu0 %v414
      %590 = vmatprep.subr.mxu0 %v413
      %591 = vmatpush2.msra.mxu0 %v412
      %592 = vmatprep.subr.mxu0 %v411
      %593 = vmatpush2.msra.mxu0 %v410
      %594 = vmatprep.subr.mxu0 %v409
      %595 = vmatpush2.msra.mxu0 %v408
      %596 = vmatprep.subr.mxu0 %v407
      %597 = vmatpush2.msra.mxu0 %v406
      %598 = vmatprep.subr.mxu0 %v405
      %599 = vmatpush2.msra.mxu0 %v404
      %600 = vmatprep.subr.mxu0 %v403
      %601 = vmatpush2.msra.mxu0 %v402
      %602 = vmatprep.mubr.f32.mxu0 %v451
      %603 = vmatmul.mubr.f32.gmra.mxu0 %v447
      %v604 = vpop.f32.mrf.mxu0
      %v605 = vadd.f32 %v534, %v604
      %v606 = vpop.f32.mrf.mxu0
      %v607 = vadd.f32 %v536, %v606
      %608 = vdwg.mxu0
      %v609 = vld [vmem:[%s289] sm:$0xff]
      %v610 = vunpack.c.l.bf16 %v609
      %v611 = vunpack.c.h.bf16 %v609
      %v612 = vlaneseq
      %v613 = vshrl.u32 %v612, 7
      %v614 = vsub.s32 0, %v613
      %v615 = vrot.slane %v605, %v614
      %v616 = vlaneseq
      %v617 = vshrl.u32 %v616, 7
      %v618 = vsub.s32 0, %v617
      %v619 = vrot.slane %v607, %v618
      %v620 = vadd.f32 %v610, %v615
      %v621 = vadd.f32 %v611, %v619
      %v622 = vld [vmem:[%s4] sm:$0xff]
      %v623 = vld [vmem:[%s4 + $0x8] sm:$0xff]
      %v624 = vld [vmem:[%s4 + $0x10] sm:$0xff]
      %v625 = vld [vmem:[%s4 + $0x18] sm:$0xff]
      %v626 = vld [vmem:[%s4 + $0x20] sm:$0xff]
      %v627 = vld [vmem:[%s4 + $0x28] sm:$0xff]
      %v628 = vld [vmem:[%s4 + $0x30] sm:$0xff]
      %v629 = vld [vmem:[%s4 + $0x38] sm:$0xff]
      %v630 = vld [vmem:[%s4 + $0x40] sm:$0xff]
      %v631 = vld [vmem:[%s4 + $0x48] sm:$0xff]
      %v632 = vld [vmem:[%s4 + $0x50] sm:$0xff]
      %v633 = vld [vmem:[%s4 + $0x58] sm:$0xff]
      %v634 = vld [vmem:[%s4 + $0x60] sm:$0xff]
      %v635 = vld [vmem:[%s4 + $0x68] sm:$0xff]
      %v636 = vld [vmem:[%s4 + $0x70] sm:$0xff]
      %v637 = vld [vmem:[%s4 + $0x78] sm:$0xff]
      %v638 = vld [vmem:[%s4 + $0x80] sm:$0xff]
      %v639 = vld [vmem:[%s4 + $0x88] sm:$0xff]
      %v640 = vld [vmem:[%s4 + $0x90] sm:$0xff]
      %v641 = vld [vmem:[%s4 + $0x98] sm:$0xff]
      %v642 = vld [vmem:[%s4 + $0xa0] sm:$0xff]
      %v643 = vld [vmem:[%s4 + $0xa8] sm:$0xff]
      %v644 = vld [vmem:[%s4 + $0xb0] sm:$0xff]
      %v645 = vld [vmem:[%s4 + $0xb8] sm:$0xff]
      %v646 = vld [vmem:[%s4 + $0xc0] sm:$0xff]
      %v647 = vld [vmem:[%s4 + $0xc8] sm:$0xff]
      %v648 = vld [vmem:[%s4 + $0xd0] sm:$0xff]
      %v649 = vld [vmem:[%s4 + $0xd8] sm:$0xff]
      %v650 = vld [vmem:[%s4 + $0xe0] sm:$0xff]
      %v651 = vld [vmem:[%s4 + $0xe8] sm:$0xff]
      %v652 = vld [vmem:[%s4 + $0xf0] sm:$0xff]
      %v653 = vld [vmem:[%s4 + $0xf8] sm:$0xff]
      %v654 = vld [vmem:[%s4 + $0x100] sm:$0xff]
      %v655 = vld [vmem:[%s4 + $0x108] sm:$0xff]
      %v656 = vld [vmem:[%s4 + $0x110] sm:$0xff]
      %v657 = vld [vmem:[%s4 + $0x118] sm:$0xff]
      %v658 = vld [vmem:[%s4 + $0x120] sm:$0xff]
      %v659 = vld [vmem:[%s4 + $0x128] sm:$0xff]
      %v660 = vld [vmem:[%s4 + $0x130] sm:$0xff]
      %v661 = vld [vmem:[%s4 + $0x138] sm:$0xff]
      %v662 = vld [vmem:[%s4 + $0x140] sm:$0xff]
      %v663 = vld [vmem:[%s4 + $0x148] sm:$0xff]
      %v664 = vld [vmem:[%s4 + $0x150] sm:$0xff]
      %v665 = vld [vmem:[%s4 + $0x158] sm:$0xff]
      %v666 = vld [vmem:[%s4 + $0x160] sm:$0xff]
      %v667 = vld [vmem:[%s4 + $0x168] sm:$0xff]
      %v668 = vld [vmem:[%s4 + $0x170] sm:$0xff]
      %v669 = vld [vmem:[%s4 + $0x178] sm:$0xff]
      %v670 = vld [vmem:[%s4 + $0x180] sm:$0xff]
      %v671 = vld [vmem:[%s4 + $0x188] sm:$0xff]
      %v672 = vld [vmem:[%s4 + $0x190] sm:$0xff]
      %v673 = vld [vmem:[%s4 + $0x198] sm:$0xff]
      %v674 = vld [vmem:[%s4 + $0x1a0] sm:$0xff]
      %v675 = vld [vmem:[%s4 + $0x1a8] sm:$0xff]
      %v676 = vld [vmem:[%s4 + $0x1b0] sm:$0xff]
      %v677 = vld [vmem:[%s4 + $0x1b8] sm:$0xff]
      %v678 = vld [vmem:[%s4 + $0x1c0] sm:$0xff]
      %v679 = vld [vmem:[%s4 + $0x1c8] sm:$0xff]
      %v680 = vld [vmem:[%s4 + $0x1d0] sm:$0xff]
      %v681 = vld [vmem:[%s4 + $0x1d8] sm:$0xff]
      %v682 = vld [vmem:[%s4 + $0x1e0] sm:$0xff]
      %v683 = vld [vmem:[%s4 + $0x1e8] sm:$0xff]
      %v684 = vld [vmem:[%s4 + $0x1f0] sm:$0xff]
      %v685 = vld [vmem:[%s4 + $0x1f8] sm:$0xff]
      %v686 = vld [vmem:[%s5] sm:$0x3]
      %v688 = vlaneseq
      %v689 = vshrl.u32 %v688, 7
      %v690 = vsub.s32 0, %v689
      %v691 = vrot.slane %v686, %v690
      %v692 = vlaneseq
      %v693 = vshrl.u32 %v692, 7
      %v694 = vsub.s32 1, %v693
      %v695 = vrot.slane %v686, %v694
      %698 = vmatprep.subr.mxu0 %v653
      %699 = vmatpush1.msra.mxu0 %v652
      %700 = vmatprep.subr.mxu0 %v651
      %701 = vmatpush1.msra.mxu0 %v650
      %702 = vmatprep.subr.mxu0 %v649
      %703 = vmatpush1.msra.mxu0 %v648
      %704 = vmatprep.subr.mxu0 %v647
      %705 = vmatpush1.msra.mxu0 %v646
      %706 = vmatprep.subr.mxu0 %v645
      %707 = vmatpush1.msra.mxu0 %v644
      %708 = vmatprep.subr.mxu0 %v643
      %709 = vmatpush1.msra.mxu0 %v642
      %710 = vmatprep.subr.mxu0 %v641
      %711 = vmatpush1.msra.mxu0 %v640
      %712 = vmatprep.subr.mxu0 %v639
      %713 = vmatpush1.msra.mxu0 %v638
      %714 = vmatprep.subr.mxu0 %v637
      %715 = vmatpush1.msra.mxu0 %v636
      %716 = vmatprep.subr.mxu0 %v635
      %717 = vmatpush1.msra.mxu0 %v634
      %718 = vmatprep.subr.mxu0 %v633
      %719 = vmatpush1.msra.mxu0 %v632
      %720 = vmatprep.subr.mxu0 %v631
      %721 = vmatpush1.msra.mxu0 %v630
      %722 = vmatprep.subr.mxu0 %v629
      %723 = vmatpush1.msra.mxu0 %v628
      %724 = vmatprep.subr.mxu0 %v627
      %725 = vmatpush1.msra.mxu0 %v626
      %726 = vmatprep.subr.mxu0 %v625
      %727 = vmatpush1.msra.mxu0 %v624
      %728 = vmatprep.subr.mxu0 %v623
      %729 = vmatpush1.msra.mxu0 %v622
      %730 = vmatprep.subr.mxu0 %v685
      %731 = vmatpush2.msra.mxu0 %v684
      %732 = vmatprep.subr.mxu0 %v683
      %733 = vmatpush2.msra.mxu0 %v682
      %734 = vmatprep.subr.mxu0 %v681
      %735 = vmatpush2.msra.mxu0 %v680
      %736 = vmatprep.subr.mxu0 %v679
      %737 = vmatpush2.msra.mxu0 %v678
      %738 = vmatprep.subr.mxu0 %v677
      %739 = vmatpush2.msra.mxu0 %v676
      %740 = vmatprep.subr.mxu0 %v675
      %741 = vmatpush2.msra.mxu0 %v674
      %742 = vmatprep.subr.mxu0 %v673
      %743 = vmatpush2.msra.mxu0 %v672
      %744 = vmatprep.subr.mxu0 %v671
      %745 = vmatpush2.msra.mxu0 %v670
      %746 = vmatprep.subr.mxu0 %v669
      %747 = vmatpush2.msra.mxu0 %v668
      %748 = vmatprep.subr.mxu0 %v667
      %749 = vmatpush2.msra.mxu0 %v666
      %750 = vmatprep.subr.mxu0 %v665
      %751 = vmatpush2.msra.mxu0 %v664
      %752 = vmatprep.subr.mxu0 %v663
      %753 = vmatpush2.msra.mxu0 %v662
      %754 = vmatprep.subr.mxu0 %v661
      %755 = vmatpush2.msra.mxu0 %v660
      %756 = vmatprep.subr.mxu0 %v659
      %757 = vmatpush2.msra.mxu0 %v658
      %758 = vmatprep.subr.mxu0 %v657
      %759 = vmatpush2.msra.mxu0 %v656
      %760 = vmatprep.subr.mxu0 %v655
      %761 = vmatpush2.msra.mxu0 %v654
      %762 = vmatprep.mubr.f32.mxu0 %v621
      %763 = vmatmul.mubr.f32.gmra.mxu0 %v620
      %v764 = vpop.f32.mrf.mxu0
      %v765 = vadd.f32 %v691, %v764
      %v766 = vpop.f32.mrf.mxu0
      %v767 = vadd.f32 %v695, %v766
      %768 = vdwg.mxu0
      %769 = vst [vmem:[%s302] sm:$0xff] %v765
      %770 = vst [vmem:[%s302 + $0x8] sm:$0xff] %v767
      %s771 = smul.u32 %s21, 2
      %s772 = sadd.s32 %s771, %s22
      %p773 = scmp.lt.s32.totalorder %s772, 3
      %s774 = scalar_select %p773, %s772, 3
      %s775 = smul.addr %s774, 2
      %s776 = smul.addr %s775, 8
      %s777 = scalar_lea.vmem %s6, %s776
      // Predicated region
      $region45: #{resnet_forward.3} parent=43 // pred_check
        %p778 = pneg %p191
      $region46: #{resnet_forward.3} parent=43 // pred_check_branch
        %780 = sbr.rel (%p778) target = $region48
      $region47: #{resnet_forward.3} parent=43 // pred_region
        %s781 = smul.u32 %s21, 2
        %s782 = sadd.s32 %s781, %s22
      $region48: #{resnet_forward.3} parent=43 // pred_fallthru
        _
    $region44: #{resnet_forward.3} parent=5 // pred_fallthru
      _
    %p783 = scmp.le.s32.totalorder 2, %s12
    // Predicated region
    $region49: #{resnet_forward.3} parent=5 // pred_check
      %p784 = pneg %p783
    $region50: #{resnet_forward.3} parent=5 // pred_check_branch
      %786 = sbr.rel (%p784) target = $region52
    $region51: #{resnet_forward.3} parent=5 // pred_region
      %s787 = ssub.s32 %s12, 2
      // Predicated region
      $region53: #{resnet_forward.3} parent=51 // pred_check
        %p788 = pneg %p197
      $region54: #{resnet_forward.3} parent=51 // pred_check_branch
        %790 = sbr.rel (%p788) target = $region56
      $region55: #{resnet_forward.3} parent=51 // pred_region
        %s791 = smul.u32 %s23, 2
        %s792 = sadd.s32 %s791, %s24
        %p793 = scmp.lt.s32.totalorder %s792, 3
        %s794 = scalar_select %p793, %s792, 3
        %s795 = smul.addr %s794, 2
        %s796 = smul.addr %s795, 8
        %s797 = scalar_lea.vmem %s6, %s796
      $region56: #{resnet_forward.3} parent=51 // pred_fallthru
        _
    $region52: #{resnet_forward.3} parent=5 // pred_fallthru
      _
  $region6: #{resnet_forward.3} parent=0 // loop_footer
    %s16 = sadd.s32 1, %s12
  $region7: #{resnet_forward.3} parent=0 // loop_footer_branch
    %11 = sbr.rel target = $region3
  $region8: #{resnet_forward.3} parent=0 // loop_exit
    _

</llo_original>
